<compile_context>
chip_gen: v6e
topology: v6e:2x2x1
jax: 0.10.0
libtpu: 0.0.40
codegen_flags: <defaults>
</compile_context>

<pallas_src>
import jax
import jax.numpy as jnp
from jax.experimental import pallas as pl
from jax.experimental.pallas import tpu as pltpu

_LANES = 128


def _round_up(x, m):
    return ((x + m - 1) // m) * m


def _pick_tile(n, target):
    """Largest divisor of n that is <= target."""
    for d in range(min(n, target), 0, -1):
        if n % d == 0:
            return d
    return n


def _pick_inner_w(w, kernel_size):
    """Sub-tile width along W (sublane axis): 8-aligned, 8-16 sublanes."""
    target = 16 if kernel_size <= 7 else 8
    if w % target == 0:
        return target
    if w % 8 == 0:
        return 8
    return w  # tiny / odd W fallback: single sub-tile (masked store, fine for tests)


# -----------------------------------------------------------------------------
# Pallas kernel: single merged KxK depthwise convolution over one full-width
# (TH, W, 128) output row strip, processed in W sub-tiles of TWI sublanes.
# -----------------------------------------------------------------------------
def _make_merged_dwconv_kernel(K, TH, W, TWI, TWE, CB):
    n_sub = W // TWI
    unroll_rows = (K * K) <= 64  # fully unroll taps for K in {5, 7}

    def kernel(x_ref, w_ref, b_ref, o_ref):
        # x_ref : (1, Hp, Wpp, CB)  zero-padded image; VMEM-resident across ht
        # w_ref : (K, K, CB)        merged depthwise weights (BN folded)
        # b_ref : (1, CB)           merged per-channel bias
        # o_ref : (1, TH, W, CB)    full-width output row strip
        ht = pl.program_id(2)
        row0 = pl.multiple_of(ht * TH, TH)
        xb = x_ref.at[0]                      # (Hp, Wpp, CB) ref view, no load
        bias = b_ref[0]                       # (CB,) loaded once, hoisted

        for st in range(n_sub):               # static sub-tile loop over W
            col0 = st * TWI                   # static, sublane(8)-aligned

            def row_taps(i, acc):
                # One aligned strip load per kernel row (K loads per sub-tile);
                # the K column-shifted windows are derived in-register via
                # static slices (XLU sublane shifts), not K^2 VMEM window loads.
                strip = xb[pl.ds(row0 + i, TH), pl.ds(col0, TWE), :]
                for j in range(K):            # static inner tap loop
                    win = strip[:, j:j + TWI, :]
                    acc = acc + win * w_ref[i, j, :]
                return acc

            # Initialize the accumulator with the bias (saves a final add pass).
            acc = jnp.broadcast_to(bias, (TH, TWI, CB))
            if unroll_rows:
                for i in range(K):
                    acc = row_taps(i, acc)
            else:
                # K >= 9: keep the row loop rolled to bound vreg live ranges.
                acc = jax.lax.fori_loop(0, K, row_taps, acc)

            o_ref[0, :, col0:col0 + TWI, :] = acc

    return kernel


def dilated_reparam_forward(x_nchw, w_merged_kkc, bias_c, kernel_size):
    """DilatedReparamBlock forward (eval mode) with all branches pre-merged.

    x_nchw       : (N, C, H, W) input, PyTorch layout
    w_merged_kkc : (K, K, C) merged BN-folded depthwise weight
    bias_c       : (C,) merged BN-folded bias
    """
    N, C, H, W = x_nchw.shape
    K = kernel_size
    pad = K // 2
    CB = _LANES
    Cp = _round_up(C, CB)

    TH = _pick_tile(H, 8)                     # rows per output strip (major dim)
    TWI = _pick_inner_w(W, K)                 # sublane sub-tile width
    TWE = TWI + _round_up(K - 1, 8)           # 8-aligned loaded strip width

    Hp = H + 2 * pad                          # = H + K - 1
    # W is padded so every 8-aligned TWE strip stays in bounds:
    Wpp = W + _round_up(K - 1, 8)
    pad_w_left = pad
    pad_w_right = Wpp - W - pad

    # NCHW -> NHWC (layout plumbing) and ONE fused pad: spatial halo + channel
    # round-up to the 128-lane width.  In production keep the model NHWC with
    # C % 128 == 0 so this reduces to a small spatial halo pad and the final
    # slice/transpose can be fused into the consumer op.
    x = jnp.transpose(x_nchw, (0, 2, 3, 1)).astype(jnp.float32)
    xp = jnp.pad(x, ((0, 0), (pad, pad), (pad_w_left, pad_w_right), (0, Cp - C)))

    w = jnp.pad(w_merged_kkc.astype(jnp.float32),
                ((0, 0), (0, 0), (0, Cp - C)))            # (K, K, Cp)
    b = jnp.pad(bias_c.astype(jnp.float32), (0, Cp - C)).reshape(1, Cp)

    kernel = _make_merged_dwconv_kernel(K, TH, W, TWI, TWE, CB)
    grid = (N, Cp // CB, H // TH)

    out = pl.pallas_call(
        kernel,
        out_shape=jax.ShapeDtypeStruct((N, H, W, Cp), jnp.float32),
        grid=grid,
        in_specs=[
            # Whole padded image per (batch, channel-block): block index is
            # constant over the spatial grid axis -> DMA'd once, VMEM-resident.
            pl.BlockSpec((1, Hp, Wpp, CB), lambda n, cb, ht: (n, 0, 0, cb)),
            pl.BlockSpec((K, K, CB), lambda n, cb, ht: (0, 0, cb)),
            pl.BlockSpec((1, CB), lambda n, cb, ht: (0, cb)),
        ],
        out_specs=pl.BlockSpec((1, TH, W, CB),
                               lambda n, cb, ht: (n, ht, 0, cb)),
        compiler_params=pltpu.CompilerParams(
            # Spatial axis "arbitrary" so both TCs (v7x megacore) don't each
            # DMA the same resident image; (n, cb) provide the core parallelism.
            dimension_semantics=("parallel", "parallel", "arbitrary"),
            vmem_limit_bytes=32 * 1024 * 1024,
        ),
    )(xp, w, b)

    return jnp.transpose(out[..., :C], (0, 3, 1, 2))      # back to NCHW


# -----------------------------------------------------------------------------
# Parameter setup (matches DilatedReparamBlock.__init__ shapes; deterministic)
# -----------------------------------------------------------------------------
_BRANCH_TABLE = {
    19: ([5, 7, 9, 9, 3, 3, 3], [1, 1, 1, 2, 4, 5, 7]),
    17: ([5, 7, 9, 3, 3, 3], [1, 1, 2, 4, 5, 7]),
    15: ([5, 7, 7, 3, 3, 3], [1, 1, 2, 3, 5, 7]),
    13: ([5, 7, 7, 3, 3, 3], [1, 1, 2, 3, 4, 5]),
    11: ([5, 7, 5, 3, 3, 3], [1, 1, 2, 3, 4, 5]),
    9: ([5, 7, 5, 3, 3], [1, 1, 2, 3, 4]),
    7: ([5, 3, 3, 3], [1, 1, 2, 3]),
    5: ([3, 3], [1, 2]),
}


def init_params(key, channels, kernel_size):
    branch_ks, branch_rs = _BRANCH_TABLE[kernel_size]
    all_ks = [kernel_size] + branch_ks        # origin branch first (like forward)
    all_rs = [1] + branch_rs
    eps = 1e-5
    params = []
    for k in all_ks:
        key, k1, k2, k3, k4, k5 = jax.random.split(key, 6)
        params.append(dict(
            # depthwise conv weight, PyTorch shape (C, 1, k, k), bias=False
            w=0.1 * jax.random.normal(k1, (channels, 1, k, k), jnp.float32),
            gamma=1.0 + 0.1 * jax.random.normal(k2, (channels,), jnp.float32),
            beta=0.1 * jax.random.normal(k3, (channels,), jnp.float32),
            mean=0.1 * jax.random.normal(k4, (channels,), jnp.float32),
            var=jax.random.uniform(k5, (channels,), jnp.float32, 0.5, 1.5),
        ))
    return params, all_ks, all_rs, eps


def fold_bn(p, eps):
    """Fold eval-mode BN into the depthwise conv (per-channel affine)."""
    scale = p["gamma"] / jnp.sqrt(p["var"] + eps)            # (C,)
    w_eff = p["w"][:, 0] * scale[:, None, None]              # (C, k, k)
    b_eff = p["beta"] - p["mean"] * scale                    # (C,)
    return jnp.transpose(w_eff, (1, 2, 0)), b_eff            # (k, k, C), (C,)


def merge_branches(params, all_ks, all_rs, eps, K):
    """BN-fold every branch and merge all dilated branches into one equivalent
    KxK depthwise kernel + bias (DilatedReparamBlock.merge_dilated_branches)."""
    C = params[0]["w"].shape[0]
    big = jnp.zeros((K, K, C), jnp.float32)
    bias = jnp.zeros((C,), jnp.float32)
    for p, k, r in zip(params, all_ks, all_rs):
        w_kkc, b_eff = fold_bn(p, eps)            # (k, k, C), (C,)
        ke = r * (k - 1) + 1                      # equivalent non-dilated size
        off = K // 2 - ke // 2
        for i in range(k):
            for j in range(k):
                big = big.at[off + r * i, off + r * j, :].add(w_kkc[i, j, :])
        bias = bias + b_eff
    return big, bias


# -----------------------------------------------------------------------------
# Pure-JAX reference (mirrors the PyTorch forward, eval-mode BN, no merging)
# -----------------------------------------------------------------------------
def reference_forward(x_nchw, params, all_ks, all_rs, eps, channels):
    out = jnp.zeros_like(x_nchw)
    for p, k, r in zip(params, all_ks, all_rs):
        padding = (r * (k - 1) + 1) // 2
        y = jax.lax.conv_general_dilated(
            x_nchw, p["w"], window_strides=(1, 1),
            padding=((padding, padding), (padding, padding)),
            rhs_dilation=(r, r),
            dimension_numbers=("NCHW", "OIHW", "NCHW"),
            feature_group_count=channels)
        scale = p["gamma"] / jnp.sqrt(p["var"] + eps)
        shift = p["beta"] - p["mean"] * scale
        y = y * scale[None, :, None, None] + shift[None, :, None, None]
        out = out + y
    return out


if __name__ == "__main__":
    channels, kernel_size = 4, 7
    N, H, W = 2, 16, 16

    key = jax.random.PRNGKey(0)
    key, kx = jax.random.split(key)
    x = jax.random.normal(kx, (N, channels, H, W), jnp.float32)

    params, all_ks, all_rs, eps = init_params(key, channels, kernel_size)

    # Deploy-time reparameterization (exact for eval-mode BN).
    w_merged, b_merged = merge_branches(params, all_ks, all_rs, eps, kernel_size)

    out = dilated_reparam_forward(x, w_merged, b_merged, kernel_size)
    out = jax.block_until_ready(out)

    ref = reference_forward(x, params, all_ks, all_rs, eps, channels)
    assert out.shape == x.shape
    max_err = float(jnp.max(jnp.abs(out - ref)))
    assert jnp.allclose(out, ref, atol=1e-3, rtol=1e-3), f"max abs err {max_err}"

    print("KERNEL_OK")
</pallas_src>

<mosaic_0001>
module attributes {stable_mosaic.version = 11 : i64} {
  func.func @kernel(%arg0: i32, %arg1: i32, %arg2: i32, %arg3: memref<1x22x24x128xf32, #tpu.memory_space<vmem>>, %arg4: memref<7x7x128xf32, #tpu.memory_space<vmem>>, %arg5: memref<1x128xf32, #tpu.memory_space<vmem>>, %arg6: memref<1x8x16x128xf32, #tpu.memory_space<vmem>>) attributes {dimension_semantics = [#tpu.dimension_semantics<parallel>, #tpu.dimension_semantics<parallel>, #tpu.dimension_semantics<arbitrary>], iteration_bounds = array<i64: 2, 1, 2>, scalar_prefetch = 0 : i64, scratch_operands = 0 : i64, tpu.core_type = #tpu.core_type<tc>, window_params = [{transform_indices = @transform_0, window_bounds = array<i64: 1, 22, 24, 128>}, {transform_indices = @transform_1, window_bounds = array<i64: 7, 7, 128>}, {transform_indices = @transform_2, window_bounds = array<i64: 1, 128>}, {transform_indices = @transform_3, window_bounds = array<i64: 1, 8, 16, 128>}]} {
    %c8_i32 = arith.constant 8 : i32
    %0 = arith.muli %arg2, %c8_i32 : i32
    %1 = tpu.assume_multiple %0, 8 : i32
    %c0 = arith.constant 0 : index
    %c0_0 = arith.constant 0 : index
    %2 = vector.load %arg5[%c0, %c0_0] : memref<1x128xf32, #tpu.memory_space<vmem>>, vector<1x128xf32>
    %3 = vector.shape_cast %2 : vector<1x128xf32> to vector<128xf32>
    %4 = vector.shape_cast %3 : vector<128xf32> to vector<1x1x128xf32>
    %5 = vector.broadcast %4 : vector<1x1x128xf32> to vector<8x16x128xf32>
    %c0_i32 = arith.constant 0 : i32
    %6 = arith.addi %1, %c0_i32 : i32
    %c0_i32_1 = arith.constant 0 : i32
    %c0_i32_2 = arith.constant 0 : i32
    %c0_i32_3 = arith.constant 0 : i32
    %c0_i32_4 = arith.constant 0 : i32
    %7 = tpu.memref_slice %arg3[%c0_i32_1, %c0_i32_2, %c0_i32_3, %c0_i32_4] : memref<1x22x24x128xf32, #tpu.memory_space<vmem>> -> memref<1x22x24x128xf32, #tpu.memory_space<vmem>>
    %8 = tpu.memref_squeeze %7 : memref<1x22x24x128xf32, #tpu.memory_space<vmem>> -> memref<22x24x128xf32, #tpu.memory_space<vmem>>
    %9 = arith.index_cast %6 : i32 to index
    %c0_5 = arith.constant 0 : index
    %c0_6 = arith.constant 0 : index
    %10 = vector.load %8[%9, %c0_5, %c0_6] : memref<22x24x128xf32, #tpu.memory_space<vmem>>, vector<8x24x128xf32>
    %11 = vector.extract_strided_slice %10 {offsets = [0, 0, 0], sizes = [8, 16, 128], strides = [1, 1, 1]} : vector<8x24x128xf32> to vector<8x16x128xf32>
    %c0_7 = arith.constant 0 : index
    %c0_8 = arith.constant 0 : index
    %c0_9 = arith.constant 0 : index
    %12 = vector.load %arg4[%c0_7, %c0_8, %c0_9] : memref<7x7x128xf32, #tpu.memory_space<vmem>>, vector<1x1x128xf32>
    %13 = vector.shape_cast %12 : vector<1x1x128xf32> to vector<128xf32>
    %14 = vector.shape_cast %13 : vector<128xf32> to vector<1x1x128xf32>
    %15 = vector.broadcast %14 : vector<1x1x128xf32> to vector<8x16x128xf32>
    %16 = arith.mulf %11, %15 : vector<8x16x128xf32>
    %17 = arith.addf %5, %16 : vector<8x16x128xf32>
    %18 = vector.extract_strided_slice %10 {offsets = [0, 1, 0], sizes = [8, 16, 128], strides = [1, 1, 1]} : vector<8x24x128xf32> to vector<8x16x128xf32>
    %c0_10 = arith.constant 0 : index
    %c1 = arith.constant 1 : index
    %c0_11 = arith.constant 0 : index
    %19 = vector.load %arg4[%c0_10, %c1, %c0_11] : memref<7x7x128xf32, #tpu.memory_space<vmem>>, vector<1x1x128xf32>
    %20 = vector.shape_cast %19 : vector<1x1x128xf32> to vector<128xf32>
    %21 = vector.shape_cast %20 : vector<128xf32> to vector<1x1x128xf32>
    %22 = vector.broadcast %21 : vector<1x1x128xf32> to vector<8x16x128xf32>
    %23 = arith.mulf %18, %22 : vector<8x16x128xf32>
    %24 = arith.addf %17, %23 : vector<8x16x128xf32>
    %25 = vector.extract_strided_slice %10 {offsets = [0, 2, 0], sizes = [8, 16, 128], strides = [1, 1, 1]} : vector<8x24x128xf32> to vector<8x16x128xf32>
    %c0_12 = arith.constant 0 : index
    %c2 = arith.constant 2 : index
    %c0_13 = arith.constant 0 : index
    %26 = vector.load %arg4[%c0_12, %c2, %c0_13] : memref<7x7x128xf32, #tpu.memory_space<vmem>>, vector<1x1x128xf32>
    %27 = vector.shape_cast %26 : vector<1x1x128xf32> to vector<128xf32>
    %28 = vector.shape_cast %27 : vector<128xf32> to vector<1x1x128xf32>
    %29 = vector.broadcast %28 : vector<1x1x128xf32> to vector<8x16x128xf32>
    %30 = arith.mulf %25, %29 : vector<8x16x128xf32>
    %31 = arith.addf %24, %30 : vector<8x16x128xf32>
    %32 = vector.extract_strided_slice %10 {offsets = [0, 3, 0], sizes = [8, 16, 128], strides = [1, 1, 1]} : vector<8x24x128xf32> to vector<8x16x128xf32>
    %c0_14 = arith.constant 0 : index
    %c3 = arith.constant 3 : index
    %c0_15 = arith.constant 0 : index
    %33 = vector.load %arg4[%c0_14, %c3, %c0_15] : memref<7x7x128xf32, #tpu.memory_space<vmem>>, vector<1x1x128xf32>
    %34 = vector.shape_cast %33 : vector<1x1x128xf32> to vector<128xf32>
    %35 = vector.shape_cast %34 : vector<128xf32> to vector<1x1x128xf32>
    %36 = vector.broadcast %35 : vector<1x1x128xf32> to vector<8x16x128xf32>
    %37 = arith.mulf %32, %36 : vector<8x16x128xf32>
    %38 = arith.addf %31, %37 : vector<8x16x128xf32>
    %39 = vector.extract_strided_slice %10 {offsets = [0, 4, 0], sizes = [8, 16, 128], strides = [1, 1, 1]} : vector<8x24x128xf32> to vector<8x16x128xf32>
    %c0_16 = arith.constant 0 : index
    %c4 = arith.constant 4 : index
    %c0_17 = arith.constant 0 : index
    %40 = vector.load %arg4[%c0_16, %c4, %c0_17] : memref<7x7x128xf32, #tpu.memory_space<vmem>>, vector<1x1x128xf32>
    %41 = vector.shape_cast %40 : vector<1x1x128xf32> to vector<128xf32>
    %42 = vector.shape_cast %41 : vector<128xf32> to vector<1x1x128xf32>
    %43 = vector.broadcast %42 : vector<1x1x128xf32> to vector<8x16x128xf32>
    %44 = arith.mulf %39, %43 : vector<8x16x128xf32>
    %45 = arith.addf %38, %44 : vector<8x16x128xf32>
    %46 = vector.extract_strided_slice %10 {offsets = [0, 5, 0], sizes = [8, 16, 128], strides = [1, 1, 1]} : vector<8x24x128xf32> to vector<8x16x128xf32>
    %c0_18 = arith.constant 0 : index
    %c5 = arith.constant 5 : index
    %c0_19 = arith.constant 0 : index
    %47 = vector.load %arg4[%c0_18, %c5, %c0_19] : memref<7x7x128xf32, #tpu.memory_space<vmem>>, vector<1x1x128xf32>
    %48 = vector.shape_cast %47 : vector<1x1x128xf32> to vector<128xf32>
    %49 = vector.shape_cast %48 : vector<128xf32> to vector<1x1x128xf32>
    %50 = vector.broadcast %49 : vector<1x1x128xf32> to vector<8x16x128xf32>
    %51 = arith.mulf %46, %50 : vector<8x16x128xf32>
    %52 = arith.addf %45, %51 : vector<8x16x128xf32>
    %53 = vector.extract_strided_slice %10 {offsets = [0, 6, 0], sizes = [8, 16, 128], strides = [1, 1, 1]} : vector<8x24x128xf32> to vector<8x16x128xf32>
    %c0_20 = arith.constant 0 : index
    %c6 = arith.constant 6 : index
    %c0_21 = arith.constant 0 : index
    %54 = vector.load %arg4[%c0_20, %c6, %c0_21] : memref<7x7x128xf32, #tpu.memory_space<vmem>>, vector<1x1x128xf32>
    %55 = vector.shape_cast %54 : vector<1x1x128xf32> to vector<128xf32>
    %56 = vector.shape_cast %55 : vector<128xf32> to vector<1x1x128xf32>
    %57 = vector.broadcast %56 : vector<1x1x128xf32> to vector<8x16x128xf32>
    %58 = arith.mulf %53, %57 : vector<8x16x128xf32>
    %59 = arith.addf %52, %58 : vector<8x16x128xf32>
    %c1_i32 = arith.constant 1 : i32
    %60 = arith.addi %1, %c1_i32 : i32
    %c0_i32_22 = arith.constant 0 : i32
    %c0_i32_23 = arith.constant 0 : i32
    %c0_i32_24 = arith.constant 0 : i32
    %c0_i32_25 = arith.constant 0 : i32
    %61 = tpu.memref_slice %arg3[%c0_i32_22, %c0_i32_23, %c0_i32_24, %c0_i32_25] : memref<1x22x24x128xf32, #tpu.memory_space<vmem>> -> memref<1x22x24x128xf32, #tpu.memory_space<vmem>>
    %62 = tpu.memref_squeeze %61 : memref<1x22x24x128xf32, #tpu.memory_space<vmem>> -> memref<22x24x128xf32, #tpu.memory_space<vmem>>
    %63 = arith.index_cast %60 : i32 to index
    %c0_26 = arith.constant 0 : index
    %c0_27 = arith.constant 0 : index
    %64 = vector.load %62[%63, %c0_26, %c0_27] : memref<22x24x128xf32, #tpu.memory_space<vmem>>, vector<8x24x128xf32>
    %65 = vector.extract_strided_slice %64 {offsets = [0, 0, 0], sizes = [8, 16, 128], strides = [1, 1, 1]} : vector<8x24x128xf32> to vector<8x16x128xf32>
    %c1_28 = arith.constant 1 : index
    %c0_29 = arith.constant 0 : index
    %c0_30 = arith.constant 0 : index
    %66 = vector.load %arg4[%c1_28, %c0_29, %c0_30] : memref<7x7x128xf32, #tpu.memory_space<vmem>>, vector<1x1x128xf32>
    %67 = vector.shape_cast %66 : vector<1x1x128xf32> to vector<128xf32>
    %68 = vector.shape_cast %67 : vector<128xf32> to vector<1x1x128xf32>
    %69 = vector.broadcast %68 : vector<1x1x128xf32> to vector<8x16x128xf32>
    %70 = arith.mulf %65, %69 : vector<8x16x128xf32>
    %71 = arith.addf %59, %70 : vector<8x16x128xf32>
    %72 = vector.extract_strided_slice %64 {offsets = [0, 1, 0], sizes = [8, 16, 128], strides = [1, 1, 1]} : vector<8x24x128xf32> to vector<8x16x128xf32>
    %c1_31 = arith.constant 1 : index
    %c1_32 = arith.constant 1 : index
    %c0_33 = arith.constant 0 : index
    %73 = vector.load %arg4[%c1_31, %c1_32, %c0_33] : memref<7x7x128xf32, #tpu.memory_space<vmem>>, vector<1x1x128xf32>
    %74 = vector.shape_cast %73 : vector<1x1x128xf32> to vector<128xf32>
    %75 = vector.shape_cast %74 : vector<128xf32> to vector<1x1x128xf32>
    %76 = vector.broadcast %75 : vector<1x1x128xf32> to vector<8x16x128xf32>
    %77 = arith.mulf %72, %76 : vector<8x16x128xf32>
    %78 = arith.addf %71, %77 : vector<8x16x128xf32>
    %79 = vector.extract_strided_slice %64 {offsets = [0, 2, 0], sizes = [8, 16, 128], strides = [1, 1, 1]} : vector<8x24x128xf32> to vector<8x16x128xf32>
    %c1_34 = arith.constant 1 : index
    %c2_35 = arith.constant 2 : index
    %c0_36 = arith.constant 0 : index
    %80 = vector.load %arg4[%c1_34, %c2_35, %c0_36] : memref<7x7x128xf32, #tpu.memory_space<vmem>>, vector<1x1x128xf32>
    %81 = vector.shape_cast %80 : vector<1x1x128xf32> to vector<128xf32>
    %82 = vector.shape_cast %81 : vector<128xf32> to vector<1x1x128xf32>
    %83 = vector.broadcast %82 : vector<1x1x128xf32> to vector<8x16x128xf32>
    %84 = arith.mulf %79, %83 : vector<8x16x128xf32>
    %85 = arith.addf %78, %84 : vector<8x16x128xf32>
    %86 = vector.extract_strided_slice %64 {offsets = [0, 3, 0], sizes = [8, 16, 128], strides = [1, 1, 1]} : vector<8x24x128xf32> to vector<8x16x128xf32>
    %c1_37 = arith.constant 1 : index
    %c3_38 = arith.constant 3 : index
    %c0_39 = arith.constant 0 : index
    %87 = vector.load %arg4[%c1_37, %c3_38, %c0_39] : memref<7x7x128xf32, #tpu.memory_space<vmem>>, vector<1x1x128xf32>
    %88 = vector.shape_cast %87 : vector<1x1x128xf32> to vector<128xf32>
    %89 = vector.shape_cast %88 : vector<128xf32> to vector<1x1x128xf32>
    %90 = vector.broadcast %89 : vector<1x1x128xf32> to vector<8x16x128xf32>
    %91 = arith.mulf %86, %90 : vector<8x16x128xf32>
    %92 = arith.addf %85, %91 : vector<8x16x128xf32>
    %93 = vector.extract_strided_slice %64 {offsets = [0, 4, 0], sizes = [8, 16, 128], strides = [1, 1, 1]} : vector<8x24x128xf32> to vector<8x16x128xf32>
    %c1_40 = arith.constant 1 : index
    %c4_41 = arith.constant 4 : index
    %c0_42 = arith.constant 0 : index
    %94 = vector.load %arg4[%c1_40, %c4_41, %c0_42] : memref<7x7x128xf32, #tpu.memory_space<vmem>>, vector<1x1x128xf32>
    %95 = vector.shape_cast %94 : vector<1x1x128xf32> to vector<128xf32>
    %96 = vector.shape_cast %95 : vector<128xf32> to vector<1x1x128xf32>
    %97 = vector.broadcast %96 : vector<1x1x128xf32> to vector<8x16x128xf32>
    %98 = arith.mulf %93, %97 : vector<8x16x128xf32>
    %99 = arith.addf %92, %98 : vector<8x16x128xf32>
    %100 = vector.extract_strided_slice %64 {offsets = [0, 5, 0], sizes = [8, 16, 128], strides = [1, 1, 1]} : vector<8x24x128xf32> to vector<8x16x128xf32>
    %c1_43 = arith.constant 1 : index
    %c5_44 = arith.constant 5 : index
    %c0_45 = arith.constant 0 : index
    %101 = vector.load %arg4[%c1_43, %c5_44, %c0_45] : memref<7x7x128xf32, #tpu.memory_space<vmem>>, vector<1x1x128xf32>
    %102 = vector.shape_cast %101 : vector<1x1x128xf32> to vector<128xf32>
    %103 = vector.shape_cast %102 : vector<128xf32> to vector<1x1x128xf32>
    %104 = vector.broadcast %103 : vector<1x1x128xf32> to vector<8x16x128xf32>
    %105 = arith.mulf %100, %104 : vector<8x16x128xf32>
    %106 = arith.addf %99, %105 : vector<8x16x128xf32>
    %107 = vector.extract_strided_slice %64 {offsets = [0, 6, 0], sizes = [8, 16, 128], strides = [1, 1, 1]} : vector<8x24x128xf32> to vector<8x16x128xf32>
    %c1_46 = arith.constant 1 : index
    %c6_47 = arith.constant 6 : index
    %c0_48 = arith.constant 0 : index
    %108 = vector.load %arg4[%c1_46, %c6_47, %c0_48] : memref<7x7x128xf32, #tpu.memory_space<vmem>>, vector<1x1x128xf32>
    %109 = vector.shape_cast %108 : vector<1x1x128xf32> to vector<128xf32>
    %110 = vector.shape_cast %109 : vector<128xf32> to vector<1x1x128xf32>
    %111 = vector.broadcast %110 : vector<1x1x128xf32> to vector<8x16x128xf32>
    %112 = arith.mulf %107, %111 : vector<8x16x128xf32>
    %113 = arith.addf %106, %112 : vector<8x16x128xf32>
    %c2_i32 = arith.constant 2 : i32
    %114 = arith.addi %1, %c2_i32 : i32
    %c0_i32_49 = arith.constant 0 : i32
    %c0_i32_50 = arith.constant 0 : i32
    %c0_i32_51 = arith.constant 0 : i32
    %c0_i32_52 = arith.constant 0 : i32
    %115 = tpu.memref_slice %arg3[%c0_i32_49, %c0_i32_50, %c0_i32_51, %c0_i32_52] : memref<1x22x24x128xf32, #tpu.memory_space<vmem>> -> memref<1x22x24x128xf32, #tpu.memory_space<vmem>>
    %116 = tpu.memref_squeeze %115 : memref<1x22x24x128xf32, #tpu.memory_space<vmem>> -> memref<22x24x128xf32, #tpu.memory_space<vmem>>
    %117 = arith.index_cast %114 : i32 to index
    %c0_53 = arith.constant 0 : index
    %c0_54 = arith.constant 0 : index
    %118 = vector.load %116[%117, %c0_53, %c0_54] : memref<22x24x128xf32, #tpu.memory_space<vmem>>, vector<8x24x128xf32>
    %119 = vector.extract_strided_slice %118 {offsets = [0, 0, 0], sizes = [8, 16, 128], strides = [1, 1, 1]} : vector<8x24x128xf32> to vector<8x16x128xf32>
    %c2_55 = arith.constant 2 : index
    %c0_56 = arith.constant 0 : index
    %c0_57 = arith.constant 0 : index
    %120 = vector.load %arg4[%c2_55, %c0_56, %c0_57] : memref<7x7x128xf32, #tpu.memory_space<vmem>>, vector<1x1x128xf32>
    %121 = vector.shape_cast %120 : vector<1x1x128xf32> to vector<128xf32>
    %122 = vector.shape_cast %121 : vector<128xf32> to vector<1x1x128xf32>
    %123 = vector.broadcast %122 : vector<1x1x128xf32> to vector<8x16x128xf32>
    %124 = arith.mulf %119, %123 : vector<8x16x128xf32>
    %125 = arith.addf %113, %124 : vector<8x16x128xf32>
    %126 = vector.extract_strided_slice %118 {offsets = [0, 1, 0], sizes = [8, 16, 128], strides = [1, 1, 1]} : vector<8x24x128xf32> to vector<8x16x128xf32>
    %c2_58 = arith.constant 2 : index
    %c1_59 = arith.constant 1 : index
    %c0_60 = arith.constant 0 : index
    %127 = vector.load %arg4[%c2_58, %c1_59, %c0_60] : memref<7x7x128xf32, #tpu.memory_space<vmem>>, vector<1x1x128xf32>
    %128 = vector.shape_cast %127 : vector<1x1x128xf32> to vector<128xf32>
    %129 = vector.shape_cast %128 : vector<128xf32> to vector<1x1x128xf32>
    %130 = vector.broadcast %129 : vector<1x1x128xf32> to vector<8x16x128xf32>
    %131 = arith.mulf %126, %130 : vector<8x16x128xf32>
    %132 = arith.addf %125, %131 : vector<8x16x128xf32>
    %133 = vector.extract_strided_slice %118 {offsets = [0, 2, 0], sizes = [8, 16, 128], strides = [1, 1, 1]} : vector<8x24x128xf32> to vector<8x16x128xf32>
    %c2_61 = arith.constant 2 : index
    %c2_62 = arith.constant 2 : index
    %c0_63 = arith.constant 0 : index
    %134 = vector.load %arg4[%c2_61, %c2_62, %c0_63] : memref<7x7x128xf32, #tpu.memory_space<vmem>>, vector<1x1x128xf32>
    %135 = vector.shape_cast %134 : vector<1x1x128xf32> to vector<128xf32>
    %136 = vector.shape_cast %135 : vector<128xf32> to vector<1x1x128xf32>
    %137 = vector.broadcast %136 : vector<1x1x128xf32> to vector<8x16x128xf32>
    %138 = arith.mulf %133, %137 : vector<8x16x128xf32>
    %139 = arith.addf %132, %138 : vector<8x16x128xf32>
    %140 = vector.extract_strided_slice %118 {offsets = [0, 3, 0], sizes = [8, 16, 128], strides = [1, 1, 1]} : vector<8x24x128xf32> to vector<8x16x128xf32>
    %c2_64 = arith.constant 2 : index
    %c3_65 = arith.constant 3 : index
    %c0_66 = arith.constant 0 : index
    %141 = vector.load %arg4[%c2_64, %c3_65, %c0_66] : memref<7x7x128xf32, #tpu.memory_space<vmem>>, vector<1x1x128xf32>
    %142 = vector.shape_cast %141 : vector<1x1x128xf32> to vector<128xf32>
    %143 = vector.shape_cast %142 : vector<128xf32> to vector<1x1x128xf32>
    %144 = vector.broadcast %143 : vector<1x1x128xf32> to vector<8x16x128xf32>
    %145 = arith.mulf %140, %144 : vector<8x16x128xf32>
    %146 = arith.addf %139, %145 : vector<8x16x128xf32>
    %147 = vector.extract_strided_slice %118 {offsets = [0, 4, 0], sizes = [8, 16, 128], strides = [1, 1, 1]} : vector<8x24x128xf32> to vector<8x16x128xf32>
    %c2_67 = arith.constant 2 : index
    %c4_68 = arith.constant 4 : index
    %c0_69 = arith.constant 0 : index
    %148 = vector.load %arg4[%c2_67, %c4_68, %c0_69] : memref<7x7x128xf32, #tpu.memory_space<vmem>>, vector<1x1x128xf32>
    %149 = vector.shape_cast %148 : vector<1x1x128xf32> to vector<128xf32>
    %150 = vector.shape_cast %149 : vector<128xf32> to vector<1x1x128xf32>
    %151 = vector.broadcast %150 : vector<1x1x128xf32> to vector<8x16x128xf32>
    %152 = arith.mulf %147, %151 : vector<8x16x128xf32>
    %153 = arith.addf %146, %152 : vector<8x16x128xf32>
    %154 = vector.extract_strided_slice %118 {offsets = [0, 5, 0], sizes = [8, 16, 128], strides = [1, 1, 1]} : vector<8x24x128xf32> to vector<8x16x128xf32>
    %c2_70 = arith.constant 2 : index
    %c5_71 = arith.constant 5 : index
    %c0_72 = arith.constant 0 : index
    %155 = vector.load %arg4[%c2_70, %c5_71, %c0_72] : memref<7x7x128xf32, #tpu.memory_space<vmem>>, vector<1x1x128xf32>
    %156 = vector.shape_cast %155 : vector<1x1x128xf32> to vector<128xf32>
    %157 = vector.shape_cast %156 : vector<128xf32> to vector<1x1x128xf32>
    %158 = vector.broadcast %157 : vector<1x1x128xf32> to vector<8x16x128xf32>
    %159 = arith.mulf %154, %158 : vector<8x16x128xf32>
    %160 = arith.addf %153, %159 : vector<8x16x128xf32>
    %161 = vector.extract_strided_slice %118 {offsets = [0, 6, 0], sizes = [8, 16, 128], strides = [1, 1, 1]} : vector<8x24x128xf32> to vector<8x16x128xf32>
    %c2_73 = arith.constant 2 : index
    %c6_74 = arith.constant 6 : index
    %c0_75 = arith.constant 0 : index
    %162 = vector.load %arg4[%c2_73, %c6_74, %c0_75] : memref<7x7x128xf32, #tpu.memory_space<vmem>>, vector<1x1x128xf32>
    %163 = vector.shape_cast %162 : vector<1x1x128xf32> to vector<128xf32>
    %164 = vector.shape_cast %163 : vector<128xf32> to vector<1x1x128xf32>
    %165 = vector.broadcast %164 : vector<1x1x128xf32> to vector<8x16x128xf32>
    %166 = arith.mulf %161, %165 : vector<8x16x128xf32>
    %167 = arith.addf %160, %166 : vector<8x16x128xf32>
    %c3_i32 = arith.constant 3 : i32
    %168 = arith.addi %1, %c3_i32 : i32
    %c0_i32_76 = arith.constant 0 : i32
    %c0_i32_77 = arith.constant 0 : i32
    %c0_i32_78 = arith.constant 0 : i32
    %c0_i32_79 = arith.constant 0 : i32
    %169 = tpu.memref_slice %arg3[%c0_i32_76, %c0_i32_77, %c0_i32_78, %c0_i32_79] : memref<1x22x24x128xf32, #tpu.memory_space<vmem>> -> memref<1x22x24x128xf32, #tpu.memory_space<vmem>>
    %170 = tpu.memref_squeeze %169 : memref<1x22x24x128xf32, #tpu.memory_space<vmem>> -> memref<22x24x128xf32, #tpu.memory_space<vmem>>
    %171 = arith.index_cast %168 : i32 to index
    %c0_80 = arith.constant 0 : index
    %c0_81 = arith.constant 0 : index
    %172 = vector.load %170[%171, %c0_80, %c0_81] : memref<22x24x128xf32, #tpu.memory_space<vmem>>, vector<8x24x128xf32>
    %173 = vector.extract_strided_slice %172 {offsets = [0, 0, 0], sizes = [8, 16, 128], strides = [1, 1, 1]} : vector<8x24x128xf32> to vector<8x16x128xf32>
    %c3_82 = arith.constant 3 : index
    %c0_83 = arith.constant 0 : index
    %c0_84 = arith.constant 0 : index
    %174 = vector.load %arg4[%c3_82, %c0_83, %c0_84] : memref<7x7x128xf32, #tpu.memory_space<vmem>>, vector<1x1x128xf32>
    %175 = vector.shape_cast %174 : vector<1x1x128xf32> to vector<128xf32>
    %176 = vector.shape_cast %175 : vector<128xf32> to vector<1x1x128xf32>
    %177 = vector.broadcast %176 : vector<1x1x128xf32> to vector<8x16x128xf32>
    %178 = arith.mulf %173, %177 : vector<8x16x128xf32>
    %179 = arith.addf %167, %178 : vector<8x16x128xf32>
    %180 = vector.extract_strided_slice %172 {offsets = [0, 1, 0], sizes = [8, 16, 128], strides = [1, 1, 1]} : vector<8x24x128xf32> to vector<8x16x128xf32>
    %c3_85 = arith.constant 3 : index
    %c1_86 = arith.constant 1 : index
    %c0_87 = arith.constant 0 : index
    %181 = vector.load %arg4[%c3_85, %c1_86, %c0_87] : memref<7x7x128xf32, #tpu.memory_space<vmem>>, vector<1x1x128xf32>
    %182 = vector.shape_cast %181 : vector<1x1x128xf32> to vector<128xf32>
    %183 = vector.shape_cast %182 : vector<128xf32> to vector<1x1x128xf32>
    %184 = vector.broadcast %183 : vector<1x1x128xf32> to vector<8x16x128xf32>
    %185 = arith.mulf %180, %184 : vector<8x16x128xf32>
    %186 = arith.addf %179, %185 : vector<8x16x128xf32>
    %187 = vector.extract_strided_slice %172 {offsets = [0, 2, 0], sizes = [8, 16, 128], strides = [1, 1, 1]} : vector<8x24x128xf32> to vector<8x16x128xf32>
    %c3_88 = arith.constant 3 : index
    %c2_89 = arith.constant 2 : index
    %c0_90 = arith.constant 0 : index
    %188 = vector.load %arg4[%c3_88, %c2_89, %c0_90] : memref<7x7x128xf32, #tpu.memory_space<vmem>>, vector<1x1x128xf32>
    %189 = vector.shape_cast %188 : vector<1x1x128xf32> to vector<128xf32>
    %190 = vector.shape_cast %189 : vector<128xf32> to vector<1x1x128xf32>
    %191 = vector.broadcast %190 : vector<1x1x128xf32> to vector<8x16x128xf32>
    %192 = arith.mulf %187, %191 : vector<8x16x128xf32>
    %193 = arith.addf %186, %192 : vector<8x16x128xf32>
    %194 = vector.extract_strided_slice %172 {offsets = [0, 3, 0], sizes = [8, 16, 128], strides = [1, 1, 1]} : vector<8x24x128xf32> to vector<8x16x128xf32>
    %c3_91 = arith.constant 3 : index
    %c3_92 = arith.constant 3 : index
    %c0_93 = arith.constant 0 : index
    %195 = vector.load %arg4[%c3_91, %c3_92, %c0_93] : memref<7x7x128xf32, #tpu.memory_space<vmem>>, vector<1x1x128xf32>
    %196 = vector.shape_cast %195 : vector<1x1x128xf32> to vector<128xf32>
    %197 = vector.shape_cast %196 : vector<128xf32> to vector<1x1x128xf32>
    %198 = vector.broadcast %197 : vector<1x1x128xf32> to vector<8x16x128xf32>
    %199 = arith.mulf %194, %198 : vector<8x16x128xf32>
    %200 = arith.addf %193, %199 : vector<8x16x128xf32>
    %201 = vector.extract_strided_slice %172 {offsets = [0, 4, 0], sizes = [8, 16, 128], strides = [1, 1, 1]} : vector<8x24x128xf32> to vector<8x16x128xf32>
    %c3_94 = arith.constant 3 : index
    %c4_95 = arith.constant 4 : index
    %c0_96 = arith.constant 0 : index
    %202 = vector.load %arg4[%c3_94, %c4_95, %c0_96] : memref<7x7x128xf32, #tpu.memory_space<vmem>>, vector<1x1x128xf32>
    %203 = vector.shape_cast %202 : vector<1x1x128xf32> to vector<128xf32>
    %204 = vector.shape_cast %203 : vector<128xf32> to vector<1x1x128xf32>
    %205 = vector.broadcast %204 : vector<1x1x128xf32> to vector<8x16x128xf32>
    %206 = arith.mulf %201, %205 : vector<8x16x128xf32>
    %207 = arith.addf %200, %206 : vector<8x16x128xf32>
    %208 = vector.extract_strided_slice %172 {offsets = [0, 5, 0], sizes = [8, 16, 128], strides = [1, 1, 1]} : vector<8x24x128xf32> to vector<8x16x128xf32>
    %c3_97 = arith.constant 3 : index
    %c5_98 = arith.constant 5 : index
    %c0_99 = arith.constant 0 : index
    %209 = vector.load %arg4[%c3_97, %c5_98, %c0_99] : memref<7x7x128xf32, #tpu.memory_space<vmem>>, vector<1x1x128xf32>
    %210 = vector.shape_cast %209 : vector<1x1x128xf32> to vector<128xf32>
    %211 = vector.shape_cast %210 : vector<128xf32> to vector<1x1x128xf32>
    %212 = vector.broadcast %211 : vector<1x1x128xf32> to vector<8x16x128xf32>
    %213 = arith.mulf %208, %212 : vector<8x16x128xf32>
    %214 = arith.addf %207, %213 : vector<8x16x128xf32>
    %215 = vector.extract_strided_slice %172 {offsets = [0, 6, 0], sizes = [8, 16, 128], strides = [1, 1, 1]} : vector<8x24x128xf32> to vector<8x16x128xf32>
    %c3_100 = arith.constant 3 : index
    %c6_101 = arith.constant 6 : index
    %c0_102 = arith.constant 0 : index
    %216 = vector.load %arg4[%c3_100, %c6_101, %c0_102] : memref<7x7x128xf32, #tpu.memory_space<vmem>>, vector<1x1x128xf32>
    %217 = vector.shape_cast %216 : vector<1x1x128xf32> to vector<128xf32>
    %218 = vector.shape_cast %217 : vector<128xf32> to vector<1x1x128xf32>
    %219 = vector.broadcast %218 : vector<1x1x128xf32> to vector<8x16x128xf32>
    %220 = arith.mulf %215, %219 : vector<8x16x128xf32>
    %221 = arith.addf %214, %220 : vector<8x16x128xf32>
    %c4_i32 = arith.constant 4 : i32
    %222 = arith.addi %1, %c4_i32 : i32
    %c0_i32_103 = arith.constant 0 : i32
    %c0_i32_104 = arith.constant 0 : i32
    %c0_i32_105 = arith.constant 0 : i32
    %c0_i32_106 = arith.constant 0 : i32
    %223 = tpu.memref_slice %arg3[%c0_i32_103, %c0_i32_104, %c0_i32_105, %c0_i32_106] : memref<1x22x24x128xf32, #tpu.memory_space<vmem>> -> memref<1x22x24x128xf32, #tpu.memory_space<vmem>>
    %224 = tpu.memref_squeeze %223 : memref<1x22x24x128xf32, #tpu.memory_space<vmem>> -> memref<22x24x128xf32, #tpu.memory_space<vmem>>
    %225 = arith.index_cast %222 : i32 to index
    %c0_107 = arith.constant 0 : index
    %c0_108 = arith.constant 0 : index
    %226 = vector.load %224[%225, %c0_107, %c0_108] : memref<22x24x128xf32, #tpu.memory_space<vmem>>, vector<8x24x128xf32>
    %227 = vector.extract_strided_slice %226 {offsets = [0, 0, 0], sizes = [8, 16, 128], strides = [1, 1, 1]} : vector<8x24x128xf32> to vector<8x16x128xf32>
    %c4_109 = arith.constant 4 : index
    %c0_110 = arith.constant 0 : index
    %c0_111 = arith.constant 0 : index
    %228 = vector.load %arg4[%c4_109, %c0_110, %c0_111] : memref<7x7x128xf32, #tpu.memory_space<vmem>>, vector<1x1x128xf32>
    %229 = vector.shape_cast %228 : vector<1x1x128xf32> to vector<128xf32>
    %230 = vector.shape_cast %229 : vector<128xf32> to vector<1x1x128xf32>
    %231 = vector.broadcast %230 : vector<1x1x128xf32> to vector<8x16x128xf32>
    %232 = arith.mulf %227, %231 : vector<8x16x128xf32>
    %233 = arith.addf %221, %232 : vector<8x16x128xf32>
    %234 = vector.extract_strided_slice %226 {offsets = [0, 1, 0], sizes = [8, 16, 128], strides = [1, 1, 1]} : vector<8x24x128xf32> to vector<8x16x128xf32>
    %c4_112 = arith.constant 4 : index
    %c1_113 = arith.constant 1 : index
    %c0_114 = arith.constant 0 : index
    %235 = vector.load %arg4[%c4_112, %c1_113, %c0_114] : memref<7x7x128xf32, #tpu.memory_space<vmem>>, vector<1x1x128xf32>
    %236 = vector.shape_cast %235 : vector<1x1x128xf32> to vector<128xf32>
    %237 = vector.shape_cast %236 : vector<128xf32> to vector<1x1x128xf32>
    %238 = vector.broadcast %237 : vector<1x1x128xf32> to vector<8x16x128xf32>
    %239 = arith.mulf %234, %238 : vector<8x16x128xf32>
    %240 = arith.addf %233, %239 : vector<8x16x128xf32>
    %241 = vector.extract_strided_slice %226 {offsets = [0, 2, 0], sizes = [8, 16, 128], strides = [1, 1, 1]} : vector<8x24x128xf32> to vector<8x16x128xf32>
    %c4_115 = arith.constant 4 : index
    %c2_116 = arith.constant 2 : index
    %c0_117 = arith.constant 0 : index
    %242 = vector.load %arg4[%c4_115, %c2_116, %c0_117] : memref<7x7x128xf32, #tpu.memory_space<vmem>>, vector<1x1x128xf32>
    %243 = vector.shape_cast %242 : vector<1x1x128xf32> to vector<128xf32>
    %244 = vector.shape_cast %243 : vector<128xf32> to vector<1x1x128xf32>
    %245 = vector.broadcast %244 : vector<1x1x128xf32> to vector<8x16x128xf32>
    %246 = arith.mulf %241, %245 : vector<8x16x128xf32>
    %247 = arith.addf %240, %246 : vector<8x16x128xf32>
    %248 = vector.extract_strided_slice %226 {offsets = [0, 3, 0], sizes = [8, 16, 128], strides = [1, 1, 1]} : vector<8x24x128xf32> to vector<8x16x128xf32>
    %c4_118 = arith.constant 4 : index
    %c3_119 = arith.constant 3 : index
    %c0_120 = arith.constant 0 : index
    %249 = vector.load %arg4[%c4_118, %c3_119, %c0_120] : memref<7x7x128xf32, #tpu.memory_space<vmem>>, vector<1x1x128xf32>
    %250 = vector.shape_cast %249 : vector<1x1x128xf32> to vector<128xf32>
    %251 = vector.shape_cast %250 : vector<128xf32> to vector<1x1x128xf32>
    %252 = vector.broadcast %251 : vector<1x1x128xf32> to vector<8x16x128xf32>
    %253 = arith.mulf %248, %252 : vector<8x16x128xf32>
    %254 = arith.addf %247, %253 : vector<8x16x128xf32>
    %255 = vector.extract_strided_slice %226 {offsets = [0, 4, 0], sizes = [8, 16, 128], strides = [1, 1, 1]} : vector<8x24x128xf32> to vector<8x16x128xf32>
    %c4_121 = arith.constant 4 : index
    %c4_122 = arith.constant 4 : index
    %c0_123 = arith.constant 0 : index
    %256 = vector.load %arg4[%c4_121, %c4_122, %c0_123] : memref<7x7x128xf32, #tpu.memory_space<vmem>>, vector<1x1x128xf32>
    %257 = vector.shape_cast %256 : vector<1x1x128xf32> to vector<128xf32>
    %258 = vector.shape_cast %257 : vector<128xf32> to vector<1x1x128xf32>
    %259 = vector.broadcast %258 : vector<1x1x128xf32> to vector<8x16x128xf32>
    %260 = arith.mulf %255, %259 : vector<8x16x128xf32>
    %261 = arith.addf %254, %260 : vector<8x16x128xf32>
    %262 = vector.extract_strided_slice %226 {offsets = [0, 5, 0], sizes = [8, 16, 128], strides = [1, 1, 1]} : vector<8x24x128xf32> to vector<8x16x128xf32>
    %c4_124 = arith.constant 4 : index
    %c5_125 = arith.constant 5 : index
    %c0_126 = arith.constant 0 : index
    %263 = vector.load %arg4[%c4_124, %c5_125, %c0_126] : memref<7x7x128xf32, #tpu.memory_space<vmem>>, vector<1x1x128xf32>
    %264 = vector.shape_cast %263 : vector<1x1x128xf32> to vector<128xf32>
    %265 = vector.shape_cast %264 : vector<128xf32> to vector<1x1x128xf32>
    %266 = vector.broadcast %265 : vector<1x1x128xf32> to vector<8x16x128xf32>
    %267 = arith.mulf %262, %266 : vector<8x16x128xf32>
    %268 = arith.addf %261, %267 : vector<8x16x128xf32>
    %269 = vector.extract_strided_slice %226 {offsets = [0, 6, 0], sizes = [8, 16, 128], strides = [1, 1, 1]} : vector<8x24x128xf32> to vector<8x16x128xf32>
    %c4_127 = arith.constant 4 : index
    %c6_128 = arith.constant 6 : index
    %c0_129 = arith.constant 0 : index
    %270 = vector.load %arg4[%c4_127, %c6_128, %c0_129] : memref<7x7x128xf32, #tpu.memory_space<vmem>>, vector<1x1x128xf32>
    %271 = vector.shape_cast %270 : vector<1x1x128xf32> to vector<128xf32>
    %272 = vector.shape_cast %271 : vector<128xf32> to vector<1x1x128xf32>
    %273 = vector.broadcast %272 : vector<1x1x128xf32> to vector<8x16x128xf32>
    %274 = arith.mulf %269, %273 : vector<8x16x128xf32>
    %275 = arith.addf %268, %274 : vector<8x16x128xf32>
    %c5_i32 = arith.constant 5 : i32
    %276 = arith.addi %1, %c5_i32 : i32
    %c0_i32_130 = arith.constant 0 : i32
    %c0_i32_131 = arith.constant 0 : i32
    %c0_i32_132 = arith.constant 0 : i32
    %c0_i32_133 = arith.constant 0 : i32
    %277 = tpu.memref_slice %arg3[%c0_i32_130, %c0_i32_131, %c0_i32_132, %c0_i32_133] : memref<1x22x24x128xf32, #tpu.memory_space<vmem>> -> memref<1x22x24x128xf32, #tpu.memory_space<vmem>>
    %278 = tpu.memref_squeeze %277 : memref<1x22x24x128xf32, #tpu.memory_space<vmem>> -> memref<22x24x128xf32, #tpu.memory_space<vmem>>
    %279 = arith.index_cast %276 : i32 to index
    %c0_134 = arith.constant 0 : index
    %c0_135 = arith.constant 0 : index
    %280 = vector.load %278[%279, %c0_134, %c0_135] : memref<22x24x128xf32, #tpu.memory_space<vmem>>, vector<8x24x128xf32>
    %281 = vector.extract_strided_slice %280 {offsets = [0, 0, 0], sizes = [8, 16, 128], strides = [1, 1, 1]} : vector<8x24x128xf32> to vector<8x16x128xf32>
    %c5_136 = arith.constant 5 : index
    %c0_137 = arith.constant 0 : index
    %c0_138 = arith.constant 0 : index
    %282 = vector.load %arg4[%c5_136, %c0_137, %c0_138] : memref<7x7x128xf32, #tpu.memory_space<vmem>>, vector<1x1x128xf32>
    %283 = vector.shape_cast %282 : vector<1x1x128xf32> to vector<128xf32>
    %284 = vector.shape_cast %283 : vector<128xf32> to vector<1x1x128xf32>
    %285 = vector.broadcast %284 : vector<1x1x128xf32> to vector<8x16x128xf32>
    %286 = arith.mulf %281, %285 : vector<8x16x128xf32>
    %287 = arith.addf %275, %286 : vector<8x16x128xf32>
    %288 = vector.extract_strided_slice %280 {offsets = [0, 1, 0], sizes = [8, 16, 128], strides = [1, 1, 1]} : vector<8x24x128xf32> to vector<8x16x128xf32>
    %c5_139 = arith.constant 5 : index
    %c1_140 = arith.constant 1 : index
    %c0_141 = arith.constant 0 : index
    %289 = vector.load %arg4[%c5_139, %c1_140, %c0_141] : memref<7x7x128xf32, #tpu.memory_space<vmem>>, vector<1x1x128xf32>
    %290 = vector.shape_cast %289 : vector<1x1x128xf32> to vector<128xf32>
    %291 = vector.shape_cast %290 : vector<128xf32> to vector<1x1x128xf32>
    %292 = vector.broadcast %291 : vector<1x1x128xf32> to vector<8x16x128xf32>
    %293 = arith.mulf %288, %292 : vector<8x16x128xf32>
    %294 = arith.addf %287, %293 : vector<8x16x128xf32>
    %295 = vector.extract_strided_slice %280 {offsets = [0, 2, 0], sizes = [8, 16, 128], strides = [1, 1, 1]} : vector<8x24x128xf32> to vector<8x16x128xf32>
    %c5_142 = arith.constant 5 : index
    %c2_143 = arith.constant 2 : index
    %c0_144 = arith.constant 0 : index
    %296 = vector.load %arg4[%c5_142, %c2_143, %c0_144] : memref<7x7x128xf32, #tpu.memory_space<vmem>>, vector<1x1x128xf32>
    %297 = vector.shape_cast %296 : vector<1x1x128xf32> to vector<128xf32>
    %298 = vector.shape_cast %297 : vector<128xf32> to vector<1x1x128xf32>
    %299 = vector.broadcast %298 : vector<1x1x128xf32> to vector<8x16x128xf32>
    %300 = arith.mulf %295, %299 : vector<8x16x128xf32>
    %301 = arith.addf %294, %300 : vector<8x16x128xf32>
    %302 = vector.extract_strided_slice %280 {offsets = [0, 3, 0], sizes = [8, 16, 128], strides = [1, 1, 1]} : vector<8x24x128xf32> to vector<8x16x128xf32>
    %c5_145 = arith.constant 5 : index
    %c3_146 = arith.constant 3 : index
    %c0_147 = arith.constant 0 : index
    %303 = vector.load %arg4[%c5_145, %c3_146, %c0_147] : memref<7x7x128xf32, #tpu.memory_space<vmem>>, vector<1x1x128xf32>
    %304 = vector.shape_cast %303 : vector<1x1x128xf32> to vector<128xf32>
    %305 = vector.shape_cast %304 : vector<128xf32> to vector<1x1x128xf32>
    %306 = vector.broadcast %305 : vector<1x1x128xf32> to vector<8x16x128xf32>
    %307 = arith.mulf %302, %306 : vector<8x16x128xf32>
    %308 = arith.addf %301, %307 : vector<8x16x128xf32>
    %309 = vector.extract_strided_slice %280 {offsets = [0, 4, 0], sizes = [8, 16, 128], strides = [1, 1, 1]} : vector<8x24x128xf32> to vector<8x16x128xf32>
    %c5_148 = arith.constant 5 : index
    %c4_149 = arith.constant 4 : index
    %c0_150 = arith.constant 0 : index
    %310 = vector.load %arg4[%c5_148, %c4_149, %c0_150] : memref<7x7x128xf32, #tpu.memory_space<vmem>>, vector<1x1x128xf32>
    %311 = vector.shape_cast %310 : vector<1x1x128xf32> to vector<128xf32>
    %312 = vector.shape_cast %311 : vector<128xf32> to vector<1x1x128xf32>
    %313 = vector.broadcast %312 : vector<1x1x128xf32> to vector<8x16x128xf32>
    %314 = arith.mulf %309, %313 : vector<8x16x128xf32>
    %315 = arith.addf %308, %314 : vector<8x16x128xf32>
    %316 = vector.extract_strided_slice %280 {offsets = [0, 5, 0], sizes = [8, 16, 128], strides = [1, 1, 1]} : vector<8x24x128xf32> to vector<8x16x128xf32>
    %c5_151 = arith.constant 5 : index
    %c5_152 = arith.constant 5 : index
    %c0_153 = arith.constant 0 : index
    %317 = vector.load %arg4[%c5_151, %c5_152, %c0_153] : memref<7x7x128xf32, #tpu.memory_space<vmem>>, vector<1x1x128xf32>
    %318 = vector.shape_cast %317 : vector<1x1x128xf32> to vector<128xf32>
    %319 = vector.shape_cast %318 : vector<128xf32> to vector<1x1x128xf32>
    %320 = vector.broadcast %319 : vector<1x1x128xf32> to vector<8x16x128xf32>
    %321 = arith.mulf %316, %320 : vector<8x16x128xf32>
    %322 = arith.addf %315, %321 : vector<8x16x128xf32>
    %323 = vector.extract_strided_slice %280 {offsets = [0, 6, 0], sizes = [8, 16, 128], strides = [1, 1, 1]} : vector<8x24x128xf32> to vector<8x16x128xf32>
    %c5_154 = arith.constant 5 : index
    %c6_155 = arith.constant 6 : index
    %c0_156 = arith.constant 0 : index
    %324 = vector.load %arg4[%c5_154, %c6_155, %c0_156] : memref<7x7x128xf32, #tpu.memory_space<vmem>>, vector<1x1x128xf32>
    %325 = vector.shape_cast %324 : vector<1x1x128xf32> to vector<128xf32>
    %326 = vector.shape_cast %325 : vector<128xf32> to vector<1x1x128xf32>
    %327 = vector.broadcast %326 : vector<1x1x128xf32> to vector<8x16x128xf32>
    %328 = arith.mulf %323, %327 : vector<8x16x128xf32>
    %329 = arith.addf %322, %328 : vector<8x16x128xf32>
    %c6_i32 = arith.constant 6 : i32
    %330 = arith.addi %1, %c6_i32 : i32
    %c0_i32_157 = arith.constant 0 : i32
    %c0_i32_158 = arith.constant 0 : i32
    %c0_i32_159 = arith.constant 0 : i32
    %c0_i32_160 = arith.constant 0 : i32
    %331 = tpu.memref_slice %arg3[%c0_i32_157, %c0_i32_158, %c0_i32_159, %c0_i32_160] : memref<1x22x24x128xf32, #tpu.memory_space<vmem>> -> memref<1x22x24x128xf32, #tpu.memory_space<vmem>>
    %332 = tpu.memref_squeeze %331 : memref<1x22x24x128xf32, #tpu.memory_space<vmem>> -> memref<22x24x128xf32, #tpu.memory_space<vmem>>
    %333 = arith.index_cast %330 : i32 to index
    %c0_161 = arith.constant 0 : index
    %c0_162 = arith.constant 0 : index
    %334 = vector.load %332[%333, %c0_161, %c0_162] : memref<22x24x128xf32, #tpu.memory_space<vmem>>, vector<8x24x128xf32>
    %335 = vector.extract_strided_slice %334 {offsets = [0, 0, 0], sizes = [8, 16, 128], strides = [1, 1, 1]} : vector<8x24x128xf32> to vector<8x16x128xf32>
    %c6_163 = arith.constant 6 : index
    %c0_164 = arith.constant 0 : index
    %c0_165 = arith.constant 0 : index
    %336 = vector.load %arg4[%c6_163, %c0_164, %c0_165] : memref<7x7x128xf32, #tpu.memory_space<vmem>>, vector<1x1x128xf32>
    %337 = vector.shape_cast %336 : vector<1x1x128xf32> to vector<128xf32>
    %338 = vector.shape_cast %337 : vector<128xf32> to vector<1x1x128xf32>
    %339 = vector.broadcast %338 : vector<1x1x128xf32> to vector<8x16x128xf32>
    %340 = arith.mulf %335, %339 : vector<8x16x128xf32>
    %341 = arith.addf %329, %340 : vector<8x16x128xf32>
    %342 = vector.extract_strided_slice %334 {offsets = [0, 1, 0], sizes = [8, 16, 128], strides = [1, 1, 1]} : vector<8x24x128xf32> to vector<8x16x128xf32>
    %c6_166 = arith.constant 6 : index
    %c1_167 = arith.constant 1 : index
    %c0_168 = arith.constant 0 : index
    %343 = vector.load %arg4[%c6_166, %c1_167, %c0_168] : memref<7x7x128xf32, #tpu.memory_space<vmem>>, vector<1x1x128xf32>
    %344 = vector.shape_cast %343 : vector<1x1x128xf32> to vector<128xf32>
    %345 = vector.shape_cast %344 : vector<128xf32> to vector<1x1x128xf32>
    %346 = vector.broadcast %345 : vector<1x1x128xf32> to vector<8x16x128xf32>
    %347 = arith.mulf %342, %346 : vector<8x16x128xf32>
    %348 = arith.addf %341, %347 : vector<8x16x128xf32>
    %349 = vector.extract_strided_slice %334 {offsets = [0, 2, 0], sizes = [8, 16, 128], strides = [1, 1, 1]} : vector<8x24x128xf32> to vector<8x16x128xf32>
    %c6_169 = arith.constant 6 : index
    %c2_170 = arith.constant 2 : index
    %c0_171 = arith.constant 0 : index
    %350 = vector.load %arg4[%c6_169, %c2_170, %c0_171] : memref<7x7x128xf32, #tpu.memory_space<vmem>>, vector<1x1x128xf32>
    %351 = vector.shape_cast %350 : vector<1x1x128xf32> to vector<128xf32>
    %352 = vector.shape_cast %351 : vector<128xf32> to vector<1x1x128xf32>
    %353 = vector.broadcast %352 : vector<1x1x128xf32> to vector<8x16x128xf32>
    %354 = arith.mulf %349, %353 : vector<8x16x128xf32>
    %355 = arith.addf %348, %354 : vector<8x16x128xf32>
    %356 = vector.extract_strided_slice %334 {offsets = [0, 3, 0], sizes = [8, 16, 128], strides = [1, 1, 1]} : vector<8x24x128xf32> to vector<8x16x128xf32>
    %c6_172 = arith.constant 6 : index
    %c3_173 = arith.constant 3 : index
    %c0_174 = arith.constant 0 : index
    %357 = vector.load %arg4[%c6_172, %c3_173, %c0_174] : memref<7x7x128xf32, #tpu.memory_space<vmem>>, vector<1x1x128xf32>
    %358 = vector.shape_cast %357 : vector<1x1x128xf32> to vector<128xf32>
    %359 = vector.shape_cast %358 : vector<128xf32> to vector<1x1x128xf32>
    %360 = vector.broadcast %359 : vector<1x1x128xf32> to vector<8x16x128xf32>
    %361 = arith.mulf %356, %360 : vector<8x16x128xf32>
    %362 = arith.addf %355, %361 : vector<8x16x128xf32>
    %363 = vector.extract_strided_slice %334 {offsets = [0, 4, 0], sizes = [8, 16, 128], strides = [1, 1, 1]} : vector<8x24x128xf32> to vector<8x16x128xf32>
    %c6_175 = arith.constant 6 : index
    %c4_176 = arith.constant 4 : index
    %c0_177 = arith.constant 0 : index
    %364 = vector.load %arg4[%c6_175, %c4_176, %c0_177] : memref<7x7x128xf32, #tpu.memory_space<vmem>>, vector<1x1x128xf32>
    %365 = vector.shape_cast %364 : vector<1x1x128xf32> to vector<128xf32>
    %366 = vector.shape_cast %365 : vector<128xf32> to vector<1x1x128xf32>
    %367 = vector.broadcast %366 : vector<1x1x128xf32> to vector<8x16x128xf32>
    %368 = arith.mulf %363, %367 : vector<8x16x128xf32>
    %369 = arith.addf %362, %368 : vector<8x16x128xf32>
    %370 = vector.extract_strided_slice %334 {offsets = [0, 5, 0], sizes = [8, 16, 128], strides = [1, 1, 1]} : vector<8x24x128xf32> to vector<8x16x128xf32>
    %c6_178 = arith.constant 6 : index
    %c5_179 = arith.constant 5 : index
    %c0_180 = arith.constant 0 : index
    %371 = vector.load %arg4[%c6_178, %c5_179, %c0_180] : memref<7x7x128xf32, #tpu.memory_space<vmem>>, vector<1x1x128xf32>
    %372 = vector.shape_cast %371 : vector<1x1x128xf32> to vector<128xf32>
    %373 = vector.shape_cast %372 : vector<128xf32> to vector<1x1x128xf32>
    %374 = vector.broadcast %373 : vector<1x1x128xf32> to vector<8x16x128xf32>
    %375 = arith.mulf %370, %374 : vector<8x16x128xf32>
    %376 = arith.addf %369, %375 : vector<8x16x128xf32>
    %377 = vector.extract_strided_slice %334 {offsets = [0, 6, 0], sizes = [8, 16, 128], strides = [1, 1, 1]} : vector<8x24x128xf32> to vector<8x16x128xf32>
    %c6_181 = arith.constant 6 : index
    %c6_182 = arith.constant 6 : index
    %c0_183 = arith.constant 0 : index
    %378 = vector.load %arg4[%c6_181, %c6_182, %c0_183] : memref<7x7x128xf32, #tpu.memory_space<vmem>>, vector<1x1x128xf32>
    %379 = vector.shape_cast %378 : vector<1x1x128xf32> to vector<128xf32>
    %380 = vector.shape_cast %379 : vector<128xf32> to vector<1x1x128xf32>
    %381 = vector.broadcast %380 : vector<1x1x128xf32> to vector<8x16x128xf32>
    %382 = arith.mulf %377, %381 : vector<8x16x128xf32>
    %383 = arith.addf %376, %382 : vector<8x16x128xf32>
    %c0_184 = arith.constant 0 : index
    %c0_185 = arith.constant 0 : index
    %c0_186 = arith.constant 0 : index
    %c0_187 = arith.constant 0 : index
    %384 = vector.load %arg6[%c0_184, %c0_185, %c0_186, %c0_187] : memref<1x8x16x128xf32, #tpu.memory_space<vmem>>, vector<1x8x16x128xf32>
    %385 = vector.shape_cast %384 : vector<1x8x16x128xf32> to vector<8x16x128xf32>
    %386 = vector.shape_cast %383 : vector<8x16x128xf32> to vector<1x8x16x128xf32>
    tpu.vector_store %arg6[%c0_184, %c0_185, %c0_186, %c0_187], %386 {strides = array<i32>} : memref<1x8x16x128xf32, #tpu.memory_space<vmem>>, vector<1x8x16x128xf32>,
    return
  }
  func.func @transform_0(%arg0: i32, %arg1: i32, %arg2: i32) -> (i32, i32, i32, i32) {
    %c0_i32 = arith.constant 0 : i32
    %c0_i32_0 = arith.constant 0 : i32
    %c0_i32_1 = arith.constant 0 : i32
    return %arg0, %c0_i32, %c0_i32_0, %arg1 : i32, i32, i32, i32
  }
  func.func @transform_1(%arg0: i32, %arg1: i32, %arg2: i32) -> (i32, i32, i32) {
    %c0_i32 = arith.constant 0 : i32
    %c0_i32_0 = arith.constant 0 : i32
    %c0_i32_1 = arith.constant 0 : i32
    return %c0_i32, %c0_i32_0, %arg1 : i32, i32, i32
  }
  func.func @transform_2(%arg0: i32, %arg1: i32, %arg2: i32) -> (i32, i32) {
    %c0_i32 = arith.constant 0 : i32
    %c0_i32_0 = arith.constant 0 : i32
    return %c0_i32, %arg1 : i32, i32
  }
  func.func @transform_3(%arg0: i32, %arg1: i32, %arg2: i32) -> (i32, i32, i32, i32) {
    %c0_i32 = arith.constant 0 : i32
    %c0_i32_0 = arith.constant 0 : i32
    return %arg0, %arg2, %c0_i32, %arg1 : i32, i32, i32, i32
  }
}

</mosaic_0001>

<llo_original>
// kernel: tpu_custom_call.1
$region0: #{tpu_custom_call.1}
  #allocation0 [shape = 'u32[]', space=smem, size = 0x4, offset = 0x4, fixed_abs, tag = 'smem constant byte address 0x4 - core index']
  #allocation1 [shape = 'u32[144,128]{1,0:T(1,128)}', space=vmem, size = 0x12000, scoped, tag = 'internal scratch']
  %s0 = inlined_call_operand.hbm [shape: f32[2,22,24,128], index: 0, kind: input, shape index: {}]
  %s1 = inlined_call_operand.hbm [shape: f32[7,7,128], index: 1, kind: input, shape index: {}]
  %s2 = inlined_call_operand.vmem [shape: f32[1,128], index: 2, kind: input, shape index: {}]
  %s3 = inlined_call_operand.hbm [shape: f32[2,16,16,128], index: 3, kind: output, shape index: {}]
  %s4 = sld [smem:[#allocation0]]
  $region53: #{tpu_custom_call.1} parent=0
    _
  %s6 = ssub.s32 1, %s4
  %s7 = scalar_select 0, %s6, %s4
  $region1: #{tpu_custom_call.1} parent=0
    #allocation2 [shape = 'u8[540672]{0}', space=vmem, size = 0x84000, scoped, tag = 'input window, operand 0']
    #allocation3 [shape = 's32[2]{0}', space=sflag, size = 0x8, scoped, tag = 'scoped memory for tpu_custom_call.1']
    #allocation4 [shape = 's32[2]{0}', space=sflag, size = 0x8, scoped, tag = 'scoped memory for tpu_custom_call.1']
    #allocation5 [shape = 'u8[28672]{0}', space=vmem, size = 0x7000, scoped, tag = 'input window, operand 1, single buffered']
    #allocation6 [shape = 's32[1]{0}', space=sflag, size = 0x4, scoped, tag = 'scoped memory for tpu_custom_call.1']
    #allocation7 [shape = 'u8[131072]{0}', space=vmem, size = 0x20000, scoped, tag = 'output window, operand 0']
    %8 = vsyncpa [#allocation3], 0
    %s9 = scalar_lea.sflag [#allocation3], 1
    %10 = vsyncpa %s9, 0
    %11 = vsyncpa [#allocation6], 0
    %12 = vsyncpa [#allocation4], 0
    %s13 = scalar_lea.sflag [#allocation4], 1
    %14 = vsyncpa %s13, 0
    loop: start=0, step=1, limit=6
    $region2: #{tpu_custom_call.1} parent=1 // loop_pre_header
      _
    $region3: #{tpu_custom_call.1} parent=1 // loop_header
      %s16 = sphi 0, %s20
      %p17 = scmp.ge.s32.totalorder %s16, 6
      %s23 = sphi 0, %s42
      %s24 = sphi 0, %s38
      %s25 = sphi 0, %s34
      %s26 = sphi 0, %s23
      %s27 = sphi 0, %s24
      %s28 = sphi 0, %s25
      %s29 = sphi 0, %s26
      %s30 = sphi 0, %s27
      %s31 = sphi 0, %s28
      %s47 = sphi 0, %s49
      %s50 = sphi 0, %s47
      %s51 = sphi 0, %s50
      %s67 = sphi 0, %s51
      %s73 = sphi 0, %s75
      %s76 = sphi 0, %s73
      %s77 = sphi 0, %s76
      %s93 = sphi 0, %s77
      %s99 = sphi 0, %s101
      %s102 = sphi 0, %s99
      %s103 = sphi 0, %s102
      %s119 = sphi 0, %s103
      %s129 = sphi 0, %s131
      %s132 = sphi 0, %s129
      %s133 = sphi 0, %s132
      %s149 = sphi 0, %s133
    $region4: #{tpu_custom_call.1} parent=1 // loop_header_branch
      %19 = sbr.rel (%p17) target = $region8
    $region5: #{tpu_custom_call.1} parent=1 // loop_body
      %s21 = ssub.s32 %s16, 1
      %s22 = ssub.s32 %s16, 2
      %s32 = sadd.s32 1, %s25
      %p33 = scmp.ge.s32.totalorder %s32, 2
      %s34 = scalar_select %p33, 0, %s32
      %s35 = sadd.s32 1, %s24
      %s36 = scalar_select %p33, %s35, %s24
      %p37 = scmp.ge.s32.totalorder %s36, 1
      %s38 = scalar_select %p37, 0, %s36
      %s39 = sadd.s32 1, %s23
      %s40 = scalar_select %p37, %s39, %s23
      %p41 = scmp.ge.s32.totalorder %s40, 2
      %s42 = scalar_select %p41, 0, %s40
      %s43 = ssub.s32 %s23, %s42
      %s44 = ssub.s32 %s24, %s38
      %s45 = sor.u32 %s43, %s44
      %p46 = scmp.eq.s32.totalorder %s45, 0
      %s48 = sadd.s32 %s47, 1
      %s49 = scalar_select %p46, %s47, %s48
      %p52 = pneg %p46
      %p53 = scmp.eq.s32.totalorder %s16, 3
      %p54 = por %p52, %p53
      %p55 = scmp.ne.s32.totalorder %s47, %s50
      %p56 = scmp.eq.s32.totalorder %s16, 0
      %p57 = por %p55, %p56
      %p58 = scmp.ne.s32.totalorder %s47, %s50
      %p59 = scmp.eq.s32.totalorder %s21, 3
      %p60 = por %p58, %p59
      %p61 = scmp.ne.s32.totalorder %s50, %s51
      %p62 = scmp.eq.s32.totalorder %s21, 0
      %p63 = por %p61, %p62
      %p64 = scmp.ne.s32.totalorder %s50, %s51
      %p65 = scmp.eq.s32.totalorder %s22, 3
      %p66 = por %p64, %p65
      %p68 = scmp.ne.s32.totalorder %s51, %s67
      %p69 = scmp.eq.s32.totalorder %s22, 0
      %p70 = por %p68, %p69
      %s71 = ssub.s32 %s24, %s38
      %p72 = scmp.eq.s32.totalorder %s71, 0
      %s74 = sadd.s32 %s73, 1
      %s75 = scalar_select %p72, %s73, %s74
      %p78 = pneg %p72
      %p79 = scmp.eq.s32.totalorder %s16, 3
      %p80 = por %p78, %p79
      %p81 = scmp.ne.s32.totalorder %s73, %s76
      %p82 = scmp.eq.s32.totalorder %s16, 0
      %p83 = por %p81, %p82
      %p84 = scmp.ne.s32.totalorder %s73, %s76
      %p85 = scmp.eq.s32.totalorder %s21, 3
      %p86 = por %p84, %p85
      %p87 = scmp.ne.s32.totalorder %s76, %s77
      %p88 = scmp.eq.s32.totalorder %s21, 0
      %p89 = por %p87, %p88
      %p90 = scmp.ne.s32.totalorder %s76, %s77
      %p91 = scmp.eq.s32.totalorder %s22, 3
      %p92 = por %p90, %p91
      %p94 = scmp.ne.s32.totalorder %s77, %s93
      %p95 = scmp.eq.s32.totalorder %s22, 0
      %p96 = por %p94, %p95
      %s97 = ssub.s32 %s24, %s38
      %p98 = scmp.eq.s32.totalorder %s97, 0
      %s100 = sadd.s32 %s99, 1
      %s101 = scalar_select %p98, %s99, %s100
      %p104 = pneg %p98
      %p105 = scmp.eq.s32.totalorder %s16, 3
      %p106 = por %p104, %p105
      %p107 = scmp.ne.s32.totalorder %s99, %s102
      %p108 = scmp.eq.s32.totalorder %s16, 0
      %p109 = por %p107, %p108
      %p110 = scmp.ne.s32.totalorder %s99, %s102
      %p111 = scmp.eq.s32.totalorder %s21, 3
      %p112 = por %p110, %p111
      %p113 = scmp.ne.s32.totalorder %s102, %s103
      %p114 = scmp.eq.s32.totalorder %s21, 0
      %p115 = por %p113, %p114
      %p116 = scmp.ne.s32.totalorder %s102, %s103
      %p117 = scmp.eq.s32.totalorder %s22, 3
      %p118 = por %p116, %p117
      %p120 = scmp.ne.s32.totalorder %s103, %s119
      %p121 = scmp.eq.s32.totalorder %s22, 0
      %p122 = por %p120, %p121
      %s123 = ssub.s32 %s23, %s42
      %s124 = ssub.s32 %s25, %s34
      %s125 = sor.u32 %s123, %s124
      %s126 = ssub.s32 %s24, %s38
      %s127 = sor.u32 %s125, %s126
      %p128 = scmp.eq.s32.totalorder %s127, 0
      %s130 = sadd.s32 %s129, 1
      %s131 = scalar_select %p128, %s129, %s130
      %p134 = pneg %p128
      %p135 = scmp.eq.s32.totalorder %s16, 3
      %p136 = por %p134, %p135
      %p137 = scmp.ne.s32.totalorder %s129, %s132
      %p138 = scmp.eq.s32.totalorder %s16, 0
      %p139 = por %p137, %p138
      %p140 = scmp.ne.s32.totalorder %s129, %s132
      %p141 = scmp.eq.s32.totalorder %s21, 3
      %p142 = por %p140, %p141
      %p143 = scmp.ne.s32.totalorder %s132, %s133
      %p144 = scmp.eq.s32.totalorder %s21, 0
      %p145 = por %p143, %p144
      %p146 = scmp.ne.s32.totalorder %s132, %s133
      %p147 = scmp.eq.s32.totalorder %s22, 3
      %p148 = por %p146, %p147
      %p150 = scmp.ne.s32.totalorder %s133, %s149
      %p151 = scmp.eq.s32.totalorder %s22, 0
      %p152 = por %p150, %p151
      %p153 = scmp.le.s32.totalorder 1, %s16
      %p154 = scmp.lt.s32.totalorder %s16, 5
      %p155 = pnand %p153, %p154
      %p156 = pneg %p155
      // Predicated region
      $region9: #{tpu_custom_call.1} parent=5 // pred_check
        _
      $region10: #{tpu_custom_call.1} parent=5 // pred_check_branch
        %158 = sbr.rel (%p155) target = $region12
      $region11: #{tpu_custom_call.1} parent=5 // pred_region
        %s159 = ssub.s32 %s16, 1
        // Predicated region
        $region13: #{tpu_custom_call.1} parent=11 // pred_check
          %p160 = pneg %p89
        $region14: #{tpu_custom_call.1} parent=11 // pred_check_branch
          %162 = sbr.rel (%p160) target = $region16
        $region15: #{tpu_custom_call.1} parent=11 // pred_region
          %s164 = ssub.s32 896, 896
          %165 = vsyncadd [#allocation6], %s164
          %s166 = smul.addr %s27, 128
          %s167 = scalar_lea.hbm %s1, %s166
          %s168 = sshll.u32 [#allocation5], 4
          %s169 = int_to_ptr.vmem [resolvable:$true] %s168
          %174 = dma.hbm_to_vmem [thread:$0]  %s167, 896, %s169, [#allocation6], 128, 128, 8
        $region16: #{tpu_custom_call.1} parent=11 // pred_fallthru
          _
        // Predicated region
        $region17: #{tpu_custom_call.1} parent=11 // pred_check
          %p175 = pneg %p115
        $region18: #{tpu_custom_call.1} parent=11 // pred_check_branch
          %177 = sbr.rel (%p175) target = $region20
        $region19: #{tpu_custom_call.1} parent=11 // pred_region
          %p178 = scmp.lt.s32.totalorder %s27, 0
          %s179 = scalar_select %p178, %s27, 0
          %s180 = scalar_lea.vmem %s2, %s179
        $region20: #{tpu_custom_call.1} parent=11 // pred_fallthru
          _
      $region12: #{tpu_custom_call.1} parent=5 // pred_fallthru
        _
      %p181 = scmp.lt.s32.totalorder %s16, 4
      // Predicated region
      $region21: #{tpu_custom_call.1} parent=5 // pred_check
        %p182 = pneg %p181
      $region22: #{tpu_custom_call.1} parent=5 // pred_check_branch
        %184 = sbr.rel (%p182) target = $region24
      $region23: #{tpu_custom_call.1} parent=5 // pred_region
        // Predicated region
        $region25: #{tpu_custom_call.1} parent=23 // pred_check
          %p185 = pneg %p57
        $region26: #{tpu_custom_call.1} parent=23 // pred_check_branch
          %187 = sbr.rel (%p185) target = $region28
        $region27: #{tpu_custom_call.1} parent=23 // pred_region
          %s188 = sand.u32 %s47, 1
          %s189 = scalar_lea.sflag [#allocation3], %s188
          %s190 = sand.u32 %s47, 1
          %s191 = smul.addr %s190, 528
          %s192 = scalar_lea.vmem [#allocation2], %s191
          %s194 = ssub.s32 8448, 8448
          %195 = vsyncadd %s189, %s194
          %s196 = smul.addr %s23, 66
          %s197 = sadd.s32 %s24, %s196
          %s198 = smul.addr %s197, 128
          %s199 = scalar_lea.hbm %s0, %s198
          %s200 = sshll.u32 %s192, 4
          %s201 = int_to_ptr.vmem [resolvable:$true] %s200
          %206 = dma.hbm_to_vmem [thread:$0]  %s199, 8448, %s201, %s189, 128, 128, 8
        $region28: #{tpu_custom_call.1} parent=23 // pred_fallthru
          _
      $region24: #{tpu_custom_call.1} parent=5 // pred_fallthru
        _
      %p207 = scmp.le.s32.totalorder 1, %s16
      %p208 = scmp.lt.s32.totalorder %s16, 5
      %p209 = pnand %p207, %p208
      %p210 = pneg %p209
      // Predicated region
      $region29: #{tpu_custom_call.1} parent=5 // pred_check
        _
      $region30: #{tpu_custom_call.1} parent=5 // pred_check_branch
        %212 = sbr.rel (%p209) target = $region32
      $region31: #{tpu_custom_call.1} parent=5 // pred_region
        %s213 = ssub.s32 %s16, 1
        %s214 = sand.u32 %s50, 1
        %s215 = scalar_lea.sflag [#allocation3], %s214
        %s216 = sand.u32 %s50, 1
        %s217 = smul.addr %s216, 528
        %s218 = scalar_lea.vmem [#allocation2], %s217
        // Predicated region
        $region33: #{tpu_custom_call.1} parent=31 // pred_check
          %p219 = pneg %p63
        $region34: #{tpu_custom_call.1} parent=31 // pred_check_branch
          %221 = sbr.rel (%p219) target = $region36
        $region35: #{tpu_custom_call.1} parent=31 // pred_region
          %222 = dma.done %s215, 8448
        $region36: #{tpu_custom_call.1} parent=31 // pred_fallthru
          _
        // Predicated region
        $region37: #{tpu_custom_call.1} parent=31 // pred_check
          %p223 = pneg %p89
        $region38: #{tpu_custom_call.1} parent=31 // pred_check_branch
          %225 = sbr.rel (%p223) target = $region40
        $region39: #{tpu_custom_call.1} parent=31 // pred_region
          %226 = dma.done [#allocation6], 896
        $region40: #{tpu_custom_call.1} parent=31 // pred_fallthru
          _
        %s227 = sand.u32 %s50, 1
        %s228 = scalar_lea.sflag [#allocation3], %s227
        %s229 = sand.u32 %s50, 1
        %s230 = smul.addr %s229, 528
        %s231 = scalar_lea.vmem [#allocation2], %s230
        %p232 = pneg %p63
        %p233 = pneg %p60
        %p234 = pneg %p89
        %p235 = pneg %p86
        %p236 = scmp.lt.s32.totalorder %s27, 0
        %s237 = scalar_select %p236, %s27, 0
        %s238 = scalar_lea.vmem %s2, %s237
        %p239 = pneg %p115
        %p240 = pneg %p112
        %p241 = pneg %p145
        %p242 = pneg %p142
        %s243 = sand.u32 %s132, 1
        %s244 = scalar_lea.sflag [#allocation4], %s243
        %s245 = sand.u32 %s132, 1
        %s246 = smul.addr %s245, 128
        %s247 = scalar_lea.vmem [#allocation7], %s246
        %p248 = scmp.lt.s32.totalorder %s27, 0
        %s249 = scalar_select %p248, %s27, 0
        %s250 = scalar_lea.vmem %s2, %s249
        %s251 = smul.u32 8, %s28
        %s252 = smul.u32 %s28, 8
        %v253 = vld [vmem:[%s250] sm:$0x1]
        %v255 = vlaneseq
        %v256 = vshrl.u32 %v255, 7
        %v257 = vsub.s32 0, %v256
        %v258 = vrot.slane %v253, %v257
        %s260 = smul.u32 %s252, 24
        %s261 = scalar_lea.vmem %s218, %s260 [#allocation2]
        %v262 = vld [vmem:[%s261] sm:$0xff]
        %v263 = vld [vmem:[%s261 + $0x8] sm:$0xff]
        %v264 = vld [vmem:[%s261 + $0x10] sm:$0xff]
        %v265 = vld [vmem:[%s261 + $0x18] sm:$0xff]
        %v266 = vld [vmem:[%s261 + $0x20] sm:$0xff]
        %v267 = vld [vmem:[%s261 + $0x28] sm:$0xff]
        %v268 = vld [vmem:[%s261 + $0x30] sm:$0xff]
        %v269 = vld [vmem:[%s261 + $0x38] sm:$0xff]
        %v270 = vld [vmem:[%s261 + $0x40] sm:$0xff]
        %v271 = vld [vmem:[%s261 + $0x48] sm:$0xff]
        %v272 = vld [vmem:[%s261 + $0x50] sm:$0xff]
        %v273 = vld [vmem:[%s261 + $0x58] sm:$0xff]
        %v274 = vld [vmem:[%s261 + $0x60] sm:$0xff]
        %v275 = vld [vmem:[%s261 + $0x68] sm:$0xff]
        %v276 = vld [vmem:[%s261 + $0x70] sm:$0xff]
        %v277 = vld [vmem:[%s261 + $0x78] sm:$0xff]
        %v278 = vld [vmem:[%s261 + $0x80] sm:$0xff]
        %v279 = vld [vmem:[%s261 + $0x88] sm:$0xff]
        %v280 = vld [vmem:[%s261 + $0x90] sm:$0xff]
        %v281 = vld [vmem:[%s261 + $0x98] sm:$0xff]
        %v282 = vld [vmem:[%s261 + $0xa0] sm:$0xff]
        %v283 = vld [vmem:[%s261 + $0xa8] sm:$0xff]
        %v284 = vld [vmem:[%s261 + $0xb0] sm:$0xff]
        %v285 = vld [vmem:[%s261 + $0xb8] sm:$0xff]
        %v286 = vld [vmem:[#allocation5] sm:$0x1]
        %v287 = vlaneseq
        %v288 = vshrl.u32 %v287, 7
        %v289 = vsub.s32 0, %v288
        %v290 = vrot.slane %v286, %v289
        %v291 = vmul.f32 %v262, %v290
        %v292 = vmul.f32 %v263, %v290
        %v293 = vmul.f32 %v265, %v290
        %v294 = vmul.f32 %v266, %v290
        %v295 = vmul.f32 %v268, %v290
        %v296 = vmul.f32 %v269, %v290
        %v297 = vmul.f32 %v271, %v290
        %v298 = vmul.f32 %v272, %v290
        %v299 = vmul.f32 %v274, %v290
        %v300 = vmul.f32 %v275, %v290
        %v301 = vmul.f32 %v277, %v290
        %v302 = vmul.f32 %v278, %v290
        %v303 = vmul.f32 %v280, %v290
        %v304 = vmul.f32 %v281, %v290
        %v305 = vmul.f32 %v283, %v290
        %v306 = vmul.f32 %v284, %v290
        %v307 = vadd.f32 %v258, %v291
        %v308 = vadd.f32 %v258, %v292
        %v309 = vadd.f32 %v258, %v293
        %v310 = vadd.f32 %v258, %v294
        %v311 = vadd.f32 %v258, %v295
        %v312 = vadd.f32 %v258, %v296
        %v313 = vadd.f32 %v258, %v297
        %v314 = vadd.f32 %v258, %v298
        %v315 = vadd.f32 %v258, %v299
        %v316 = vadd.f32 %v258, %v300
        %v317 = vadd.f32 %v258, %v301
        %v318 = vadd.f32 %v258, %v302
        %v319 = vadd.f32 %v258, %v303
        %v320 = vadd.f32 %v258, %v304
        %v321 = vadd.f32 %v258, %v305
        %v322 = vadd.f32 %v258, %v306
        %v323 = vld [vmem:[#allocation5 + $0x1] sm:$0x1]
        %v324 = vlaneseq
        %v325 = vshrl.u32 %v324, 7
        %v326 = vsub.s32 0, %v325
        %v327 = vrot.slane %v323, %v326
        %v328 = vmul.f32 %v262, %v327
        %v329 = vmul.f32 %v263, %v327
        %v330 = vmul.f32 %v264, %v327
        %v331 = vmul.f32 %v265, %v327
        %v332 = vmul.f32 %v266, %v327
        %v333 = vmul.f32 %v267, %v327
        %v334 = vmul.f32 %v268, %v327
        %v335 = vmul.f32 %v269, %v327
        %v336 = vmul.f32 %v270, %v327
        %v337 = vmul.f32 %v271, %v327
        %v338 = vmul.f32 %v272, %v327
        %v339 = vmul.f32 %v273, %v327
        %v340 = vmul.f32 %v274, %v327
        %v341 = vmul.f32 %v275, %v327
        %v342 = vmul.f32 %v276, %v327
        %v343 = vmul.f32 %v277, %v327
        %v344 = vmul.f32 %v278, %v327
        %v345 = vmul.f32 %v279, %v327
        %v346 = vmul.f32 %v280, %v327
        %v347 = vmul.f32 %v281, %v327
        %v348 = vmul.f32 %v282, %v327
        %v349 = vmul.f32 %v283, %v327
        %v350 = vmul.f32 %v284, %v327
        %v351 = vmul.f32 %v285, %v327
        %vm376 = vcmask 1046528
        %v377 = vrot.slane %v328, 1
        %v378 = vrot.slane %v329, 1
        %v379 = vsel %vm376, %v377, %v378
        %v380 = vrot.slane %v330, 1
        %v381 = vsel %vm376, %v378, %v380
        %v382 = vrot.slane %v331, 1
        %v383 = vrot.slane %v332, 1
        %v384 = vsel %vm376, %v382, %v383
        %v385 = vrot.slane %v333, 1
        %v386 = vsel %vm376, %v383, %v385
        %v387 = vrot.slane %v334, 1
        %v388 = vrot.slane %v335, 1
        %v389 = vsel %vm376, %v387, %v388
        %v390 = vrot.slane %v336, 1
        %v391 = vsel %vm376, %v388, %v390
        %v392 = vrot.slane %v337, 1
        %v393 = vrot.slane %v338, 1
        %v394 = vsel %vm376, %v392, %v393
        %v395 = vrot.slane %v339, 1
        %v396 = vsel %vm376, %v393, %v395
        %v397 = vrot.slane %v340, 1
        %v398 = vrot.slane %v341, 1
        %v399 = vsel %vm376, %v397, %v398
        %v400 = vrot.slane %v342, 1
        %v401 = vsel %vm376, %v398, %v400
        %v402 = vrot.slane %v343, 1
        %v403 = vrot.slane %v344, 1
        %v404 = vsel %vm376, %v402, %v403
        %v405 = vrot.slane %v345, 1
        %v406 = vsel %vm376, %v403, %v405
        %v407 = vrot.slane %v346, 1
        %v408 = vrot.slane %v347, 1
        %v409 = vsel %vm376, %v407, %v408
        %v410 = vrot.slane %v348, 1
        %v411 = vsel %vm376, %v408, %v410
        %v412 = vrot.slane %v349, 1
        %v413 = vrot.slane %v350, 1
        %v414 = vsel %vm376, %v412, %v413
        %v415 = vrot.slane %v351, 1
        %v416 = vsel %vm376, %v413, %v415
        %v433 = vadd.f32 %v307, %v379
        %v434 = vadd.f32 %v308, %v381
        %v435 = vadd.f32 %v309, %v384
        %v436 = vadd.f32 %v310, %v386
        %v437 = vadd.f32 %v311, %v389
        %v438 = vadd.f32 %v312, %v391
        %v439 = vadd.f32 %v313, %v394
        %v440 = vadd.f32 %v314, %v396
        %v441 = vadd.f32 %v315, %v399
        %v442 = vadd.f32 %v316, %v401
        %v443 = vadd.f32 %v317, %v404
        %v444 = vadd.f32 %v318, %v406
        %v445 = vadd.f32 %v319, %v409
        %v446 = vadd.f32 %v320, %v411
        %v447 = vadd.f32 %v321, %v414
        %v448 = vadd.f32 %v322, %v416
        %v449 = vld [vmem:[#allocation5 + $0x2] sm:$0x1]
        %v450 = vlaneseq
        %v451 = vshrl.u32 %v450, 7
        %v452 = vsub.s32 0, %v451
        %v453 = vrot.slane %v449, %v452
        %v454 = vmul.f32 %v262, %v453
        %v455 = vmul.f32 %v263, %v453
        %v456 = vmul.f32 %v264, %v453
        %v457 = vmul.f32 %v265, %v453
        %v458 = vmul.f32 %v266, %v453
        %v459 = vmul.f32 %v267, %v453
        %v460 = vmul.f32 %v268, %v453
        %v461 = vmul.f32 %v269, %v453
        %v462 = vmul.f32 %v270, %v453
        %v463 = vmul.f32 %v271, %v453
        %v464 = vmul.f32 %v272, %v453
        %v465 = vmul.f32 %v273, %v453
        %v466 = vmul.f32 %v274, %v453
        %v467 = vmul.f32 %v275, %v453
        %v468 = vmul.f32 %v276, %v453
        %v469 = vmul.f32 %v277, %v453
        %v470 = vmul.f32 %v278, %v453
        %v471 = vmul.f32 %v279, %v453
        %v472 = vmul.f32 %v280, %v453
        %v473 = vmul.f32 %v281, %v453
        %v474 = vmul.f32 %v282, %v453
        %v475 = vmul.f32 %v283, %v453
        %v476 = vmul.f32 %v284, %v453
        %v477 = vmul.f32 %v285, %v453
        %vm502 = vcmask 1045504
        %v503 = vrot.slane %v454, 2
        %v504 = vrot.slane %v455, 2
        %v505 = vsel %vm502, %v503, %v504
        %v506 = vrot.slane %v456, 2
        %v507 = vsel %vm502, %v504, %v506
        %v508 = vrot.slane %v457, 2
        %v509 = vrot.slane %v458, 2
        %v510 = vsel %vm502, %v508, %v509
        %v511 = vrot.slane %v459, 2
        %v512 = vsel %vm502, %v509, %v511
        %v513 = vrot.slane %v460, 2
        %v514 = vrot.slane %v461, 2
        %v515 = vsel %vm502, %v513, %v514
        %v516 = vrot.slane %v462, 2
        %v517 = vsel %vm502, %v514, %v516
        %v518 = vrot.slane %v463, 2
        %v519 = vrot.slane %v464, 2
        %v520 = vsel %vm502, %v518, %v519
        %v521 = vrot.slane %v465, 2
        %v522 = vsel %vm502, %v519, %v521
        %v523 = vrot.slane %v466, 2
        %v524 = vrot.slane %v467, 2
        %v525 = vsel %vm502, %v523, %v524
        %v526 = vrot.slane %v468, 2
        %v527 = vsel %vm502, %v524, %v526
        %v528 = vrot.slane %v469, 2
        %v529 = vrot.slane %v470, 2
        %v530 = vsel %vm502, %v528, %v529
        %v531 = vrot.slane %v471, 2
        %v532 = vsel %vm502, %v529, %v531
        %v533 = vrot.slane %v472, 2
        %v534 = vrot.slane %v473, 2
        %v535 = vsel %vm502, %v533, %v534
        %v536 = vrot.slane %v474, 2
        %v537 = vsel %vm502, %v534, %v536
        %v538 = vrot.slane %v475, 2
        %v539 = vrot.slane %v476, 2
        %v540 = vsel %vm502, %v538, %v539
        %v541 = vrot.slane %v477, 2
        %v542 = vsel %vm502, %v539, %v541
        %v559 = vadd.f32 %v433, %v505
        %v560 = vadd.f32 %v434, %v507
        %v561 = vadd.f32 %v435, %v510
        %v562 = vadd.f32 %v436, %v512
        %v563 = vadd.f32 %v437, %v515
        %v564 = vadd.f32 %v438, %v517
        %v565 = vadd.f32 %v439, %v520
        %v566 = vadd.f32 %v440, %v522
        %v567 = vadd.f32 %v441, %v525
        %v568 = vadd.f32 %v442, %v527
        %v569 = vadd.f32 %v443, %v530
        %v570 = vadd.f32 %v444, %v532
        %v571 = vadd.f32 %v445, %v535
        %v572 = vadd.f32 %v446, %v537
        %v573 = vadd.f32 %v447, %v540
        %v574 = vadd.f32 %v448, %v542
        %v575 = vld [vmem:[#allocation5 + $0x3] sm:$0x1]
        %v576 = vlaneseq
        %v577 = vshrl.u32 %v576, 7
        %v578 = vsub.s32 0, %v577
        %v579 = vrot.slane %v575, %v578
        %v580 = vmul.f32 %v262, %v579
        %v581 = vmul.f32 %v263, %v579
        %v582 = vmul.f32 %v264, %v579
        %v583 = vmul.f32 %v265, %v579
        %v584 = vmul.f32 %v266, %v579
        %v585 = vmul.f32 %v267, %v579
        %v586 = vmul.f32 %v268, %v579
        %v587 = vmul.f32 %v269, %v579
        %v588 = vmul.f32 %v270, %v579
        %v589 = vmul.f32 %v271, %v579
        %v590 = vmul.f32 %v272, %v579
        %v591 = vmul.f32 %v273, %v579
        %v592 = vmul.f32 %v274, %v579
        %v593 = vmul.f32 %v275, %v579
        %v594 = vmul.f32 %v276, %v579
        %v595 = vmul.f32 %v277, %v579
        %v596 = vmul.f32 %v278, %v579
        %v597 = vmul.f32 %v279, %v579
        %v598 = vmul.f32 %v280, %v579
        %v599 = vmul.f32 %v281, %v579
        %v600 = vmul.f32 %v282, %v579
        %v601 = vmul.f32 %v283, %v579
        %v602 = vmul.f32 %v284, %v579
        %v603 = vmul.f32 %v285, %v579
        %vm628 = vcmask 1044480
        %v629 = vrot.slane %v580, 3
        %v630 = vrot.slane %v581, 3
        %v631 = vsel %vm628, %v629, %v630
        %v632 = vrot.slane %v582, 3
        %v633 = vsel %vm628, %v630, %v632
        %v634 = vrot.slane %v583, 3
        %v635 = vrot.slane %v584, 3
        %v636 = vsel %vm628, %v634, %v635
        %v637 = vrot.slane %v585, 3
        %v638 = vsel %vm628, %v635, %v637
        %v639 = vrot.slane %v586, 3
        %v640 = vrot.slane %v587, 3
        %v641 = vsel %vm628, %v639, %v640
        %v642 = vrot.slane %v588, 3
        %v643 = vsel %vm628, %v640, %v642
        %v644 = vrot.slane %v589, 3
        %v645 = vrot.slane %v590, 3
        %v646 = vsel %vm628, %v644, %v645
        %v647 = vrot.slane %v591, 3
        %v648 = vsel %vm628, %v645, %v647
        %v649 = vrot.slane %v592, 3
        %v650 = vrot.slane %v593, 3
        %v651 = vsel %vm628, %v649, %v650
        %v652 = vrot.slane %v594, 3
        %v653 = vsel %vm628, %v650, %v652
        %v654 = vrot.slane %v595, 3
        %v655 = vrot.slane %v596, 3
        %v656 = vsel %vm628, %v654, %v655
        %v657 = vrot.slane %v597, 3
        %v658 = vsel %vm628, %v655, %v657
        %v659 = vrot.slane %v598, 3
        %v660 = vrot.slane %v599, 3
        %v661 = vsel %vm628, %v659, %v660
        %v662 = vrot.slane %v600, 3
        %v663 = vsel %vm628, %v660, %v662
        %v664 = vrot.slane %v601, 3
        %v665 = vrot.slane %v602, 3
        %v666 = vsel %vm628, %v664, %v665
        %v667 = vrot.slane %v603, 3
        %v668 = vsel %vm628, %v665, %v667
        %v685 = vadd.f32 %v559, %v631
        %v686 = vadd.f32 %v560, %v633
        %v687 = vadd.f32 %v561, %v636
        %v688 = vadd.f32 %v562, %v638
        %v689 = vadd.f32 %v563, %v641
        %v690 = vadd.f32 %v564, %v643
        %v691 = vadd.f32 %v565, %v646
        %v692 = vadd.f32 %v566, %v648
        %v693 = vadd.f32 %v567, %v651
        %v694 = vadd.f32 %v568, %v653
        %v695 = vadd.f32 %v569, %v656
        %v696 = vadd.f32 %v570, %v658
        %v697 = vadd.f32 %v571, %v661
        %v698 = vadd.f32 %v572, %v663
        %v699 = vadd.f32 %v573, %v666
        %v700 = vadd.f32 %v574, %v668
        %v701 = vld [vmem:[#allocation5 + $0x4] sm:$0x1]
        %v702 = vlaneseq
        %v703 = vshrl.u32 %v702, 7
        %v704 = vsub.s32 0, %v703
        %v705 = vrot.slane %v701, %v704
        %v706 = vmul.f32 %v262, %v705
        %v707 = vmul.f32 %v263, %v705
        %v708 = vmul.f32 %v264, %v705
        %v709 = vmul.f32 %v265, %v705
        %v710 = vmul.f32 %v266, %v705
        %v711 = vmul.f32 %v267, %v705
        %v712 = vmul.f32 %v268, %v705
        %v713 = vmul.f32 %v269, %v705
        %v714 = vmul.f32 %v270, %v705
        %v715 = vmul.f32 %v271, %v705
        %v716 = vmul.f32 %v272, %v705
        %v717 = vmul.f32 %v273, %v705
        %v718 = vmul.f32 %v274, %v705
        %v719 = vmul.f32 %v275, %v705
        %v720 = vmul.f32 %v276, %v705
        %v721 = vmul.f32 %v277, %v705
        %v722 = vmul.f32 %v278, %v705
        %v723 = vmul.f32 %v279, %v705
        %v724 = vmul.f32 %v280, %v705
        %v725 = vmul.f32 %v281, %v705
        %v726 = vmul.f32 %v282, %v705
        %v727 = vmul.f32 %v283, %v705
        %v728 = vmul.f32 %v284, %v705
        %v729 = vmul.f32 %v285, %v705
        %vm754 = vcmask 1043456
        %v755 = vrot.slane %v706, 4
        %v756 = vrot.slane %v707, 4
        %v757 = vsel %vm754, %v755, %v756
        %v758 = vrot.slane %v708, 4
        %v759 = vsel %vm754, %v756, %v758
        %v760 = vrot.slane %v709, 4
        %v761 = vrot.slane %v710, 4
        %v762 = vsel %vm754, %v760, %v761
        %v763 = vrot.slane %v711, 4
        %v764 = vsel %vm754, %v761, %v763
        %v765 = vrot.slane %v712, 4
        %v766 = vrot.slane %v713, 4
        %v767 = vsel %vm754, %v765, %v766
        %v768 = vrot.slane %v714, 4
        %v769 = vsel %vm754, %v766, %v768
        %v770 = vrot.slane %v715, 4
        %v771 = vrot.slane %v716, 4
        %v772 = vsel %vm754, %v770, %v771
        %v773 = vrot.slane %v717, 4
        %v774 = vsel %vm754, %v771, %v773
        %v775 = vrot.slane %v718, 4
        %v776 = vrot.slane %v719, 4
        %v777 = vsel %vm754, %v775, %v776
        %v778 = vrot.slane %v720, 4
        %v779 = vsel %vm754, %v776, %v778
        %v780 = vrot.slane %v721, 4
        %v781 = vrot.slane %v722, 4
        %v782 = vsel %vm754, %v780, %v781
        %v783 = vrot.slane %v723, 4
        %v784 = vsel %vm754, %v781, %v783
        %v785 = vrot.slane %v724, 4
        %v786 = vrot.slane %v725, 4
        %v787 = vsel %vm754, %v785, %v786
        %v788 = vrot.slane %v726, 4
        %v789 = vsel %vm754, %v786, %v788
        %v790 = vrot.slane %v727, 4
        %v791 = vrot.slane %v728, 4
        %v792 = vsel %vm754, %v790, %v791
        %v793 = vrot.slane %v729, 4
        %v794 = vsel %vm754, %v791, %v793
        %v811 = vadd.f32 %v685, %v757
        %v812 = vadd.f32 %v686, %v759
        %v813 = vadd.f32 %v687, %v762
        %v814 = vadd.f32 %v688, %v764
        %v815 = vadd.f32 %v689, %v767
        %v816 = vadd.f32 %v690, %v769
        %v817 = vadd.f32 %v691, %v772
        %v818 = vadd.f32 %v692, %v774
        %v819 = vadd.f32 %v693, %v777
        %v820 = vadd.f32 %v694, %v779
        %v821 = vadd.f32 %v695, %v782
        %v822 = vadd.f32 %v696, %v784
        %v823 = vadd.f32 %v697, %v787
        %v824 = vadd.f32 %v698, %v789
        %v825 = vadd.f32 %v699, %v792
        %v826 = vadd.f32 %v700, %v794
        %v827 = vld [vmem:[#allocation5 + $0x5] sm:$0x1]
        %v828 = vlaneseq
        %v829 = vshrl.u32 %v828, 7
        %v830 = vsub.s32 0, %v829
        %v831 = vrot.slane %v827, %v830
        %v832 = vmul.f32 %v262, %v831
        %v833 = vmul.f32 %v263, %v831
        %v834 = vmul.f32 %v264, %v831
        %v835 = vmul.f32 %v265, %v831
        %v836 = vmul.f32 %v266, %v831
        %v837 = vmul.f32 %v267, %v831
        %v838 = vmul.f32 %v268, %v831
        %v839 = vmul.f32 %v269, %v831
        %v840 = vmul.f32 %v270, %v831
        %v841 = vmul.f32 %v271, %v831
        %v842 = vmul.f32 %v272, %v831
        %v843 = vmul.f32 %v273, %v831
        %v844 = vmul.f32 %v274, %v831
        %v845 = vmul.f32 %v275, %v831
        %v846 = vmul.f32 %v276, %v831
        %v847 = vmul.f32 %v277, %v831
        %v848 = vmul.f32 %v278, %v831
        %v849 = vmul.f32 %v279, %v831
        %v850 = vmul.f32 %v280, %v831
        %v851 = vmul.f32 %v281, %v831
        %v852 = vmul.f32 %v282, %v831
        %v853 = vmul.f32 %v283, %v831
        %v854 = vmul.f32 %v284, %v831
        %v855 = vmul.f32 %v285, %v831
        %vm880 = vcmask 1042432
        %v881 = vrot.slane %v832, 5
        %v882 = vrot.slane %v833, 5
        %v883 = vsel %vm880, %v881, %v882
        %v884 = vrot.slane %v834, 5
        %v885 = vsel %vm880, %v882, %v884
        %v886 = vrot.slane %v835, 5
        %v887 = vrot.slane %v836, 5
        %v888 = vsel %vm880, %v886, %v887
        %v889 = vrot.slane %v837, 5
        %v890 = vsel %vm880, %v887, %v889
        %v891 = vrot.slane %v838, 5
        %v892 = vrot.slane %v839, 5
        %v893 = vsel %vm880, %v891, %v892
        %v894 = vrot.slane %v840, 5
        %v895 = vsel %vm880, %v892, %v894
        %v896 = vrot.slane %v841, 5
        %v897 = vrot.slane %v842, 5
        %v898 = vsel %vm880, %v896, %v897
        %v899 = vrot.slane %v843, 5
        %v900 = vsel %vm880, %v897, %v899
        %v901 = vrot.slane %v844, 5
        %v902 = vrot.slane %v845, 5
        %v903 = vsel %vm880, %v901, %v902
        %v904 = vrot.slane %v846, 5
        %v905 = vsel %vm880, %v902, %v904
        %v906 = vrot.slane %v847, 5
        %v907 = vrot.slane %v848, 5
        %v908 = vsel %vm880, %v906, %v907
        %v909 = vrot.slane %v849, 5
        %v910 = vsel %vm880, %v907, %v909
        %v911 = vrot.slane %v850, 5
        %v912 = vrot.slane %v851, 5
        %v913 = vsel %vm880, %v911, %v912
        %v914 = vrot.slane %v852, 5
        %v915 = vsel %vm880, %v912, %v914
        %v916 = vrot.slane %v853, 5
        %v917 = vrot.slane %v854, 5
        %v918 = vsel %vm880, %v916, %v917
        %v919 = vrot.slane %v855, 5
        %v920 = vsel %vm880, %v917, %v919
        %v937 = vadd.f32 %v811, %v883
        %v938 = vadd.f32 %v812, %v885
        %v939 = vadd.f32 %v813, %v888
        %v940 = vadd.f32 %v814, %v890
        %v941 = vadd.f32 %v815, %v893
        %v942 = vadd.f32 %v816, %v895
        %v943 = vadd.f32 %v817, %v898
        %v944 = vadd.f32 %v818, %v900
        %v945 = vadd.f32 %v819, %v903
        %v946 = vadd.f32 %v820, %v905
        %v947 = vadd.f32 %v821, %v908
        %v948 = vadd.f32 %v822, %v910
        %v949 = vadd.f32 %v823, %v913
        %v950 = vadd.f32 %v824, %v915
        %v951 = vadd.f32 %v825, %v918
        %v952 = vadd.f32 %v826, %v920
        %v953 = vld [vmem:[#allocation5 + $0x6] sm:$0x1]
        %v954 = vlaneseq
        %v955 = vshrl.u32 %v954, 7
        %v956 = vsub.s32 0, %v955
        %v957 = vrot.slane %v953, %v956
        %v958 = vmul.f32 %v262, %v957
        %v959 = vmul.f32 %v263, %v957
        %v960 = vmul.f32 %v264, %v957
        %v961 = vmul.f32 %v265, %v957
        %v962 = vmul.f32 %v266, %v957
        %v963 = vmul.f32 %v267, %v957
        %v964 = vmul.f32 %v268, %v957
        %v965 = vmul.f32 %v269, %v957
        %v966 = vmul.f32 %v270, %v957
        %v967 = vmul.f32 %v271, %v957
        %v968 = vmul.f32 %v272, %v957
        %v969 = vmul.f32 %v273, %v957
        %v970 = vmul.f32 %v274, %v957
        %v971 = vmul.f32 %v275, %v957
        %v972 = vmul.f32 %v276, %v957
        %v973 = vmul.f32 %v277, %v957
        %v974 = vmul.f32 %v278, %v957
        %v975 = vmul.f32 %v279, %v957
        %v976 = vmul.f32 %v280, %v957
        %v977 = vmul.f32 %v281, %v957
        %v978 = vmul.f32 %v282, %v957
        %v979 = vmul.f32 %v283, %v957
        %v980 = vmul.f32 %v284, %v957
        %v981 = vmul.f32 %v285, %v957
        %vm1006 = vcmask 1041408
        %v1007 = vrot.slane %v958, 6
        %v1008 = vrot.slane %v959, 6
        %v1009 = vsel %vm1006, %v1007, %v1008
        %v1010 = vrot.slane %v960, 6
        %v1011 = vsel %vm1006, %v1008, %v1010
        %v1012 = vrot.slane %v961, 6
        %v1013 = vrot.slane %v962, 6
        %v1014 = vsel %vm1006, %v1012, %v1013
        %v1015 = vrot.slane %v963, 6
        %v1016 = vsel %vm1006, %v1013, %v1015
        %v1017 = vrot.slane %v964, 6
        %v1018 = vrot.slane %v965, 6
        %v1019 = vsel %vm1006, %v1017, %v1018
        %v1020 = vrot.slane %v966, 6
        %v1021 = vsel %vm1006, %v1018, %v1020
        %v1022 = vrot.slane %v967, 6
        %v1023 = vrot.slane %v968, 6
        %v1024 = vsel %vm1006, %v1022, %v1023
        %v1025 = vrot.slane %v969, 6
        %v1026 = vsel %vm1006, %v1023, %v1025
        %v1027 = vrot.slane %v970, 6
        %v1028 = vrot.slane %v971, 6
        %v1029 = vsel %vm1006, %v1027, %v1028
        %v1030 = vrot.slane %v972, 6
        %v1031 = vsel %vm1006, %v1028, %v1030
        %v1032 = vrot.slane %v973, 6
        %v1033 = vrot.slane %v974, 6
        %v1034 = vsel %vm1006, %v1032, %v1033
        %v1035 = vrot.slane %v975, 6
        %v1036 = vsel %vm1006, %v1033, %v1035
        %v1037 = vrot.slane %v976, 6
        %v1038 = vrot.slane %v977, 6
        %v1039 = vsel %vm1006, %v1037, %v1038
        %v1040 = vrot.slane %v978, 6
        %v1041 = vsel %vm1006, %v1038, %v1040
        %v1042 = vrot.slane %v979, 6
        %v1043 = vrot.slane %v980, 6
        %v1044 = vsel %vm1006, %v1042, %v1043
        %v1045 = vrot.slane %v981, 6
        %v1046 = vsel %vm1006, %v1043, %v1045
        %v1063 = vadd.f32 %v937, %v1009
        %v1064 = vadd.f32 %v938, %v1011
        %v1065 = vadd.f32 %v939, %v1014
        %v1066 = vadd.f32 %v940, %v1016
        %v1067 = vadd.f32 %v941, %v1019
        %v1068 = vadd.f32 %v942, %v1021
        %v1069 = vadd.f32 %v943, %v1024
        %v1070 = vadd.f32 %v944, %v1026
        %v1071 = vadd.f32 %v945, %v1029
        %v1072 = vadd.f32 %v946, %v1031
        %v1073 = vadd.f32 %v947, %v1034
        %v1074 = vadd.f32 %v948, %v1036
        %v1075 = vadd.f32 %v949, %v1039
        %v1076 = vadd.f32 %v950, %v1041
        %v1077 = vadd.f32 %v951, %v1044
        %v1078 = vadd.f32 %v952, %v1046
        %s1079 = sadd.s32 %s252, 1
        %s1080 = smul.u32 %s1079, 24
        %s1081 = scalar_lea.vmem %s218, %s1080 [#allocation2]
        %v1082 = vld [vmem:[%s1081] sm:$0xff]
        %v1083 = vld [vmem:[%s1081 + $0x8] sm:$0xff]
        %v1084 = vld [vmem:[%s1081 + $0x10] sm:$0xff]
        %v1085 = vld [vmem:[%s1081 + $0x18] sm:$0xff]
        %v1086 = vld [vmem:[%s1081 + $0x20] sm:$0xff]
        %v1087 = vld [vmem:[%s1081 + $0x28] sm:$0xff]
        %v1088 = vld [vmem:[%s1081 + $0x30] sm:$0xff]
        %v1089 = vld [vmem:[%s1081 + $0x38] sm:$0xff]
        %v1090 = vld [vmem:[%s1081 + $0x40] sm:$0xff]
        %v1091 = vld [vmem:[%s1081 + $0x48] sm:$0xff]
        %v1092 = vld [vmem:[%s1081 + $0x50] sm:$0xff]
        %v1093 = vld [vmem:[%s1081 + $0x58] sm:$0xff]
        %v1094 = vld [vmem:[%s1081 + $0x60] sm:$0xff]
        %v1095 = vld [vmem:[%s1081 + $0x68] sm:$0xff]
        %v1096 = vld [vmem:[%s1081 + $0x70] sm:$0xff]
        %v1097 = vld [vmem:[%s1081 + $0x78] sm:$0xff]
        %v1098 = vld [vmem:[%s1081 + $0x80] sm:$0xff]
        %v1099 = vld [vmem:[%s1081 + $0x88] sm:$0xff]
        %v1100 = vld [vmem:[%s1081 + $0x90] sm:$0xff]
        %v1101 = vld [vmem:[%s1081 + $0x98] sm:$0xff]
        %v1102 = vld [vmem:[%s1081 + $0xa0] sm:$0xff]
        %v1103 = vld [vmem:[%s1081 + $0xa8] sm:$0xff]
        %v1104 = vld [vmem:[%s1081 + $0xb0] sm:$0xff]
        %v1105 = vld [vmem:[%s1081 + $0xb8] sm:$0xff]
        %s1106 = scalar_lea.vmem [#allocation5], 8
        %v1107 = vld [vmem:[%s1106] sm:$0x1]
        %v1108 = vlaneseq
        %v1109 = vshrl.u32 %v1108, 7
        %v1110 = vsub.s32 0, %v1109
        %v1111 = vrot.slane %v1107, %v1110
        %v1112 = vmul.f32 %v1082, %v1111
        %v1113 = vmul.f32 %v1083, %v1111
        %v1114 = vmul.f32 %v1085, %v1111
        %v1115 = vmul.f32 %v1086, %v1111
        %v1116 = vmul.f32 %v1088, %v1111
        %v1117 = vmul.f32 %v1089, %v1111
        %v1118 = vmul.f32 %v1091, %v1111
        %v1119 = vmul.f32 %v1092, %v1111
        %v1120 = vmul.f32 %v1094, %v1111
        %v1121 = vmul.f32 %v1095, %v1111
        %v1122 = vmul.f32 %v1097, %v1111
        %v1123 = vmul.f32 %v1098, %v1111
        %v1124 = vmul.f32 %v1100, %v1111
        %v1125 = vmul.f32 %v1101, %v1111
        %v1126 = vmul.f32 %v1103, %v1111
        %v1127 = vmul.f32 %v1104, %v1111
        %v1128 = vadd.f32 %v1063, %v1112
        %v1129 = vadd.f32 %v1064, %v1113
        %v1130 = vadd.f32 %v1065, %v1114
        %v1131 = vadd.f32 %v1066, %v1115
        %v1132 = vadd.f32 %v1067, %v1116
        %v1133 = vadd.f32 %v1068, %v1117
        %v1134 = vadd.f32 %v1069, %v1118
        %v1135 = vadd.f32 %v1070, %v1119
        %v1136 = vadd.f32 %v1071, %v1120
        %v1137 = vadd.f32 %v1072, %v1121
        %v1138 = vadd.f32 %v1073, %v1122
        %v1139 = vadd.f32 %v1074, %v1123
        %v1140 = vadd.f32 %v1075, %v1124
        %v1141 = vadd.f32 %v1076, %v1125
        %v1142 = vadd.f32 %v1077, %v1126
        %v1143 = vadd.f32 %v1078, %v1127
        %v1144 = vld [vmem:[%s1106 + $0x1] sm:$0x1]
        %v1145 = vlaneseq
        %v1146 = vshrl.u32 %v1145, 7
        %v1147 = vsub.s32 0, %v1146
        %v1148 = vrot.slane %v1144, %v1147
        %v1149 = vmul.f32 %v1082, %v1148
        %v1150 = vmul.f32 %v1083, %v1148
        %v1151 = vmul.f32 %v1084, %v1148
        %v1152 = vmul.f32 %v1085, %v1148
        %v1153 = vmul.f32 %v1086, %v1148
        %v1154 = vmul.f32 %v1087, %v1148
        %v1155 = vmul.f32 %v1088, %v1148
        %v1156 = vmul.f32 %v1089, %v1148
        %v1157 = vmul.f32 %v1090, %v1148
        %v1158 = vmul.f32 %v1091, %v1148
        %v1159 = vmul.f32 %v1092, %v1148
        %v1160 = vmul.f32 %v1093, %v1148
        %v1161 = vmul.f32 %v1094, %v1148
        %v1162 = vmul.f32 %v1095, %v1148
        %v1163 = vmul.f32 %v1096, %v1148
        %v1164 = vmul.f32 %v1097, %v1148
        %v1165 = vmul.f32 %v1098, %v1148
        %v1166 = vmul.f32 %v1099, %v1148
        %v1167 = vmul.f32 %v1100, %v1148
        %v1168 = vmul.f32 %v1101, %v1148
        %v1169 = vmul.f32 %v1102, %v1148
        %v1170 = vmul.f32 %v1103, %v1148
        %v1171 = vmul.f32 %v1104, %v1148
        %v1172 = vmul.f32 %v1105, %v1148
        %v1197 = vrot.slane %v1149, 1
        %v1198 = vrot.slane %v1150, 1
        %v1199 = vsel %vm376, %v1197, %v1198
        %v1200 = vrot.slane %v1151, 1
        %v1201 = vsel %vm376, %v1198, %v1200
        %v1202 = vrot.slane %v1152, 1
        %v1203 = vrot.slane %v1153, 1
        %v1204 = vsel %vm376, %v1202, %v1203
        %v1205 = vrot.slane %v1154, 1
        %v1206 = vsel %vm376, %v1203, %v1205
        %v1207 = vrot.slane %v1155, 1
        %v1208 = vrot.slane %v1156, 1
        %v1209 = vsel %vm376, %v1207, %v1208
        %v1210 = vrot.slane %v1157, 1
        %v1211 = vsel %vm376, %v1208, %v1210
        %v1212 = vrot.slane %v1158, 1
        %v1213 = vrot.slane %v1159, 1
        %v1214 = vsel %vm376, %v1212, %v1213
        %v1215 = vrot.slane %v1160, 1
        %v1216 = vsel %vm376, %v1213, %v1215
        %v1217 = vrot.slane %v1161, 1
        %v1218 = vrot.slane %v1162, 1
        %v1219 = vsel %vm376, %v1217, %v1218
        %v1220 = vrot.slane %v1163, 1
        %v1221 = vsel %vm376, %v1218, %v1220
        %v1222 = vrot.slane %v1164, 1
        %v1223 = vrot.slane %v1165, 1
        %v1224 = vsel %vm376, %v1222, %v1223
        %v1225 = vrot.slane %v1166, 1
        %v1226 = vsel %vm376, %v1223, %v1225
        %v1227 = vrot.slane %v1167, 1
        %v1228 = vrot.slane %v1168, 1
        %v1229 = vsel %vm376, %v1227, %v1228
        %v1230 = vrot.slane %v1169, 1
        %v1231 = vsel %vm376, %v1228, %v1230
        %v1232 = vrot.slane %v1170, 1
        %v1233 = vrot.slane %v1171, 1
        %v1234 = vsel %vm376, %v1232, %v1233
        %v1235 = vrot.slane %v1172, 1
        %v1236 = vsel %vm376, %v1233, %v1235
        %v1253 = vadd.f32 %v1128, %v1199
        %v1254 = vadd.f32 %v1129, %v1201
        %v1255 = vadd.f32 %v1130, %v1204
        %v1256 = vadd.f32 %v1131, %v1206
        %v1257 = vadd.f32 %v1132, %v1209
        %v1258 = vadd.f32 %v1133, %v1211
        %v1259 = vadd.f32 %v1134, %v1214
        %v1260 = vadd.f32 %v1135, %v1216
        %v1261 = vadd.f32 %v1136, %v1219
        %v1262 = vadd.f32 %v1137, %v1221
        %v1263 = vadd.f32 %v1138, %v1224
        %v1264 = vadd.f32 %v1139, %v1226
        %v1265 = vadd.f32 %v1140, %v1229
        %v1266 = vadd.f32 %v1141, %v1231
        %v1267 = vadd.f32 %v1142, %v1234
        %v1268 = vadd.f32 %v1143, %v1236
        %v1269 = vld [vmem:[%s1106 + $0x2] sm:$0x1]
        %v1270 = vlaneseq
        %v1271 = vshrl.u32 %v1270, 7
        %v1272 = vsub.s32 0, %v1271
        %v1273 = vrot.slane %v1269, %v1272
        %v1274 = vmul.f32 %v1082, %v1273
        %v1275 = vmul.f32 %v1083, %v1273
        %v1276 = vmul.f32 %v1084, %v1273
        %v1277 = vmul.f32 %v1085, %v1273
        %v1278 = vmul.f32 %v1086, %v1273
        %v1279 = vmul.f32 %v1087, %v1273
        %v1280 = vmul.f32 %v1088, %v1273
        %v1281 = vmul.f32 %v1089, %v1273
        %v1282 = vmul.f32 %v1090, %v1273
        %v1283 = vmul.f32 %v1091, %v1273
        %v1284 = vmul.f32 %v1092, %v1273
        %v1285 = vmul.f32 %v1093, %v1273
        %v1286 = vmul.f32 %v1094, %v1273
        %v1287 = vmul.f32 %v1095, %v1273
        %v1288 = vmul.f32 %v1096, %v1273
        %v1289 = vmul.f32 %v1097, %v1273
        %v1290 = vmul.f32 %v1098, %v1273
        %v1291 = vmul.f32 %v1099, %v1273
        %v1292 = vmul.f32 %v1100, %v1273
        %v1293 = vmul.f32 %v1101, %v1273
        %v1294 = vmul.f32 %v1102, %v1273
        %v1295 = vmul.f32 %v1103, %v1273
        %v1296 = vmul.f32 %v1104, %v1273
        %v1297 = vmul.f32 %v1105, %v1273
        %v1322 = vrot.slane %v1274, 2
        %v1323 = vrot.slane %v1275, 2
        %v1324 = vsel %vm502, %v1322, %v1323
        %v1325 = vrot.slane %v1276, 2
        %v1326 = vsel %vm502, %v1323, %v1325
        %v1327 = vrot.slane %v1277, 2
        %v1328 = vrot.slane %v1278, 2
        %v1329 = vsel %vm502, %v1327, %v1328
        %v1330 = vrot.slane %v1279, 2
        %v1331 = vsel %vm502, %v1328, %v1330
        %v1332 = vrot.slane %v1280, 2
        %v1333 = vrot.slane %v1281, 2
        %v1334 = vsel %vm502, %v1332, %v1333
        %v1335 = vrot.slane %v1282, 2
        %v1336 = vsel %vm502, %v1333, %v1335
        %v1337 = vrot.slane %v1283, 2
        %v1338 = vrot.slane %v1284, 2
        %v1339 = vsel %vm502, %v1337, %v1338
        %v1340 = vrot.slane %v1285, 2
        %v1341 = vsel %vm502, %v1338, %v1340
        %v1342 = vrot.slane %v1286, 2
        %v1343 = vrot.slane %v1287, 2
        %v1344 = vsel %vm502, %v1342, %v1343
        %v1345 = vrot.slane %v1288, 2
        %v1346 = vsel %vm502, %v1343, %v1345
        %v1347 = vrot.slane %v1289, 2
        %v1348 = vrot.slane %v1290, 2
        %v1349 = vsel %vm502, %v1347, %v1348
        %v1350 = vrot.slane %v1291, 2
        %v1351 = vsel %vm502, %v1348, %v1350
        %v1352 = vrot.slane %v1292, 2
        %v1353 = vrot.slane %v1293, 2
        %v1354 = vsel %vm502, %v1352, %v1353
        %v1355 = vrot.slane %v1294, 2
        %v1356 = vsel %vm502, %v1353, %v1355
        %v1357 = vrot.slane %v1295, 2
        %v1358 = vrot.slane %v1296, 2
        %v1359 = vsel %vm502, %v1357, %v1358
        %v1360 = vrot.slane %v1297, 2
        %v1361 = vsel %vm502, %v1358, %v1360
        %v1378 = vadd.f32 %v1253, %v1324
        %v1379 = vadd.f32 %v1254, %v1326
        %v1380 = vadd.f32 %v1255, %v1329
        %v1381 = vadd.f32 %v1256, %v1331
        %v1382 = vadd.f32 %v1257, %v1334
        %v1383 = vadd.f32 %v1258, %v1336
        %v1384 = vadd.f32 %v1259, %v1339
        %v1385 = vadd.f32 %v1260, %v1341
        %v1386 = vadd.f32 %v1261, %v1344
        %v1387 = vadd.f32 %v1262, %v1346
        %v1388 = vadd.f32 %v1263, %v1349
        %v1389 = vadd.f32 %v1264, %v1351
        %v1390 = vadd.f32 %v1265, %v1354
        %v1391 = vadd.f32 %v1266, %v1356
        %v1392 = vadd.f32 %v1267, %v1359
        %v1393 = vadd.f32 %v1268, %v1361
        %v1394 = vld [vmem:[%s1106 + $0x3] sm:$0x1]
        %v1395 = vlaneseq
        %v1396 = vshrl.u32 %v1395, 7
        %v1397 = vsub.s32 0, %v1396
        %v1398 = vrot.slane %v1394, %v1397
        %v1399 = vmul.f32 %v1082, %v1398
        %v1400 = vmul.f32 %v1083, %v1398
        %v1401 = vmul.f32 %v1084, %v1398
        %v1402 = vmul.f32 %v1085, %v1398
        %v1403 = vmul.f32 %v1086, %v1398
        %v1404 = vmul.f32 %v1087, %v1398
        %v1405 = vmul.f32 %v1088, %v1398
        %v1406 = vmul.f32 %v1089, %v1398
        %v1407 = vmul.f32 %v1090, %v1398
        %v1408 = vmul.f32 %v1091, %v1398
        %v1409 = vmul.f32 %v1092, %v1398
        %v1410 = vmul.f32 %v1093, %v1398
        %v1411 = vmul.f32 %v1094, %v1398
        %v1412 = vmul.f32 %v1095, %v1398
        %v1413 = vmul.f32 %v1096, %v1398
        %v1414 = vmul.f32 %v1097, %v1398
        %v1415 = vmul.f32 %v1098, %v1398
        %v1416 = vmul.f32 %v1099, %v1398
        %v1417 = vmul.f32 %v1100, %v1398
        %v1418 = vmul.f32 %v1101, %v1398
        %v1419 = vmul.f32 %v1102, %v1398
        %v1420 = vmul.f32 %v1103, %v1398
        %v1421 = vmul.f32 %v1104, %v1398
        %v1422 = vmul.f32 %v1105, %v1398
        %v1447 = vrot.slane %v1399, 3
        %v1448 = vrot.slane %v1400, 3
        %v1449 = vsel %vm628, %v1447, %v1448
        %v1450 = vrot.slane %v1401, 3
        %v1451 = vsel %vm628, %v1448, %v1450
        %v1452 = vrot.slane %v1402, 3
        %v1453 = vrot.slane %v1403, 3
        %v1454 = vsel %vm628, %v1452, %v1453
        %v1455 = vrot.slane %v1404, 3
        %v1456 = vsel %vm628, %v1453, %v1455
        %v1457 = vrot.slane %v1405, 3
        %v1458 = vrot.slane %v1406, 3
        %v1459 = vsel %vm628, %v1457, %v1458
        %v1460 = vrot.slane %v1407, 3
        %v1461 = vsel %vm628, %v1458, %v1460
        %v1462 = vrot.slane %v1408, 3
        %v1463 = vrot.slane %v1409, 3
        %v1464 = vsel %vm628, %v1462, %v1463
        %v1465 = vrot.slane %v1410, 3
        %v1466 = vsel %vm628, %v1463, %v1465
        %v1467 = vrot.slane %v1411, 3
        %v1468 = vrot.slane %v1412, 3
        %v1469 = vsel %vm628, %v1467, %v1468
        %v1470 = vrot.slane %v1413, 3
        %v1471 = vsel %vm628, %v1468, %v1470
        %v1472 = vrot.slane %v1414, 3
        %v1473 = vrot.slane %v1415, 3
        %v1474 = vsel %vm628, %v1472, %v1473
        %v1475 = vrot.slane %v1416, 3
        %v1476 = vsel %vm628, %v1473, %v1475
        %v1477 = vrot.slane %v1417, 3
        %v1478 = vrot.slane %v1418, 3
        %v1479 = vsel %vm628, %v1477, %v1478
        %v1480 = vrot.slane %v1419, 3
        %v1481 = vsel %vm628, %v1478, %v1480
        %v1482 = vrot.slane %v1420, 3
        %v1483 = vrot.slane %v1421, 3
        %v1484 = vsel %vm628, %v1482, %v1483
        %v1485 = vrot.slane %v1422, 3
        %v1486 = vsel %vm628, %v1483, %v1485
        %v1503 = vadd.f32 %v1378, %v1449
        %v1504 = vadd.f32 %v1379, %v1451
        %v1505 = vadd.f32 %v1380, %v1454
        %v1506 = vadd.f32 %v1381, %v1456
        %v1507 = vadd.f32 %v1382, %v1459
        %v1508 = vadd.f32 %v1383, %v1461
        %v1509 = vadd.f32 %v1384, %v1464
        %v1510 = vadd.f32 %v1385, %v1466
        %v1511 = vadd.f32 %v1386, %v1469
        %v1512 = vadd.f32 %v1387, %v1471
        %v1513 = vadd.f32 %v1388, %v1474
        %v1514 = vadd.f32 %v1389, %v1476
        %v1515 = vadd.f32 %v1390, %v1479
        %v1516 = vadd.f32 %v1391, %v1481
        %v1517 = vadd.f32 %v1392, %v1484
        %v1518 = vadd.f32 %v1393, %v1486
        %v1519 = vld [vmem:[%s1106 + $0x4] sm:$0x1]
        %v1520 = vlaneseq
        %v1521 = vshrl.u32 %v1520, 7
        %v1522 = vsub.s32 0, %v1521
        %v1523 = vrot.slane %v1519, %v1522
        %v1524 = vmul.f32 %v1082, %v1523
        %v1525 = vmul.f32 %v1083, %v1523
        %v1526 = vmul.f32 %v1084, %v1523
        %v1527 = vmul.f32 %v1085, %v1523
        %v1528 = vmul.f32 %v1086, %v1523
        %v1529 = vmul.f32 %v1087, %v1523
        %v1530 = vmul.f32 %v1088, %v1523
        %v1531 = vmul.f32 %v1089, %v1523
        %v1532 = vmul.f32 %v1090, %v1523
        %v1533 = vmul.f32 %v1091, %v1523
        %v1534 = vmul.f32 %v1092, %v1523
        %v1535 = vmul.f32 %v1093, %v1523
        %v1536 = vmul.f32 %v1094, %v1523
        %v1537 = vmul.f32 %v1095, %v1523
        %v1538 = vmul.f32 %v1096, %v1523
        %v1539 = vmul.f32 %v1097, %v1523
        %v1540 = vmul.f32 %v1098, %v1523
        %v1541 = vmul.f32 %v1099, %v1523
        %v1542 = vmul.f32 %v1100, %v1523
        %v1543 = vmul.f32 %v1101, %v1523
        %v1544 = vmul.f32 %v1102, %v1523
        %v1545 = vmul.f32 %v1103, %v1523
        %v1546 = vmul.f32 %v1104, %v1523
        %v1547 = vmul.f32 %v1105, %v1523
        %v1572 = vrot.slane %v1524, 4
        %v1573 = vrot.slane %v1525, 4
        %v1574 = vsel %vm754, %v1572, %v1573
        %v1575 = vrot.slane %v1526, 4
        %v1576 = vsel %vm754, %v1573, %v1575
        %v1577 = vrot.slane %v1527, 4
        %v1578 = vrot.slane %v1528, 4
        %v1579 = vsel %vm754, %v1577, %v1578
        %v1580 = vrot.slane %v1529, 4
        %v1581 = vsel %vm754, %v1578, %v1580
        %v1582 = vrot.slane %v1530, 4
        %v1583 = vrot.slane %v1531, 4
        %v1584 = vsel %vm754, %v1582, %v1583
        %v1585 = vrot.slane %v1532, 4
        %v1586 = vsel %vm754, %v1583, %v1585
        %v1587 = vrot.slane %v1533, 4
        %v1588 = vrot.slane %v1534, 4
        %v1589 = vsel %vm754, %v1587, %v1588
        %v1590 = vrot.slane %v1535, 4
        %v1591 = vsel %vm754, %v1588, %v1590
        %v1592 = vrot.slane %v1536, 4
        %v1593 = vrot.slane %v1537, 4
        %v1594 = vsel %vm754, %v1592, %v1593
        %v1595 = vrot.slane %v1538, 4
        %v1596 = vsel %vm754, %v1593, %v1595
        %v1597 = vrot.slane %v1539, 4
        %v1598 = vrot.slane %v1540, 4
        %v1599 = vsel %vm754, %v1597, %v1598
        %v1600 = vrot.slane %v1541, 4
        %v1601 = vsel %vm754, %v1598, %v1600
        %v1602 = vrot.slane %v1542, 4
        %v1603 = vrot.slane %v1543, 4
        %v1604 = vsel %vm754, %v1602, %v1603
        %v1605 = vrot.slane %v1544, 4
        %v1606 = vsel %vm754, %v1603, %v1605
        %v1607 = vrot.slane %v1545, 4
        %v1608 = vrot.slane %v1546, 4
        %v1609 = vsel %vm754, %v1607, %v1608
        %v1610 = vrot.slane %v1547, 4
        %v1611 = vsel %vm754, %v1608, %v1610
        %v1628 = vadd.f32 %v1503, %v1574
        %v1629 = vadd.f32 %v1504, %v1576
        %v1630 = vadd.f32 %v1505, %v1579
        %v1631 = vadd.f32 %v1506, %v1581
        %v1632 = vadd.f32 %v1507, %v1584
        %v1633 = vadd.f32 %v1508, %v1586
        %v1634 = vadd.f32 %v1509, %v1589
        %v1635 = vadd.f32 %v1510, %v1591
        %v1636 = vadd.f32 %v1511, %v1594
        %v1637 = vadd.f32 %v1512, %v1596
        %v1638 = vadd.f32 %v1513, %v1599
        %v1639 = vadd.f32 %v1514, %v1601
        %v1640 = vadd.f32 %v1515, %v1604
        %v1641 = vadd.f32 %v1516, %v1606
        %v1642 = vadd.f32 %v1517, %v1609
        %v1643 = vadd.f32 %v1518, %v1611
        %v1644 = vld [vmem:[%s1106 + $0x5] sm:$0x1]
        %v1645 = vlaneseq
        %v1646 = vshrl.u32 %v1645, 7
        %v1647 = vsub.s32 0, %v1646
        %v1648 = vrot.slane %v1644, %v1647
        %v1649 = vmul.f32 %v1082, %v1648
        %v1650 = vmul.f32 %v1083, %v1648
        %v1651 = vmul.f32 %v1084, %v1648
        %v1652 = vmul.f32 %v1085, %v1648
        %v1653 = vmul.f32 %v1086, %v1648
        %v1654 = vmul.f32 %v1087, %v1648
        %v1655 = vmul.f32 %v1088, %v1648
        %v1656 = vmul.f32 %v1089, %v1648
        %v1657 = vmul.f32 %v1090, %v1648
        %v1658 = vmul.f32 %v1091, %v1648
        %v1659 = vmul.f32 %v1092, %v1648
        %v1660 = vmul.f32 %v1093, %v1648
        %v1661 = vmul.f32 %v1094, %v1648
        %v1662 = vmul.f32 %v1095, %v1648
        %v1663 = vmul.f32 %v1096, %v1648
        %v1664 = vmul.f32 %v1097, %v1648
        %v1665 = vmul.f32 %v1098, %v1648
        %v1666 = vmul.f32 %v1099, %v1648
        %v1667 = vmul.f32 %v1100, %v1648
        %v1668 = vmul.f32 %v1101, %v1648
        %v1669 = vmul.f32 %v1102, %v1648
        %v1670 = vmul.f32 %v1103, %v1648
        %v1671 = vmul.f32 %v1104, %v1648
        %v1672 = vmul.f32 %v1105, %v1648
        %v1697 = vrot.slane %v1649, 5
        %v1698 = vrot.slane %v1650, 5
        %v1699 = vsel %vm880, %v1697, %v1698
        %v1700 = vrot.slane %v1651, 5
        %v1701 = vsel %vm880, %v1698, %v1700
        %v1702 = vrot.slane %v1652, 5
        %v1703 = vrot.slane %v1653, 5
        %v1704 = vsel %vm880, %v1702, %v1703
        %v1705 = vrot.slane %v1654, 5
        %v1706 = vsel %vm880, %v1703, %v1705
        %v1707 = vrot.slane %v1655, 5
        %v1708 = vrot.slane %v1656, 5
        %v1709 = vsel %vm880, %v1707, %v1708
        %v1710 = vrot.slane %v1657, 5
        %v1711 = vsel %vm880, %v1708, %v1710
        %v1712 = vrot.slane %v1658, 5
        %v1713 = vrot.slane %v1659, 5
        %v1714 = vsel %vm880, %v1712, %v1713
        %v1715 = vrot.slane %v1660, 5
        %v1716 = vsel %vm880, %v1713, %v1715
        %v1717 = vrot.slane %v1661, 5
        %v1718 = vrot.slane %v1662, 5
        %v1719 = vsel %vm880, %v1717, %v1718
        %v1720 = vrot.slane %v1663, 5
        %v1721 = vsel %vm880, %v1718, %v1720
        %v1722 = vrot.slane %v1664, 5
        %v1723 = vrot.slane %v1665, 5
        %v1724 = vsel %vm880, %v1722, %v1723
        %v1725 = vrot.slane %v1666, 5
        %v1726 = vsel %vm880, %v1723, %v1725
        %v1727 = vrot.slane %v1667, 5
        %v1728 = vrot.slane %v1668, 5
        %v1729 = vsel %vm880, %v1727, %v1728
        %v1730 = vrot.slane %v1669, 5
        %v1731 = vsel %vm880, %v1728, %v1730
        %v1732 = vrot.slane %v1670, 5
        %v1733 = vrot.slane %v1671, 5
        %v1734 = vsel %vm880, %v1732, %v1733
        %v1735 = vrot.slane %v1672, 5
        %v1736 = vsel %vm880, %v1733, %v1735
        %v1753 = vadd.f32 %v1628, %v1699
        %v1754 = vadd.f32 %v1629, %v1701
        %v1755 = vadd.f32 %v1630, %v1704
        %v1756 = vadd.f32 %v1631, %v1706
        %v1757 = vadd.f32 %v1632, %v1709
        %v1758 = vadd.f32 %v1633, %v1711
        %v1759 = vadd.f32 %v1634, %v1714
        %v1760 = vadd.f32 %v1635, %v1716
        %v1761 = vadd.f32 %v1636, %v1719
        %v1762 = vadd.f32 %v1637, %v1721
        %v1763 = vadd.f32 %v1638, %v1724
        %v1764 = vadd.f32 %v1639, %v1726
        %v1765 = vadd.f32 %v1640, %v1729
        %v1766 = vadd.f32 %v1641, %v1731
        %v1767 = vadd.f32 %v1642, %v1734
        %v1768 = vadd.f32 %v1643, %v1736
        %v1769 = vld [vmem:[%s1106 + $0x6] sm:$0x1]
        %v1770 = vlaneseq
        %v1771 = vshrl.u32 %v1770, 7
        %v1772 = vsub.s32 0, %v1771
        %v1773 = vrot.slane %v1769, %v1772
        %v1774 = vmul.f32 %v1082, %v1773
        %v1775 = vmul.f32 %v1083, %v1773
        %v1776 = vmul.f32 %v1084, %v1773
        %v1777 = vmul.f32 %v1085, %v1773
        %v1778 = vmul.f32 %v1086, %v1773
        %v1779 = vmul.f32 %v1087, %v1773
        %v1780 = vmul.f32 %v1088, %v1773
        %v1781 = vmul.f32 %v1089, %v1773
        %v1782 = vmul.f32 %v1090, %v1773
        %v1783 = vmul.f32 %v1091, %v1773
        %v1784 = vmul.f32 %v1092, %v1773
        %v1785 = vmul.f32 %v1093, %v1773
        %v1786 = vmul.f32 %v1094, %v1773
        %v1787 = vmul.f32 %v1095, %v1773
        %v1788 = vmul.f32 %v1096, %v1773
        %v1789 = vmul.f32 %v1097, %v1773
        %v1790 = vmul.f32 %v1098, %v1773
        %v1791 = vmul.f32 %v1099, %v1773
        %v1792 = vmul.f32 %v1100, %v1773
        %v1793 = vmul.f32 %v1101, %v1773
        %v1794 = vmul.f32 %v1102, %v1773
        %v1795 = vmul.f32 %v1103, %v1773
        %v1796 = vmul.f32 %v1104, %v1773
        %v1797 = vmul.f32 %v1105, %v1773
        %v1822 = vrot.slane %v1774, 6
        %v1823 = vrot.slane %v1775, 6
        %v1824 = vsel %vm1006, %v1822, %v1823
        %v1825 = vrot.slane %v1776, 6
        %v1826 = vsel %vm1006, %v1823, %v1825
        %v1827 = vrot.slane %v1777, 6
        %v1828 = vrot.slane %v1778, 6
        %v1829 = vsel %vm1006, %v1827, %v1828
        %v1830 = vrot.slane %v1779, 6
        %v1831 = vsel %vm1006, %v1828, %v1830
        %v1832 = vrot.slane %v1780, 6
        %v1833 = vrot.slane %v1781, 6
        %v1834 = vsel %vm1006, %v1832, %v1833
        %v1835 = vrot.slane %v1782, 6
        %v1836 = vsel %vm1006, %v1833, %v1835
        %v1837 = vrot.slane %v1783, 6
        %v1838 = vrot.slane %v1784, 6
        %v1839 = vsel %vm1006, %v1837, %v1838
        %v1840 = vrot.slane %v1785, 6
        %v1841 = vsel %vm1006, %v1838, %v1840
        %v1842 = vrot.slane %v1786, 6
        %v1843 = vrot.slane %v1787, 6
        %v1844 = vsel %vm1006, %v1842, %v1843
        %v1845 = vrot.slane %v1788, 6
        %v1846 = vsel %vm1006, %v1843, %v1845
        %v1847 = vrot.slane %v1789, 6
        %v1848 = vrot.slane %v1790, 6
        %v1849 = vsel %vm1006, %v1847, %v1848
        %v1850 = vrot.slane %v1791, 6
        %v1851 = vsel %vm1006, %v1848, %v1850
        %v1852 = vrot.slane %v1792, 6
        %v1853 = vrot.slane %v1793, 6
        %v1854 = vsel %vm1006, %v1852, %v1853
        %v1855 = vrot.slane %v1794, 6
        %v1856 = vsel %vm1006, %v1853, %v1855
        %v1857 = vrot.slane %v1795, 6
        %v1858 = vrot.slane %v1796, 6
        %v1859 = vsel %vm1006, %v1857, %v1858
        %v1860 = vrot.slane %v1797, 6
        %v1861 = vsel %vm1006, %v1858, %v1860
        %v1878 = vadd.f32 %v1753, %v1824
        %v1879 = vadd.f32 %v1754, %v1826
        %v1880 = vadd.f32 %v1755, %v1829
        %v1881 = vadd.f32 %v1756, %v1831
        %v1882 = vadd.f32 %v1757, %v1834
        %v1883 = vadd.f32 %v1758, %v1836
        %v1884 = vadd.f32 %v1759, %v1839
        %v1885 = vadd.f32 %v1760, %v1841
        %v1886 = vadd.f32 %v1761, %v1844
        %v1887 = vadd.f32 %v1762, %v1846
        %v1888 = vadd.f32 %v1763, %v1849
        %v1889 = vadd.f32 %v1764, %v1851
        %v1890 = vadd.f32 %v1765, %v1854
        %v1891 = vadd.f32 %v1766, %v1856
        %v1892 = vadd.f32 %v1767, %v1859
        %v1893 = vadd.f32 %v1768, %v1861
        %s1894 = sadd.s32 %s252, 2
        %s1895 = smul.u32 %s1894, 24
        %s1896 = scalar_lea.vmem %s218, %s1895 [#allocation2]
        %v1897 = vld [vmem:[%s1896] sm:$0xff]
        %v1898 = vld [vmem:[%s1896 + $0x8] sm:$0xff]
        %v1899 = vld [vmem:[%s1896 + $0x10] sm:$0xff]
        %v1900 = vld [vmem:[%s1896 + $0x18] sm:$0xff]
        %v1901 = vld [vmem:[%s1896 + $0x20] sm:$0xff]
        %v1902 = vld [vmem:[%s1896 + $0x28] sm:$0xff]
        %v1903 = vld [vmem:[%s1896 + $0x30] sm:$0xff]
        %v1904 = vld [vmem:[%s1896 + $0x38] sm:$0xff]
        %v1905 = vld [vmem:[%s1896 + $0x40] sm:$0xff]
        %v1906 = vld [vmem:[%s1896 + $0x48] sm:$0xff]
        %v1907 = vld [vmem:[%s1896 + $0x50] sm:$0xff]
        %v1908 = vld [vmem:[%s1896 + $0x58] sm:$0xff]
        %v1909 = vld [vmem:[%s1896 + $0x60] sm:$0xff]
        %v1910 = vld [vmem:[%s1896 + $0x68] sm:$0xff]
        %v1911 = vld [vmem:[%s1896 + $0x70] sm:$0xff]
        %v1912 = vld [vmem:[%s1896 + $0x78] sm:$0xff]
        %v1913 = vld [vmem:[%s1896 + $0x80] sm:$0xff]
        %v1914 = vld [vmem:[%s1896 + $0x88] sm:$0xff]
        %v1915 = vld [vmem:[%s1896 + $0x90] sm:$0xff]
        %v1916 = vld [vmem:[%s1896 + $0x98] sm:$0xff]
        %v1917 = vld [vmem:[%s1896 + $0xa0] sm:$0xff]
        %v1918 = vld [vmem:[%s1896 + $0xa8] sm:$0xff]
        %v1919 = vld [vmem:[%s1896 + $0xb0] sm:$0xff]
        %v1920 = vld [vmem:[%s1896 + $0xb8] sm:$0xff]
        %s1921 = scalar_lea.vmem [#allocation5], 16
        %v1922 = vld [vmem:[%s1921] sm:$0x1]
        %v1923 = vlaneseq
        %v1924 = vshrl.u32 %v1923, 7
        %v1925 = vsub.s32 0, %v1924
        %v1926 = vrot.slane %v1922, %v1925
        %v1927 = vmul.f32 %v1897, %v1926
        %v1928 = vmul.f32 %v1898, %v1926
        %v1929 = vmul.f32 %v1900, %v1926
        %v1930 = vmul.f32 %v1901, %v1926
        %v1931 = vmul.f32 %v1903, %v1926
        %v1932 = vmul.f32 %v1904, %v1926
        %v1933 = vmul.f32 %v1906, %v1926
        %v1934 = vmul.f32 %v1907, %v1926
        %v1935 = vmul.f32 %v1909, %v1926
        %v1936 = vmul.f32 %v1910, %v1926
        %v1937 = vmul.f32 %v1912, %v1926
        %v1938 = vmul.f32 %v1913, %v1926
        %v1939 = vmul.f32 %v1915, %v1926
        %v1940 = vmul.f32 %v1916, %v1926
        %v1941 = vmul.f32 %v1918, %v1926
        %v1942 = vmul.f32 %v1919, %v1926
        %v1943 = vadd.f32 %v1878, %v1927
        %v1944 = vadd.f32 %v1879, %v1928
        %v1945 = vadd.f32 %v1880, %v1929
        %v1946 = vadd.f32 %v1881, %v1930
        %v1947 = vadd.f32 %v1882, %v1931
        %v1948 = vadd.f32 %v1883, %v1932
        %v1949 = vadd.f32 %v1884, %v1933
        %v1950 = vadd.f32 %v1885, %v1934
        %v1951 = vadd.f32 %v1886, %v1935
        %v1952 = vadd.f32 %v1887, %v1936
        %v1953 = vadd.f32 %v1888, %v1937
        %v1954 = vadd.f32 %v1889, %v1938
        %v1955 = vadd.f32 %v1890, %v1939
        %v1956 = vadd.f32 %v1891, %v1940
        %v1957 = vadd.f32 %v1892, %v1941
        %v1958 = vadd.f32 %v1893, %v1942
        %v1959 = vld [vmem:[%s1921 + $0x1] sm:$0x1]
        %v1960 = vlaneseq
        %v1961 = vshrl.u32 %v1960, 7
        %v1962 = vsub.s32 0, %v1961
        %v1963 = vrot.slane %v1959, %v1962
        %v1964 = vmul.f32 %v1897, %v1963
        %v1965 = vmul.f32 %v1898, %v1963
        %v1966 = vmul.f32 %v1899, %v1963
        %v1967 = vmul.f32 %v1900, %v1963
        %v1968 = vmul.f32 %v1901, %v1963
        %v1969 = vmul.f32 %v1902, %v1963
        %v1970 = vmul.f32 %v1903, %v1963
        %v1971 = vmul.f32 %v1904, %v1963
        %v1972 = vmul.f32 %v1905, %v1963
        %v1973 = vmul.f32 %v1906, %v1963
        %v1974 = vmul.f32 %v1907, %v1963
        %v1975 = vmul.f32 %v1908, %v1963
        %v1976 = vmul.f32 %v1909, %v1963
        %v1977 = vmul.f32 %v1910, %v1963
        %v1978 = vmul.f32 %v1911, %v1963
        %v1979 = vmul.f32 %v1912, %v1963
        %v1980 = vmul.f32 %v1913, %v1963
        %v1981 = vmul.f32 %v1914, %v1963
        %v1982 = vmul.f32 %v1915, %v1963
        %v1983 = vmul.f32 %v1916, %v1963
        %v1984 = vmul.f32 %v1917, %v1963
        %v1985 = vmul.f32 %v1918, %v1963
        %v1986 = vmul.f32 %v1919, %v1963
        %v1987 = vmul.f32 %v1920, %v1963
        %v2012 = vrot.slane %v1964, 1
        %v2013 = vrot.slane %v1965, 1
        %v2014 = vsel %vm376, %v2012, %v2013
        %v2015 = vrot.slane %v1966, 1
        %v2016 = vsel %vm376, %v2013, %v2015
        %v2017 = vrot.slane %v1967, 1
        %v2018 = vrot.slane %v1968, 1
        %v2019 = vsel %vm376, %v2017, %v2018
        %v2020 = vrot.slane %v1969, 1
        %v2021 = vsel %vm376, %v2018, %v2020
        %v2022 = vrot.slane %v1970, 1
        %v2023 = vrot.slane %v1971, 1
        %v2024 = vsel %vm376, %v2022, %v2023
        %v2025 = vrot.slane %v1972, 1
        %v2026 = vsel %vm376, %v2023, %v2025
        %v2027 = vrot.slane %v1973, 1
        %v2028 = vrot.slane %v1974, 1
        %v2029 = vsel %vm376, %v2027, %v2028
        %v2030 = vrot.slane %v1975, 1
        %v2031 = vsel %vm376, %v2028, %v2030
        %v2032 = vrot.slane %v1976, 1
        %v2033 = vrot.slane %v1977, 1
        %v2034 = vsel %vm376, %v2032, %v2033
        %v2035 = vrot.slane %v1978, 1
        %v2036 = vsel %vm376, %v2033, %v2035
        %v2037 = vrot.slane %v1979, 1
        %v2038 = vrot.slane %v1980, 1
        %v2039 = vsel %vm376, %v2037, %v2038
        %v2040 = vrot.slane %v1981, 1
        %v2041 = vsel %vm376, %v2038, %v2040
        %v2042 = vrot.slane %v1982, 1
        %v2043 = vrot.slane %v1983, 1
        %v2044 = vsel %vm376, %v2042, %v2043
        %v2045 = vrot.slane %v1984, 1
        %v2046 = vsel %vm376, %v2043, %v2045
        %v2047 = vrot.slane %v1985, 1
        %v2048 = vrot.slane %v1986, 1
        %v2049 = vsel %vm376, %v2047, %v2048
        %v2050 = vrot.slane %v1987, 1
        %v2051 = vsel %vm376, %v2048, %v2050
        %v2068 = vadd.f32 %v1943, %v2014
        %v2069 = vadd.f32 %v1944, %v2016
        %v2070 = vadd.f32 %v1945, %v2019
        %v2071 = vadd.f32 %v1946, %v2021
        %v2072 = vadd.f32 %v1947, %v2024
        %v2073 = vadd.f32 %v1948, %v2026
        %v2074 = vadd.f32 %v1949, %v2029
        %v2075 = vadd.f32 %v1950, %v2031
        %v2076 = vadd.f32 %v1951, %v2034
        %v2077 = vadd.f32 %v1952, %v2036
        %v2078 = vadd.f32 %v1953, %v2039
        %v2079 = vadd.f32 %v1954, %v2041
        %v2080 = vadd.f32 %v1955, %v2044
        %v2081 = vadd.f32 %v1956, %v2046
        %v2082 = vadd.f32 %v1957, %v2049
        %v2083 = vadd.f32 %v1958, %v2051
        %v2084 = vld [vmem:[%s1921 + $0x2] sm:$0x1]
        %v2085 = vlaneseq
        %v2086 = vshrl.u32 %v2085, 7
        %v2087 = vsub.s32 0, %v2086
        %v2088 = vrot.slane %v2084, %v2087
        %v2089 = vmul.f32 %v1897, %v2088
        %v2090 = vmul.f32 %v1898, %v2088
        %v2091 = vmul.f32 %v1899, %v2088
        %v2092 = vmul.f32 %v1900, %v2088
        %v2093 = vmul.f32 %v1901, %v2088
        %v2094 = vmul.f32 %v1902, %v2088
        %v2095 = vmul.f32 %v1903, %v2088
        %v2096 = vmul.f32 %v1904, %v2088
        %v2097 = vmul.f32 %v1905, %v2088
        %v2098 = vmul.f32 %v1906, %v2088
        %v2099 = vmul.f32 %v1907, %v2088
        %v2100 = vmul.f32 %v1908, %v2088
        %v2101 = vmul.f32 %v1909, %v2088
        %v2102 = vmul.f32 %v1910, %v2088
        %v2103 = vmul.f32 %v1911, %v2088
        %v2104 = vmul.f32 %v1912, %v2088
        %v2105 = vmul.f32 %v1913, %v2088
        %v2106 = vmul.f32 %v1914, %v2088
        %v2107 = vmul.f32 %v1915, %v2088
        %v2108 = vmul.f32 %v1916, %v2088
        %v2109 = vmul.f32 %v1917, %v2088
        %v2110 = vmul.f32 %v1918, %v2088
        %v2111 = vmul.f32 %v1919, %v2088
        %v2112 = vmul.f32 %v1920, %v2088
        %v2137 = vrot.slane %v2089, 2
        %v2138 = vrot.slane %v2090, 2
        %v2139 = vsel %vm502, %v2137, %v2138
        %v2140 = vrot.slane %v2091, 2
        %v2141 = vsel %vm502, %v2138, %v2140
        %v2142 = vrot.slane %v2092, 2
        %v2143 = vrot.slane %v2093, 2
        %v2144 = vsel %vm502, %v2142, %v2143
        %v2145 = vrot.slane %v2094, 2
        %v2146 = vsel %vm502, %v2143, %v2145
        %v2147 = vrot.slane %v2095, 2
        %v2148 = vrot.slane %v2096, 2
        %v2149 = vsel %vm502, %v2147, %v2148
        %v2150 = vrot.slane %v2097, 2
        %v2151 = vsel %vm502, %v2148, %v2150
        %v2152 = vrot.slane %v2098, 2
        %v2153 = vrot.slane %v2099, 2
        %v2154 = vsel %vm502, %v2152, %v2153
        %v2155 = vrot.slane %v2100, 2
        %v2156 = vsel %vm502, %v2153, %v2155
        %v2157 = vrot.slane %v2101, 2
        %v2158 = vrot.slane %v2102, 2
        %v2159 = vsel %vm502, %v2157, %v2158
        %v2160 = vrot.slane %v2103, 2
        %v2161 = vsel %vm502, %v2158, %v2160
        %v2162 = vrot.slane %v2104, 2
        %v2163 = vrot.slane %v2105, 2
        %v2164 = vsel %vm502, %v2162, %v2163
        %v2165 = vrot.slane %v2106, 2
        %v2166 = vsel %vm502, %v2163, %v2165
        %v2167 = vrot.slane %v2107, 2
        %v2168 = vrot.slane %v2108, 2
        %v2169 = vsel %vm502, %v2167, %v2168
        %v2170 = vrot.slane %v2109, 2
        %v2171 = vsel %vm502, %v2168, %v2170
        %v2172 = vrot.slane %v2110, 2
        %v2173 = vrot.slane %v2111, 2
        %v2174 = vsel %vm502, %v2172, %v2173
        %v2175 = vrot.slane %v2112, 2
        %v2176 = vsel %vm502, %v2173, %v2175
        %v2193 = vadd.f32 %v2068, %v2139
        %v2194 = vadd.f32 %v2069, %v2141
        %v2195 = vadd.f32 %v2070, %v2144
        %v2196 = vadd.f32 %v2071, %v2146
        %v2197 = vadd.f32 %v2072, %v2149
        %v2198 = vadd.f32 %v2073, %v2151
        %v2199 = vadd.f32 %v2074, %v2154
        %v2200 = vadd.f32 %v2075, %v2156
        %v2201 = vadd.f32 %v2076, %v2159
        %v2202 = vadd.f32 %v2077, %v2161
        %v2203 = vadd.f32 %v2078, %v2164
        %v2204 = vadd.f32 %v2079, %v2166
        %v2205 = vadd.f32 %v2080, %v2169
        %v2206 = vadd.f32 %v2081, %v2171
        %v2207 = vadd.f32 %v2082, %v2174
        %v2208 = vadd.f32 %v2083, %v2176
        %v2209 = vld [vmem:[%s1921 + $0x3] sm:$0x1]
        %v2210 = vlaneseq
        %v2211 = vshrl.u32 %v2210, 7
        %v2212 = vsub.s32 0, %v2211
        %v2213 = vrot.slane %v2209, %v2212
        %v2214 = vmul.f32 %v1897, %v2213
        %v2215 = vmul.f32 %v1898, %v2213
        %v2216 = vmul.f32 %v1899, %v2213
        %v2217 = vmul.f32 %v1900, %v2213
        %v2218 = vmul.f32 %v1901, %v2213
        %v2219 = vmul.f32 %v1902, %v2213
        %v2220 = vmul.f32 %v1903, %v2213
        %v2221 = vmul.f32 %v1904, %v2213
        %v2222 = vmul.f32 %v1905, %v2213
        %v2223 = vmul.f32 %v1906, %v2213
        %v2224 = vmul.f32 %v1907, %v2213
        %v2225 = vmul.f32 %v1908, %v2213
        %v2226 = vmul.f32 %v1909, %v2213
        %v2227 = vmul.f32 %v1910, %v2213
        %v2228 = vmul.f32 %v1911, %v2213
        %v2229 = vmul.f32 %v1912, %v2213
        %v2230 = vmul.f32 %v1913, %v2213
        %v2231 = vmul.f32 %v1914, %v2213
        %v2232 = vmul.f32 %v1915, %v2213
        %v2233 = vmul.f32 %v1916, %v2213
        %v2234 = vmul.f32 %v1917, %v2213
        %v2235 = vmul.f32 %v1918, %v2213
        %v2236 = vmul.f32 %v1919, %v2213
        %v2237 = vmul.f32 %v1920, %v2213
        %v2262 = vrot.slane %v2214, 3
        %v2263 = vrot.slane %v2215, 3
        %v2264 = vsel %vm628, %v2262, %v2263
        %v2265 = vrot.slane %v2216, 3
        %v2266 = vsel %vm628, %v2263, %v2265
        %v2267 = vrot.slane %v2217, 3
        %v2268 = vrot.slane %v2218, 3
        %v2269 = vsel %vm628, %v2267, %v2268
        %v2270 = vrot.slane %v2219, 3
        %v2271 = vsel %vm628, %v2268, %v2270
        %v2272 = vrot.slane %v2220, 3
        %v2273 = vrot.slane %v2221, 3
        %v2274 = vsel %vm628, %v2272, %v2273
        %v2275 = vrot.slane %v2222, 3
        %v2276 = vsel %vm628, %v2273, %v2275
        %v2277 = vrot.slane %v2223, 3
        %v2278 = vrot.slane %v2224, 3
        %v2279 = vsel %vm628, %v2277, %v2278
        %v2280 = vrot.slane %v2225, 3
        %v2281 = vsel %vm628, %v2278, %v2280
        %v2282 = vrot.slane %v2226, 3
        %v2283 = vrot.slane %v2227, 3
        %v2284 = vsel %vm628, %v2282, %v2283
        %v2285 = vrot.slane %v2228, 3
        %v2286 = vsel %vm628, %v2283, %v2285
        %v2287 = vrot.slane %v2229, 3
        %v2288 = vrot.slane %v2230, 3
        %v2289 = vsel %vm628, %v2287, %v2288
        %v2290 = vrot.slane %v2231, 3
        %v2291 = vsel %vm628, %v2288, %v2290
        %v2292 = vrot.slane %v2232, 3
        %v2293 = vrot.slane %v2233, 3
        %v2294 = vsel %vm628, %v2292, %v2293
        %v2295 = vrot.slane %v2234, 3
        %v2296 = vsel %vm628, %v2293, %v2295
        %v2297 = vrot.slane %v2235, 3
        %v2298 = vrot.slane %v2236, 3
        %v2299 = vsel %vm628, %v2297, %v2298
        %v2300 = vrot.slane %v2237, 3
        %v2301 = vsel %vm628, %v2298, %v2300
        %v2318 = vadd.f32 %v2193, %v2264
        %v2319 = vadd.f32 %v2194, %v2266
        %v2320 = vadd.f32 %v2195, %v2269
        %v2321 = vadd.f32 %v2196, %v2271
        %v2322 = vadd.f32 %v2197, %v2274
        %v2323 = vadd.f32 %v2198, %v2276
        %v2324 = vadd.f32 %v2199, %v2279
        %v2325 = vadd.f32 %v2200, %v2281
        %v2326 = vadd.f32 %v2201, %v2284
        %v2327 = vadd.f32 %v2202, %v2286
        %v2328 = vadd.f32 %v2203, %v2289
        %v2329 = vadd.f32 %v2204, %v2291
        %v2330 = vadd.f32 %v2205, %v2294
        %v2331 = vadd.f32 %v2206, %v2296
        %v2332 = vadd.f32 %v2207, %v2299
        %v2333 = vadd.f32 %v2208, %v2301
        %v2334 = vld [vmem:[%s1921 + $0x4] sm:$0x1]
        %v2335 = vlaneseq
        %v2336 = vshrl.u32 %v2335, 7
        %v2337 = vsub.s32 0, %v2336
        %v2338 = vrot.slane %v2334, %v2337
        %v2339 = vmul.f32 %v1897, %v2338
        %v2340 = vmul.f32 %v1898, %v2338
        %v2341 = vmul.f32 %v1899, %v2338
        %v2342 = vmul.f32 %v1900, %v2338
        %v2343 = vmul.f32 %v1901, %v2338
        %v2344 = vmul.f32 %v1902, %v2338
        %v2345 = vmul.f32 %v1903, %v2338
        %v2346 = vmul.f32 %v1904, %v2338
        %v2347 = vmul.f32 %v1905, %v2338
        %v2348 = vmul.f32 %v1906, %v2338
        %v2349 = vmul.f32 %v1907, %v2338
        %v2350 = vmul.f32 %v1908, %v2338
        %v2351 = vmul.f32 %v1909, %v2338
        %v2352 = vmul.f32 %v1910, %v2338
        %v2353 = vmul.f32 %v1911, %v2338
        %v2354 = vmul.f32 %v1912, %v2338
        %v2355 = vmul.f32 %v1913, %v2338
        %v2356 = vmul.f32 %v1914, %v2338
        %v2357 = vmul.f32 %v1915, %v2338
        %v2358 = vmul.f32 %v1916, %v2338
        %v2359 = vmul.f32 %v1917, %v2338
        %v2360 = vmul.f32 %v1918, %v2338
        %v2361 = vmul.f32 %v1919, %v2338
        %v2362 = vmul.f32 %v1920, %v2338
        %v2387 = vrot.slane %v2339, 4
        %v2388 = vrot.slane %v2340, 4
        %v2389 = vsel %vm754, %v2387, %v2388
        %v2390 = vrot.slane %v2341, 4
        %v2391 = vsel %vm754, %v2388, %v2390
        %v2392 = vrot.slane %v2342, 4
        %v2393 = vrot.slane %v2343, 4
        %v2394 = vsel %vm754, %v2392, %v2393
        %v2395 = vrot.slane %v2344, 4
        %v2396 = vsel %vm754, %v2393, %v2395
        %v2397 = vrot.slane %v2345, 4
        %v2398 = vrot.slane %v2346, 4
        %v2399 = vsel %vm754, %v2397, %v2398
        %v2400 = vrot.slane %v2347, 4
        %v2401 = vsel %vm754, %v2398, %v2400
        %v2402 = vrot.slane %v2348, 4
        %v2403 = vrot.slane %v2349, 4
        %v2404 = vsel %vm754, %v2402, %v2403
        %v2405 = vrot.slane %v2350, 4
        %v2406 = vsel %vm754, %v2403, %v2405
        %v2407 = vrot.slane %v2351, 4
        %v2408 = vrot.slane %v2352, 4
        %v2409 = vsel %vm754, %v2407, %v2408
        %v2410 = vrot.slane %v2353, 4
        %v2411 = vsel %vm754, %v2408, %v2410
        %v2412 = vrot.slane %v2354, 4
        %v2413 = vrot.slane %v2355, 4
        %v2414 = vsel %vm754, %v2412, %v2413
        %v2415 = vrot.slane %v2356, 4
        %v2416 = vsel %vm754, %v2413, %v2415
        %v2417 = vrot.slane %v2357, 4
        %v2418 = vrot.slane %v2358, 4
        %v2419 = vsel %vm754, %v2417, %v2418
        %v2420 = vrot.slane %v2359, 4
        %v2421 = vsel %vm754, %v2418, %v2420
        %v2422 = vrot.slane %v2360, 4
        %v2423 = vrot.slane %v2361, 4
        %v2424 = vsel %vm754, %v2422, %v2423
        %v2425 = vrot.slane %v2362, 4
        %v2426 = vsel %vm754, %v2423, %v2425
        %v2443 = vadd.f32 %v2318, %v2389
        %v2444 = vadd.f32 %v2319, %v2391
        %v2445 = vadd.f32 %v2320, %v2394
        %v2446 = vadd.f32 %v2321, %v2396
        %v2447 = vadd.f32 %v2322, %v2399
        %v2448 = vadd.f32 %v2323, %v2401
        %v2449 = vadd.f32 %v2324, %v2404
        %v2450 = vadd.f32 %v2325, %v2406
        %v2451 = vadd.f32 %v2326, %v2409
        %v2452 = vadd.f32 %v2327, %v2411
        %v2453 = vadd.f32 %v2328, %v2414
        %v2454 = vadd.f32 %v2329, %v2416
        %v2455 = vadd.f32 %v2330, %v2419
        %v2456 = vadd.f32 %v2331, %v2421
        %v2457 = vadd.f32 %v2332, %v2424
        %v2458 = vadd.f32 %v2333, %v2426
        %v2459 = vld [vmem:[%s1921 + $0x5] sm:$0x1]
        %v2460 = vlaneseq
        %v2461 = vshrl.u32 %v2460, 7
        %v2462 = vsub.s32 0, %v2461
        %v2463 = vrot.slane %v2459, %v2462
        %v2464 = vmul.f32 %v1897, %v2463
        %v2465 = vmul.f32 %v1898, %v2463
        %v2466 = vmul.f32 %v1899, %v2463
        %v2467 = vmul.f32 %v1900, %v2463
        %v2468 = vmul.f32 %v1901, %v2463
        %v2469 = vmul.f32 %v1902, %v2463
        %v2470 = vmul.f32 %v1903, %v2463
        %v2471 = vmul.f32 %v1904, %v2463
        %v2472 = vmul.f32 %v1905, %v2463
        %v2473 = vmul.f32 %v1906, %v2463
        %v2474 = vmul.f32 %v1907, %v2463
        %v2475 = vmul.f32 %v1908, %v2463
        %v2476 = vmul.f32 %v1909, %v2463
        %v2477 = vmul.f32 %v1910, %v2463
        %v2478 = vmul.f32 %v1911, %v2463
        %v2479 = vmul.f32 %v1912, %v2463
        %v2480 = vmul.f32 %v1913, %v2463
        %v2481 = vmul.f32 %v1914, %v2463
        %v2482 = vmul.f32 %v1915, %v2463
        %v2483 = vmul.f32 %v1916, %v2463
        %v2484 = vmul.f32 %v1917, %v2463
        %v2485 = vmul.f32 %v1918, %v2463
        %v2486 = vmul.f32 %v1919, %v2463
        %v2487 = vmul.f32 %v1920, %v2463
        %v2512 = vrot.slane %v2464, 5
        %v2513 = vrot.slane %v2465, 5
        %v2514 = vsel %vm880, %v2512, %v2513
        %v2515 = vrot.slane %v2466, 5
        %v2516 = vsel %vm880, %v2513, %v2515
        %v2517 = vrot.slane %v2467, 5
        %v2518 = vrot.slane %v2468, 5
        %v2519 = vsel %vm880, %v2517, %v2518
        %v2520 = vrot.slane %v2469, 5
        %v2521 = vsel %vm880, %v2518, %v2520
        %v2522 = vrot.slane %v2470, 5
        %v2523 = vrot.slane %v2471, 5
        %v2524 = vsel %vm880, %v2522, %v2523
        %v2525 = vrot.slane %v2472, 5
        %v2526 = vsel %vm880, %v2523, %v2525
        %v2527 = vrot.slane %v2473, 5
        %v2528 = vrot.slane %v2474, 5
        %v2529 = vsel %vm880, %v2527, %v2528
        %v2530 = vrot.slane %v2475, 5
        %v2531 = vsel %vm880, %v2528, %v2530
        %v2532 = vrot.slane %v2476, 5
        %v2533 = vrot.slane %v2477, 5
        %v2534 = vsel %vm880, %v2532, %v2533
        %v2535 = vrot.slane %v2478, 5
        %v2536 = vsel %vm880, %v2533, %v2535
        %v2537 = vrot.slane %v2479, 5
        %v2538 = vrot.slane %v2480, 5
        %v2539 = vsel %vm880, %v2537, %v2538
        %v2540 = vrot.slane %v2481, 5
        %v2541 = vsel %vm880, %v2538, %v2540
        %v2542 = vrot.slane %v2482, 5
        %v2543 = vrot.slane %v2483, 5
        %v2544 = vsel %vm880, %v2542, %v2543
        %v2545 = vrot.slane %v2484, 5
        %v2546 = vsel %vm880, %v2543, %v2545
        %v2547 = vrot.slane %v2485, 5
        %v2548 = vrot.slane %v2486, 5
        %v2549 = vsel %vm880, %v2547, %v2548
        %v2550 = vrot.slane %v2487, 5
        %v2551 = vsel %vm880, %v2548, %v2550
        %v2568 = vadd.f32 %v2443, %v2514
        %v2569 = vadd.f32 %v2444, %v2516
        %v2570 = vadd.f32 %v2445, %v2519
        %v2571 = vadd.f32 %v2446, %v2521
        %v2572 = vadd.f32 %v2447, %v2524
        %v2573 = vadd.f32 %v2448, %v2526
        %v2574 = vadd.f32 %v2449, %v2529
        %v2575 = vadd.f32 %v2450, %v2531
        %v2576 = vadd.f32 %v2451, %v2534
        %v2577 = vadd.f32 %v2452, %v2536
        %v2578 = vadd.f32 %v2453, %v2539
        %v2579 = vadd.f32 %v2454, %v2541
        %v2580 = vadd.f32 %v2455, %v2544
        %v2581 = vadd.f32 %v2456, %v2546
        %v2582 = vadd.f32 %v2457, %v2549
        %v2583 = vadd.f32 %v2458, %v2551
        %v2584 = vld [vmem:[%s1921 + $0x6] sm:$0x1]
        %v2585 = vlaneseq
        %v2586 = vshrl.u32 %v2585, 7
        %v2587 = vsub.s32 0, %v2586
        %v2588 = vrot.slane %v2584, %v2587
        %v2589 = vmul.f32 %v1897, %v2588
        %v2590 = vmul.f32 %v1898, %v2588
        %v2591 = vmul.f32 %v1899, %v2588
        %v2592 = vmul.f32 %v1900, %v2588
        %v2593 = vmul.f32 %v1901, %v2588
        %v2594 = vmul.f32 %v1902, %v2588
        %v2595 = vmul.f32 %v1903, %v2588
        %v2596 = vmul.f32 %v1904, %v2588
        %v2597 = vmul.f32 %v1905, %v2588
        %v2598 = vmul.f32 %v1906, %v2588
        %v2599 = vmul.f32 %v1907, %v2588
        %v2600 = vmul.f32 %v1908, %v2588
        %v2601 = vmul.f32 %v1909, %v2588
        %v2602 = vmul.f32 %v1910, %v2588
        %v2603 = vmul.f32 %v1911, %v2588
        %v2604 = vmul.f32 %v1912, %v2588
        %v2605 = vmul.f32 %v1913, %v2588
        %v2606 = vmul.f32 %v1914, %v2588
        %v2607 = vmul.f32 %v1915, %v2588
        %v2608 = vmul.f32 %v1916, %v2588
        %v2609 = vmul.f32 %v1917, %v2588
        %v2610 = vmul.f32 %v1918, %v2588
        %v2611 = vmul.f32 %v1919, %v2588
        %v2612 = vmul.f32 %v1920, %v2588
        %v2637 = vrot.slane %v2589, 6
        %v2638 = vrot.slane %v2590, 6
        %v2639 = vsel %vm1006, %v2637, %v2638
        %v2640 = vrot.slane %v2591, 6
        %v2641 = vsel %vm1006, %v2638, %v2640
        %v2642 = vrot.slane %v2592, 6
        %v2643 = vrot.slane %v2593, 6
        %v2644 = vsel %vm1006, %v2642, %v2643
        %v2645 = vrot.slane %v2594, 6
        %v2646 = vsel %vm1006, %v2643, %v2645
        %v2647 = vrot.slane %v2595, 6
        %v2648 = vrot.slane %v2596, 6
        %v2649 = vsel %vm1006, %v2647, %v2648
        %v2650 = vrot.slane %v2597, 6
        %v2651 = vsel %vm1006, %v2648, %v2650
        %v2652 = vrot.slane %v2598, 6
        %v2653 = vrot.slane %v2599, 6
        %v2654 = vsel %vm1006, %v2652, %v2653
        %v2655 = vrot.slane %v2600, 6
        %v2656 = vsel %vm1006, %v2653, %v2655
        %v2657 = vrot.slane %v2601, 6
        %v2658 = vrot.slane %v2602, 6
        %v2659 = vsel %vm1006, %v2657, %v2658
        %v2660 = vrot.slane %v2603, 6
        %v2661 = vsel %vm1006, %v2658, %v2660
        %v2662 = vrot.slane %v2604, 6
        %v2663 = vrot.slane %v2605, 6
        %v2664 = vsel %vm1006, %v2662, %v2663
        %v2665 = vrot.slane %v2606, 6
        %v2666 = vsel %vm1006, %v2663, %v2665
        %v2667 = vrot.slane %v2607, 6
        %v2668 = vrot.slane %v2608, 6
        %v2669 = vsel %vm1006, %v2667, %v2668
        %v2670 = vrot.slane %v2609, 6
        %v2671 = vsel %vm1006, %v2668, %v2670
        %v2672 = vrot.slane %v2610, 6
        %v2673 = vrot.slane %v2611, 6
        %v2674 = vsel %vm1006, %v2672, %v2673
        %v2675 = vrot.slane %v2612, 6
        %v2676 = vsel %vm1006, %v2673, %v2675
        %v2693 = vadd.f32 %v2568, %v2639
        %v2694 = vadd.f32 %v2569, %v2641
        %v2695 = vadd.f32 %v2570, %v2644
        %v2696 = vadd.f32 %v2571, %v2646
        %v2697 = vadd.f32 %v2572, %v2649
        %v2698 = vadd.f32 %v2573, %v2651
        %v2699 = vadd.f32 %v2574, %v2654
        %v2700 = vadd.f32 %v2575, %v2656
        %v2701 = vadd.f32 %v2576, %v2659
        %v2702 = vadd.f32 %v2577, %v2661
        %v2703 = vadd.f32 %v2578, %v2664
        %v2704 = vadd.f32 %v2579, %v2666
        %v2705 = vadd.f32 %v2580, %v2669
        %v2706 = vadd.f32 %v2581, %v2671
        %v2707 = vadd.f32 %v2582, %v2674
        %v2708 = vadd.f32 %v2583, %v2676
        %s2709 = sadd.s32 %s252, 3
        %s2710 = smul.u32 %s2709, 24
        %s2711 = scalar_lea.vmem %s218, %s2710 [#allocation2]
        %v2712 = vld [vmem:[%s2711] sm:$0xff]
        %v2713 = vld [vmem:[%s2711 + $0x8] sm:$0xff]
        %v2714 = vld [vmem:[%s2711 + $0x10] sm:$0xff]
        %v2715 = vld [vmem:[%s2711 + $0x18] sm:$0xff]
        %v2716 = vld [vmem:[%s2711 + $0x20] sm:$0xff]
        %v2717 = vld [vmem:[%s2711 + $0x28] sm:$0xff]
        %v2718 = vld [vmem:[%s2711 + $0x30] sm:$0xff]
        %v2719 = vld [vmem:[%s2711 + $0x38] sm:$0xff]
        %v2720 = vld [vmem:[%s2711 + $0x40] sm:$0xff]
        %v2721 = vld [vmem:[%s2711 + $0x48] sm:$0xff]
        %v2722 = vld [vmem:[%s2711 + $0x50] sm:$0xff]
        %v2723 = vld [vmem:[%s2711 + $0x58] sm:$0xff]
        %v2724 = vld [vmem:[%s2711 + $0x60] sm:$0xff]
        %v2725 = vld [vmem:[%s2711 + $0x68] sm:$0xff]
        %v2726 = vld [vmem:[%s2711 + $0x70] sm:$0xff]
        %v2727 = vld [vmem:[%s2711 + $0x78] sm:$0xff]
        %v2728 = vld [vmem:[%s2711 + $0x80] sm:$0xff]
        %v2729 = vld [vmem:[%s2711 + $0x88] sm:$0xff]
        %v2730 = vld [vmem:[%s2711 + $0x90] sm:$0xff]
        %v2731 = vld [vmem:[%s2711 + $0x98] sm:$0xff]
        %v2732 = vld [vmem:[%s2711 + $0xa0] sm:$0xff]
        %v2733 = vld [vmem:[%s2711 + $0xa8] sm:$0xff]
        %v2734 = vld [vmem:[%s2711 + $0xb0] sm:$0xff]
        %v2735 = vld [vmem:[%s2711 + $0xb8] sm:$0xff]
        %s2736 = scalar_lea.vmem [#allocation5], 24
        %v2737 = vld [vmem:[%s2736] sm:$0x1]
        %v2738 = vlaneseq
        %v2739 = vshrl.u32 %v2738, 7
        %v2740 = vsub.s32 0, %v2739
        %v2741 = vrot.slane %v2737, %v2740
        %v2742 = vmul.f32 %v2712, %v2741
        %v2743 = vmul.f32 %v2713, %v2741
        %v2744 = vmul.f32 %v2715, %v2741
        %v2745 = vmul.f32 %v2716, %v2741
        %v2746 = vmul.f32 %v2718, %v2741
        %v2747 = vmul.f32 %v2719, %v2741
        %v2748 = vmul.f32 %v2721, %v2741
        %v2749 = vmul.f32 %v2722, %v2741
        %v2750 = vmul.f32 %v2724, %v2741
        %v2751 = vmul.f32 %v2725, %v2741
        %v2752 = vmul.f32 %v2727, %v2741
        %v2753 = vmul.f32 %v2728, %v2741
        %v2754 = vmul.f32 %v2730, %v2741
        %v2755 = vmul.f32 %v2731, %v2741
        %v2756 = vmul.f32 %v2733, %v2741
        %v2757 = vmul.f32 %v2734, %v2741
        %v2758 = vadd.f32 %v2693, %v2742
        %v2759 = vadd.f32 %v2694, %v2743
        %v2760 = vadd.f32 %v2695, %v2744
        %v2761 = vadd.f32 %v2696, %v2745
        %v2762 = vadd.f32 %v2697, %v2746
        %v2763 = vadd.f32 %v2698, %v2747
        %v2764 = vadd.f32 %v2699, %v2748
        %v2765 = vadd.f32 %v2700, %v2749
        %v2766 = vadd.f32 %v2701, %v2750
        %v2767 = vadd.f32 %v2702, %v2751
        %v2768 = vadd.f32 %v2703, %v2752
        %v2769 = vadd.f32 %v2704, %v2753
        %v2770 = vadd.f32 %v2705, %v2754
        %v2771 = vadd.f32 %v2706, %v2755
        %v2772 = vadd.f32 %v2707, %v2756
        %v2773 = vadd.f32 %v2708, %v2757
        %v2774 = vld [vmem:[%s2736 + $0x1] sm:$0x1]
        %v2775 = vlaneseq
        %v2776 = vshrl.u32 %v2775, 7
        %v2777 = vsub.s32 0, %v2776
        %v2778 = vrot.slane %v2774, %v2777
        %v2779 = vmul.f32 %v2712, %v2778
        %v2780 = vmul.f32 %v2713, %v2778
        %v2781 = vmul.f32 %v2714, %v2778
        %v2782 = vmul.f32 %v2715, %v2778
        %v2783 = vmul.f32 %v2716, %v2778
        %v2784 = vmul.f32 %v2717, %v2778
        %v2785 = vmul.f32 %v2718, %v2778
        %v2786 = vmul.f32 %v2719, %v2778
        %v2787 = vmul.f32 %v2720, %v2778
        %v2788 = vmul.f32 %v2721, %v2778
        %v2789 = vmul.f32 %v2722, %v2778
        %v2790 = vmul.f32 %v2723, %v2778
        %v2791 = vmul.f32 %v2724, %v2778
        %v2792 = vmul.f32 %v2725, %v2778
        %v2793 = vmul.f32 %v2726, %v2778
        %v2794 = vmul.f32 %v2727, %v2778
        %v2795 = vmul.f32 %v2728, %v2778
        %v2796 = vmul.f32 %v2729, %v2778
        %v2797 = vmul.f32 %v2730, %v2778
        %v2798 = vmul.f32 %v2731, %v2778
        %v2799 = vmul.f32 %v2732, %v2778
        %v2800 = vmul.f32 %v2733, %v2778
        %v2801 = vmul.f32 %v2734, %v2778
        %v2802 = vmul.f32 %v2735, %v2778
        %v2827 = vrot.slane %v2779, 1
        %v2828 = vrot.slane %v2780, 1
        %v2829 = vsel %vm376, %v2827, %v2828
        %v2830 = vrot.slane %v2781, 1
        %v2831 = vsel %vm376, %v2828, %v2830
        %v2832 = vrot.slane %v2782, 1
        %v2833 = vrot.slane %v2783, 1
        %v2834 = vsel %vm376, %v2832, %v2833
        %v2835 = vrot.slane %v2784, 1
        %v2836 = vsel %vm376, %v2833, %v2835
        %v2837 = vrot.slane %v2785, 1
        %v2838 = vrot.slane %v2786, 1
        %v2839 = vsel %vm376, %v2837, %v2838
        %v2840 = vrot.slane %v2787, 1
        %v2841 = vsel %vm376, %v2838, %v2840
        %v2842 = vrot.slane %v2788, 1
        %v2843 = vrot.slane %v2789, 1
        %v2844 = vsel %vm376, %v2842, %v2843
        %v2845 = vrot.slane %v2790, 1
        %v2846 = vsel %vm376, %v2843, %v2845
        %v2847 = vrot.slane %v2791, 1
        %v2848 = vrot.slane %v2792, 1
        %v2849 = vsel %vm376, %v2847, %v2848
        %v2850 = vrot.slane %v2793, 1
        %v2851 = vsel %vm376, %v2848, %v2850
        %v2852 = vrot.slane %v2794, 1
        %v2853 = vrot.slane %v2795, 1
        %v2854 = vsel %vm376, %v2852, %v2853
        %v2855 = vrot.slane %v2796, 1
        %v2856 = vsel %vm376, %v2853, %v2855
        %v2857 = vrot.slane %v2797, 1
        %v2858 = vrot.slane %v2798, 1
        %v2859 = vsel %vm376, %v2857, %v2858
        %v2860 = vrot.slane %v2799, 1
        %v2861 = vsel %vm376, %v2858, %v2860
        %v2862 = vrot.slane %v2800, 1
        %v2863 = vrot.slane %v2801, 1
        %v2864 = vsel %vm376, %v2862, %v2863
        %v2865 = vrot.slane %v2802, 1
        %v2866 = vsel %vm376, %v2863, %v2865
        %v2883 = vadd.f32 %v2758, %v2829
        %v2884 = vadd.f32 %v2759, %v2831
        %v2885 = vadd.f32 %v2760, %v2834
        %v2886 = vadd.f32 %v2761, %v2836
        %v2887 = vadd.f32 %v2762, %v2839
        %v2888 = vadd.f32 %v2763, %v2841
        %v2889 = vadd.f32 %v2764, %v2844
        %v2890 = vadd.f32 %v2765, %v2846
        %v2891 = vadd.f32 %v2766, %v2849
        %v2892 = vadd.f32 %v2767, %v2851
        %v2893 = vadd.f32 %v2768, %v2854
        %v2894 = vadd.f32 %v2769, %v2856
        %v2895 = vadd.f32 %v2770, %v2859
        %v2896 = vadd.f32 %v2771, %v2861
        %v2897 = vadd.f32 %v2772, %v2864
        %v2898 = vadd.f32 %v2773, %v2866
        %v2899 = vld [vmem:[%s2736 + $0x2] sm:$0x1]
        %v2900 = vlaneseq
        %v2901 = vshrl.u32 %v2900, 7
        %v2902 = vsub.s32 0, %v2901
        %v2903 = vrot.slane %v2899, %v2902
        %v2904 = vmul.f32 %v2712, %v2903
        %v2905 = vmul.f32 %v2713, %v2903
        %v2906 = vmul.f32 %v2714, %v2903
        %v2907 = vmul.f32 %v2715, %v2903
        %v2908 = vmul.f32 %v2716, %v2903
        %v2909 = vmul.f32 %v2717, %v2903
        %v2910 = vmul.f32 %v2718, %v2903
        %v2911 = vmul.f32 %v2719, %v2903
        %v2912 = vmul.f32 %v2720, %v2903
        %v2913 = vmul.f32 %v2721, %v2903
        %v2914 = vmul.f32 %v2722, %v2903
        %v2915 = vmul.f32 %v2723, %v2903
        %v2916 = vmul.f32 %v2724, %v2903
        %v2917 = vmul.f32 %v2725, %v2903
        %v2918 = vmul.f32 %v2726, %v2903
        %v2919 = vmul.f32 %v2727, %v2903
        %v2920 = vmul.f32 %v2728, %v2903
        %v2921 = vmul.f32 %v2729, %v2903
        %v2922 = vmul.f32 %v2730, %v2903
        %v2923 = vmul.f32 %v2731, %v2903
        %v2924 = vmul.f32 %v2732, %v2903
        %v2925 = vmul.f32 %v2733, %v2903
        %v2926 = vmul.f32 %v2734, %v2903
        %v2927 = vmul.f32 %v2735, %v2903
        %v2952 = vrot.slane %v2904, 2
        %v2953 = vrot.slane %v2905, 2
        %v2954 = vsel %vm502, %v2952, %v2953
        %v2955 = vrot.slane %v2906, 2
        %v2956 = vsel %vm502, %v2953, %v2955
        %v2957 = vrot.slane %v2907, 2
        %v2958 = vrot.slane %v2908, 2
        %v2959 = vsel %vm502, %v2957, %v2958
        %v2960 = vrot.slane %v2909, 2
        %v2961 = vsel %vm502, %v2958, %v2960
        %v2962 = vrot.slane %v2910, 2
        %v2963 = vrot.slane %v2911, 2
        %v2964 = vsel %vm502, %v2962, %v2963
        %v2965 = vrot.slane %v2912, 2
        %v2966 = vsel %vm502, %v2963, %v2965
        %v2967 = vrot.slane %v2913, 2
        %v2968 = vrot.slane %v2914, 2
        %v2969 = vsel %vm502, %v2967, %v2968
        %v2970 = vrot.slane %v2915, 2
        %v2971 = vsel %vm502, %v2968, %v2970
        %v2972 = vrot.slane %v2916, 2
        %v2973 = vrot.slane %v2917, 2
        %v2974 = vsel %vm502, %v2972, %v2973
        %v2975 = vrot.slane %v2918, 2
        %v2976 = vsel %vm502, %v2973, %v2975
        %v2977 = vrot.slane %v2919, 2
        %v2978 = vrot.slane %v2920, 2
        %v2979 = vsel %vm502, %v2977, %v2978
        %v2980 = vrot.slane %v2921, 2
        %v2981 = vsel %vm502, %v2978, %v2980
        %v2982 = vrot.slane %v2922, 2
        %v2983 = vrot.slane %v2923, 2
        %v2984 = vsel %vm502, %v2982, %v2983
        %v2985 = vrot.slane %v2924, 2
        %v2986 = vsel %vm502, %v2983, %v2985
        %v2987 = vrot.slane %v2925, 2
        %v2988 = vrot.slane %v2926, 2
        %v2989 = vsel %vm502, %v2987, %v2988
        %v2990 = vrot.slane %v2927, 2
        %v2991 = vsel %vm502, %v2988, %v2990
        %v3008 = vadd.f32 %v2883, %v2954
        %v3009 = vadd.f32 %v2884, %v2956
        %v3010 = vadd.f32 %v2885, %v2959
        %v3011 = vadd.f32 %v2886, %v2961
        %v3012 = vadd.f32 %v2887, %v2964
        %v3013 = vadd.f32 %v2888, %v2966
        %v3014 = vadd.f32 %v2889, %v2969
        %v3015 = vadd.f32 %v2890, %v2971
        %v3016 = vadd.f32 %v2891, %v2974
        %v3017 = vadd.f32 %v2892, %v2976
        %v3018 = vadd.f32 %v2893, %v2979
        %v3019 = vadd.f32 %v2894, %v2981
        %v3020 = vadd.f32 %v2895, %v2984
        %v3021 = vadd.f32 %v2896, %v2986
        %v3022 = vadd.f32 %v2897, %v2989
        %v3023 = vadd.f32 %v2898, %v2991
        %v3024 = vld [vmem:[%s2736 + $0x3] sm:$0x1]
        %v3025 = vlaneseq
        %v3026 = vshrl.u32 %v3025, 7
        %v3027 = vsub.s32 0, %v3026
        %v3028 = vrot.slane %v3024, %v3027
        %v3029 = vmul.f32 %v2712, %v3028
        %v3030 = vmul.f32 %v2713, %v3028
        %v3031 = vmul.f32 %v2714, %v3028
        %v3032 = vmul.f32 %v2715, %v3028
        %v3033 = vmul.f32 %v2716, %v3028
        %v3034 = vmul.f32 %v2717, %v3028
        %v3035 = vmul.f32 %v2718, %v3028
        %v3036 = vmul.f32 %v2719, %v3028
        %v3037 = vmul.f32 %v2720, %v3028
        %v3038 = vmul.f32 %v2721, %v3028
        %v3039 = vmul.f32 %v2722, %v3028
        %v3040 = vmul.f32 %v2723, %v3028
        %v3041 = vmul.f32 %v2724, %v3028
        %v3042 = vmul.f32 %v2725, %v3028
        %v3043 = vmul.f32 %v2726, %v3028
        %v3044 = vmul.f32 %v2727, %v3028
        %v3045 = vmul.f32 %v2728, %v3028
        %v3046 = vmul.f32 %v2729, %v3028
        %v3047 = vmul.f32 %v2730, %v3028
        %v3048 = vmul.f32 %v2731, %v3028
        %v3049 = vmul.f32 %v2732, %v3028
        %v3050 = vmul.f32 %v2733, %v3028
        %v3051 = vmul.f32 %v2734, %v3028
        %v3052 = vmul.f32 %v2735, %v3028
        %v3077 = vrot.slane %v3029, 3
        %v3078 = vrot.slane %v3030, 3
        %v3079 = vsel %vm628, %v3077, %v3078
        %v3080 = vrot.slane %v3031, 3
        %v3081 = vsel %vm628, %v3078, %v3080
        %v3082 = vrot.slane %v3032, 3
        %v3083 = vrot.slane %v3033, 3
        %v3084 = vsel %vm628, %v3082, %v3083
        %v3085 = vrot.slane %v3034, 3
        %v3086 = vsel %vm628, %v3083, %v3085
        %v3087 = vrot.slane %v3035, 3
        %v3088 = vrot.slane %v3036, 3
        %v3089 = vsel %vm628, %v3087, %v3088
        %v3090 = vrot.slane %v3037, 3
        %v3091 = vsel %vm628, %v3088, %v3090
        %v3092 = vrot.slane %v3038, 3
        %v3093 = vrot.slane %v3039, 3
        %v3094 = vsel %vm628, %v3092, %v3093
        %v3095 = vrot.slane %v3040, 3
        %v3096 = vsel %vm628, %v3093, %v3095
        %v3097 = vrot.slane %v3041, 3
        %v3098 = vrot.slane %v3042, 3
        %v3099 = vsel %vm628, %v3097, %v3098
        %v3100 = vrot.slane %v3043, 3
        %v3101 = vsel %vm628, %v3098, %v3100
        %v3102 = vrot.slane %v3044, 3
        %v3103 = vrot.slane %v3045, 3
        %v3104 = vsel %vm628, %v3102, %v3103
        %v3105 = vrot.slane %v3046, 3
        %v3106 = vsel %vm628, %v3103, %v3105
        %v3107 = vrot.slane %v3047, 3
        %v3108 = vrot.slane %v3048, 3
        %v3109 = vsel %vm628, %v3107, %v3108
        %v3110 = vrot.slane %v3049, 3
        %v3111 = vsel %vm628, %v3108, %v3110
        %v3112 = vrot.slane %v3050, 3
        %v3113 = vrot.slane %v3051, 3
        %v3114 = vsel %vm628, %v3112, %v3113
        %v3115 = vrot.slane %v3052, 3
        %v3116 = vsel %vm628, %v3113, %v3115
        %v3133 = vadd.f32 %v3008, %v3079
        %v3134 = vadd.f32 %v3009, %v3081
        %v3135 = vadd.f32 %v3010, %v3084
        %v3136 = vadd.f32 %v3011, %v3086
        %v3137 = vadd.f32 %v3012, %v3089
        %v3138 = vadd.f32 %v3013, %v3091
        %v3139 = vadd.f32 %v3014, %v3094
        %v3140 = vadd.f32 %v3015, %v3096
        %v3141 = vadd.f32 %v3016, %v3099
        %v3142 = vadd.f32 %v3017, %v3101
        %v3143 = vadd.f32 %v3018, %v3104
        %v3144 = vadd.f32 %v3019, %v3106
        %v3145 = vadd.f32 %v3020, %v3109
        %v3146 = vadd.f32 %v3021, %v3111
        %v3147 = vadd.f32 %v3022, %v3114
        %v3148 = vadd.f32 %v3023, %v3116
        %v3149 = vld [vmem:[%s2736 + $0x4] sm:$0x1]
        %v3150 = vlaneseq
        %v3151 = vshrl.u32 %v3150, 7
        %v3152 = vsub.s32 0, %v3151
        %v3153 = vrot.slane %v3149, %v3152
        %v3154 = vmul.f32 %v2712, %v3153
        %v3155 = vmul.f32 %v2713, %v3153
        %v3156 = vmul.f32 %v2714, %v3153
        %v3157 = vmul.f32 %v2715, %v3153
        %v3158 = vmul.f32 %v2716, %v3153
        %v3159 = vmul.f32 %v2717, %v3153
        %v3160 = vmul.f32 %v2718, %v3153
        %v3161 = vmul.f32 %v2719, %v3153
        %v3162 = vmul.f32 %v2720, %v3153
        %v3163 = vmul.f32 %v2721, %v3153
        %v3164 = vmul.f32 %v2722, %v3153
        %v3165 = vmul.f32 %v2723, %v3153
        %v3166 = vmul.f32 %v2724, %v3153
        %v3167 = vmul.f32 %v2725, %v3153
        %v3168 = vmul.f32 %v2726, %v3153
        %v3169 = vmul.f32 %v2727, %v3153
        %v3170 = vmul.f32 %v2728, %v3153
        %v3171 = vmul.f32 %v2729, %v3153
        %v3172 = vmul.f32 %v2730, %v3153
        %v3173 = vmul.f32 %v2731, %v3153
        %v3174 = vmul.f32 %v2732, %v3153
        %v3175 = vmul.f32 %v2733, %v3153
        %v3176 = vmul.f32 %v2734, %v3153
        %v3177 = vmul.f32 %v2735, %v3153
        %v3202 = vrot.slane %v3154, 4
        %v3203 = vrot.slane %v3155, 4
        %v3204 = vsel %vm754, %v3202, %v3203
        %v3205 = vrot.slane %v3156, 4
        %v3206 = vsel %vm754, %v3203, %v3205
        %v3207 = vrot.slane %v3157, 4
        %v3208 = vrot.slane %v3158, 4
        %v3209 = vsel %vm754, %v3207, %v3208
        %v3210 = vrot.slane %v3159, 4
        %v3211 = vsel %vm754, %v3208, %v3210
        %v3212 = vrot.slane %v3160, 4
        %v3213 = vrot.slane %v3161, 4
        %v3214 = vsel %vm754, %v3212, %v3213
        %v3215 = vrot.slane %v3162, 4
        %v3216 = vsel %vm754, %v3213, %v3215
        %v3217 = vrot.slane %v3163, 4
        %v3218 = vrot.slane %v3164, 4
        %v3219 = vsel %vm754, %v3217, %v3218
        %v3220 = vrot.slane %v3165, 4
        %v3221 = vsel %vm754, %v3218, %v3220
        %v3222 = vrot.slane %v3166, 4
        %v3223 = vrot.slane %v3167, 4
        %v3224 = vsel %vm754, %v3222, %v3223
        %v3225 = vrot.slane %v3168, 4
        %v3226 = vsel %vm754, %v3223, %v3225
        %v3227 = vrot.slane %v3169, 4
        %v3228 = vrot.slane %v3170, 4
        %v3229 = vsel %vm754, %v3227, %v3228
        %v3230 = vrot.slane %v3171, 4
        %v3231 = vsel %vm754, %v3228, %v3230
        %v3232 = vrot.slane %v3172, 4
        %v3233 = vrot.slane %v3173, 4
        %v3234 = vsel %vm754, %v3232, %v3233
        %v3235 = vrot.slane %v3174, 4
        %v3236 = vsel %vm754, %v3233, %v3235
        %v3237 = vrot.slane %v3175, 4
        %v3238 = vrot.slane %v3176, 4
        %v3239 = vsel %vm754, %v3237, %v3238
        %v3240 = vrot.slane %v3177, 4
        %v3241 = vsel %vm754, %v3238, %v3240
        %v3258 = vadd.f32 %v3133, %v3204
        %v3259 = vadd.f32 %v3134, %v3206
        %v3260 = vadd.f32 %v3135, %v3209
        %v3261 = vadd.f32 %v3136, %v3211
        %v3262 = vadd.f32 %v3137, %v3214
        %v3263 = vadd.f32 %v3138, %v3216
        %v3264 = vadd.f32 %v3139, %v3219
        %v3265 = vadd.f32 %v3140, %v3221
        %v3266 = vadd.f32 %v3141, %v3224
        %v3267 = vadd.f32 %v3142, %v3226
        %v3268 = vadd.f32 %v3143, %v3229
        %v3269 = vadd.f32 %v3144, %v3231
        %v3270 = vadd.f32 %v3145, %v3234
        %v3271 = vadd.f32 %v3146, %v3236
        %v3272 = vadd.f32 %v3147, %v3239
        %v3273 = vadd.f32 %v3148, %v3241
        %v3274 = vld [vmem:[%s2736 + $0x5] sm:$0x1]
        %v3275 = vlaneseq
        %v3276 = vshrl.u32 %v3275, 7
        %v3277 = vsub.s32 0, %v3276
        %v3278 = vrot.slane %v3274, %v3277
        %v3279 = vmul.f32 %v2712, %v3278
        %v3280 = vmul.f32 %v2713, %v3278
        %v3281 = vmul.f32 %v2714, %v3278
        %v3282 = vmul.f32 %v2715, %v3278
        %v3283 = vmul.f32 %v2716, %v3278
        %v3284 = vmul.f32 %v2717, %v3278
        %v3285 = vmul.f32 %v2718, %v3278
        %v3286 = vmul.f32 %v2719, %v3278
        %v3287 = vmul.f32 %v2720, %v3278
        %v3288 = vmul.f32 %v2721, %v3278
        %v3289 = vmul.f32 %v2722, %v3278
        %v3290 = vmul.f32 %v2723, %v3278
        %v3291 = vmul.f32 %v2724, %v3278
        %v3292 = vmul.f32 %v2725, %v3278
        %v3293 = vmul.f32 %v2726, %v3278
        %v3294 = vmul.f32 %v2727, %v3278
        %v3295 = vmul.f32 %v2728, %v3278
        %v3296 = vmul.f32 %v2729, %v3278
        %v3297 = vmul.f32 %v2730, %v3278
        %v3298 = vmul.f32 %v2731, %v3278
        %v3299 = vmul.f32 %v2732, %v3278
        %v3300 = vmul.f32 %v2733, %v3278
        %v3301 = vmul.f32 %v2734, %v3278
        %v3302 = vmul.f32 %v2735, %v3278
        %v3327 = vrot.slane %v3279, 5
        %v3328 = vrot.slane %v3280, 5
        %v3329 = vsel %vm880, %v3327, %v3328
        %v3330 = vrot.slane %v3281, 5
        %v3331 = vsel %vm880, %v3328, %v3330
        %v3332 = vrot.slane %v3282, 5
        %v3333 = vrot.slane %v3283, 5
        %v3334 = vsel %vm880, %v3332, %v3333
        %v3335 = vrot.slane %v3284, 5
        %v3336 = vsel %vm880, %v3333, %v3335
        %v3337 = vrot.slane %v3285, 5
        %v3338 = vrot.slane %v3286, 5
        %v3339 = vsel %vm880, %v3337, %v3338
        %v3340 = vrot.slane %v3287, 5
        %v3341 = vsel %vm880, %v3338, %v3340
        %v3342 = vrot.slane %v3288, 5
        %v3343 = vrot.slane %v3289, 5
        %v3344 = vsel %vm880, %v3342, %v3343
        %v3345 = vrot.slane %v3290, 5
        %v3346 = vsel %vm880, %v3343, %v3345
        %v3347 = vrot.slane %v3291, 5
        %v3348 = vrot.slane %v3292, 5
        %v3349 = vsel %vm880, %v3347, %v3348
        %v3350 = vrot.slane %v3293, 5
        %v3351 = vsel %vm880, %v3348, %v3350
        %v3352 = vrot.slane %v3294, 5
        %v3353 = vrot.slane %v3295, 5
        %v3354 = vsel %vm880, %v3352, %v3353
        %v3355 = vrot.slane %v3296, 5
        %v3356 = vsel %vm880, %v3353, %v3355
        %v3357 = vrot.slane %v3297, 5
        %v3358 = vrot.slane %v3298, 5
        %v3359 = vsel %vm880, %v3357, %v3358
        %v3360 = vrot.slane %v3299, 5
        %v3361 = vsel %vm880, %v3358, %v3360
        %v3362 = vrot.slane %v3300, 5
        %v3363 = vrot.slane %v3301, 5
        %v3364 = vsel %vm880, %v3362, %v3363
        %v3365 = vrot.slane %v3302, 5
        %v3366 = vsel %vm880, %v3363, %v3365
        %v3383 = vadd.f32 %v3258, %v3329
        %v3384 = vadd.f32 %v3259, %v3331
        %v3385 = vadd.f32 %v3260, %v3334
        %v3386 = vadd.f32 %v3261, %v3336
        %v3387 = vadd.f32 %v3262, %v3339
        %v3388 = vadd.f32 %v3263, %v3341
        %v3389 = vadd.f32 %v3264, %v3344
        %v3390 = vadd.f32 %v3265, %v3346
        %v3391 = vadd.f32 %v3266, %v3349
        %v3392 = vadd.f32 %v3267, %v3351
        %v3393 = vadd.f32 %v3268, %v3354
        %v3394 = vadd.f32 %v3269, %v3356
        %v3395 = vadd.f32 %v3270, %v3359
        %v3396 = vadd.f32 %v3271, %v3361
        %v3397 = vadd.f32 %v3272, %v3364
        %v3398 = vadd.f32 %v3273, %v3366
        %v3399 = vld [vmem:[%s2736 + $0x6] sm:$0x1]
        %v3400 = vlaneseq
        %v3401 = vshrl.u32 %v3400, 7
        %v3402 = vsub.s32 0, %v3401
        %v3403 = vrot.slane %v3399, %v3402
        %v3404 = vmul.f32 %v2712, %v3403
        %v3405 = vmul.f32 %v2713, %v3403
        %v3406 = vmul.f32 %v2714, %v3403
        %v3407 = vmul.f32 %v2715, %v3403
        %v3408 = vmul.f32 %v2716, %v3403
        %v3409 = vmul.f32 %v2717, %v3403
        %v3410 = vmul.f32 %v2718, %v3403
        %v3411 = vmul.f32 %v2719, %v3403
        %v3412 = vmul.f32 %v2720, %v3403
        %v3413 = vmul.f32 %v2721, %v3403
        %v3414 = vmul.f32 %v2722, %v3403
        %v3415 = vmul.f32 %v2723, %v3403
        %v3416 = vmul.f32 %v2724, %v3403
        %v3417 = vmul.f32 %v2725, %v3403
        %v3418 = vmul.f32 %v2726, %v3403
        %v3419 = vmul.f32 %v2727, %v3403
        %v3420 = vmul.f32 %v2728, %v3403
        %v3421 = vmul.f32 %v2729, %v3403
        %v3422 = vmul.f32 %v2730, %v3403
        %v3423 = vmul.f32 %v2731, %v3403
        %v3424 = vmul.f32 %v2732, %v3403
        %v3425 = vmul.f32 %v2733, %v3403
        %v3426 = vmul.f32 %v2734, %v3403
        %v3427 = vmul.f32 %v2735, %v3403
        %v3452 = vrot.slane %v3404, 6
        %v3453 = vrot.slane %v3405, 6
        %v3454 = vsel %vm1006, %v3452, %v3453
        %v3455 = vrot.slane %v3406, 6
        %v3456 = vsel %vm1006, %v3453, %v3455
        %v3457 = vrot.slane %v3407, 6
        %v3458 = vrot.slane %v3408, 6
        %v3459 = vsel %vm1006, %v3457, %v3458
        %v3460 = vrot.slane %v3409, 6
        %v3461 = vsel %vm1006, %v3458, %v3460
        %v3462 = vrot.slane %v3410, 6
        %v3463 = vrot.slane %v3411, 6
        %v3464 = vsel %vm1006, %v3462, %v3463
        %v3465 = vrot.slane %v3412, 6
        %v3466 = vsel %vm1006, %v3463, %v3465
        %v3467 = vrot.slane %v3413, 6
        %v3468 = vrot.slane %v3414, 6
        %v3469 = vsel %vm1006, %v3467, %v3468
        %v3470 = vrot.slane %v3415, 6
        %v3471 = vsel %vm1006, %v3468, %v3470
        %v3472 = vrot.slane %v3416, 6
        %v3473 = vrot.slane %v3417, 6
        %v3474 = vsel %vm1006, %v3472, %v3473
        %v3475 = vrot.slane %v3418, 6
        %v3476 = vsel %vm1006, %v3473, %v3475
        %v3477 = vrot.slane %v3419, 6
        %v3478 = vrot.slane %v3420, 6
        %v3479 = vsel %vm1006, %v3477, %v3478
        %v3480 = vrot.slane %v3421, 6
        %v3481 = vsel %vm1006, %v3478, %v3480
        %v3482 = vrot.slane %v3422, 6
        %v3483 = vrot.slane %v3423, 6
        %v3484 = vsel %vm1006, %v3482, %v3483
        %v3485 = vrot.slane %v3424, 6
        %v3486 = vsel %vm1006, %v3483, %v3485
        %v3487 = vrot.slane %v3425, 6
        %v3488 = vrot.slane %v3426, 6
        %v3489 = vsel %vm1006, %v3487, %v3488
        %v3490 = vrot.slane %v3427, 6
        %v3491 = vsel %vm1006, %v3488, %v3490
        %v3508 = vadd.f32 %v3383, %v3454
        %v3509 = vadd.f32 %v3384, %v3456
        %v3510 = vadd.f32 %v3385, %v3459
        %v3511 = vadd.f32 %v3386, %v3461
        %v3512 = vadd.f32 %v3387, %v3464
        %v3513 = vadd.f32 %v3388, %v3466
        %v3514 = vadd.f32 %v3389, %v3469
        %v3515 = vadd.f32 %v3390, %v3471
        %v3516 = vadd.f32 %v3391, %v3474
        %v3517 = vadd.f32 %v3392, %v3476
        %v3518 = vadd.f32 %v3393, %v3479
        %v3519 = vadd.f32 %v3394, %v3481
        %v3520 = vadd.f32 %v3395, %v3484
        %v3521 = vadd.f32 %v3396, %v3486
        %v3522 = vadd.f32 %v3397, %v3489
        %v3523 = vadd.f32 %v3398, %v3491
        %s3524 = sadd.s32 %s252, 4
        %s3525 = smul.u32 %s3524, 24
        %s3526 = scalar_lea.vmem %s218, %s3525 [#allocation2]
        %v3527 = vld [vmem:[%s3526] sm:$0xff]
        %v3528 = vld [vmem:[%s3526 + $0x8] sm:$0xff]
        %v3529 = vld [vmem:[%s3526 + $0x10] sm:$0xff]
        %v3530 = vld [vmem:[%s3526 + $0x18] sm:$0xff]
        %v3531 = vld [vmem:[%s3526 + $0x20] sm:$0xff]
        %v3532 = vld [vmem:[%s3526 + $0x28] sm:$0xff]
        %v3533 = vld [vmem:[%s3526 + $0x30] sm:$0xff]
        %v3534 = vld [vmem:[%s3526 + $0x38] sm:$0xff]
        %v3535 = vld [vmem:[%s3526 + $0x40] sm:$0xff]
        %v3536 = vld [vmem:[%s3526 + $0x48] sm:$0xff]
        %v3537 = vld [vmem:[%s3526 + $0x50] sm:$0xff]
        %v3538 = vld [vmem:[%s3526 + $0x58] sm:$0xff]
        %v3539 = vld [vmem:[%s3526 + $0x60] sm:$0xff]
        %v3540 = vld [vmem:[%s3526 + $0x68] sm:$0xff]
        %v3541 = vld [vmem:[%s3526 + $0x70] sm:$0xff]
        %v3542 = vld [vmem:[%s3526 + $0x78] sm:$0xff]
        %v3543 = vld [vmem:[%s3526 + $0x80] sm:$0xff]
        %v3544 = vld [vmem:[%s3526 + $0x88] sm:$0xff]
        %v3545 = vld [vmem:[%s3526 + $0x90] sm:$0xff]
        %v3546 = vld [vmem:[%s3526 + $0x98] sm:$0xff]
        %v3547 = vld [vmem:[%s3526 + $0xa0] sm:$0xff]
        %v3548 = vld [vmem:[%s3526 + $0xa8] sm:$0xff]
        %v3549 = vld [vmem:[%s3526 + $0xb0] sm:$0xff]
        %v3550 = vld [vmem:[%s3526 + $0xb8] sm:$0xff]
        %s3551 = scalar_lea.vmem [#allocation5], 32
        %v3552 = vld [vmem:[%s3551] sm:$0x1]
        %v3553 = vlaneseq
        %v3554 = vshrl.u32 %v3553, 7
        %v3555 = vsub.s32 0, %v3554
        %v3556 = vrot.slane %v3552, %v3555
        %v3557 = vmul.f32 %v3527, %v3556
        %v3558 = vmul.f32 %v3528, %v3556
        %v3559 = vmul.f32 %v3530, %v3556
        %v3560 = vmul.f32 %v3531, %v3556
        %v3561 = vmul.f32 %v3533, %v3556
        %v3562 = vmul.f32 %v3534, %v3556
        %v3563 = vmul.f32 %v3536, %v3556
        %v3564 = vmul.f32 %v3537, %v3556
        %v3565 = vmul.f32 %v3539, %v3556
        %v3566 = vmul.f32 %v3540, %v3556
        %v3567 = vmul.f32 %v3542, %v3556
        %v3568 = vmul.f32 %v3543, %v3556
        %v3569 = vmul.f32 %v3545, %v3556
        %v3570 = vmul.f32 %v3546, %v3556
        %v3571 = vmul.f32 %v3548, %v3556
        %v3572 = vmul.f32 %v3549, %v3556
        %v3573 = vadd.f32 %v3508, %v3557
        %v3574 = vadd.f32 %v3509, %v3558
        %v3575 = vadd.f32 %v3510, %v3559
        %v3576 = vadd.f32 %v3511, %v3560
        %v3577 = vadd.f32 %v3512, %v3561
        %v3578 = vadd.f32 %v3513, %v3562
        %v3579 = vadd.f32 %v3514, %v3563
        %v3580 = vadd.f32 %v3515, %v3564
        %v3581 = vadd.f32 %v3516, %v3565
        %v3582 = vadd.f32 %v3517, %v3566
        %v3583 = vadd.f32 %v3518, %v3567
        %v3584 = vadd.f32 %v3519, %v3568
        %v3585 = vadd.f32 %v3520, %v3569
        %v3586 = vadd.f32 %v3521, %v3570
        %v3587 = vadd.f32 %v3522, %v3571
        %v3588 = vadd.f32 %v3523, %v3572
        %v3589 = vld [vmem:[%s3551 + $0x1] sm:$0x1]
        %v3590 = vlaneseq
        %v3591 = vshrl.u32 %v3590, 7
        %v3592 = vsub.s32 0, %v3591
        %v3593 = vrot.slane %v3589, %v3592
        %v3594 = vmul.f32 %v3527, %v3593
        %v3595 = vmul.f32 %v3528, %v3593
        %v3596 = vmul.f32 %v3529, %v3593
        %v3597 = vmul.f32 %v3530, %v3593
        %v3598 = vmul.f32 %v3531, %v3593
        %v3599 = vmul.f32 %v3532, %v3593
        %v3600 = vmul.f32 %v3533, %v3593
        %v3601 = vmul.f32 %v3534, %v3593
        %v3602 = vmul.f32 %v3535, %v3593
        %v3603 = vmul.f32 %v3536, %v3593
        %v3604 = vmul.f32 %v3537, %v3593
        %v3605 = vmul.f32 %v3538, %v3593
        %v3606 = vmul.f32 %v3539, %v3593
        %v3607 = vmul.f32 %v3540, %v3593
        %v3608 = vmul.f32 %v3541, %v3593
        %v3609 = vmul.f32 %v3542, %v3593
        %v3610 = vmul.f32 %v3543, %v3593
        %v3611 = vmul.f32 %v3544, %v3593
        %v3612 = vmul.f32 %v3545, %v3593
        %v3613 = vmul.f32 %v3546, %v3593
        %v3614 = vmul.f32 %v3547, %v3593
        %v3615 = vmul.f32 %v3548, %v3593
        %v3616 = vmul.f32 %v3549, %v3593
        %v3617 = vmul.f32 %v3550, %v3593
        %v3642 = vrot.slane %v3594, 1
        %v3643 = vrot.slane %v3595, 1
        %v3644 = vsel %vm376, %v3642, %v3643
        %v3645 = vrot.slane %v3596, 1
        %v3646 = vsel %vm376, %v3643, %v3645
        %v3647 = vrot.slane %v3597, 1
        %v3648 = vrot.slane %v3598, 1
        %v3649 = vsel %vm376, %v3647, %v3648
        %v3650 = vrot.slane %v3599, 1
        %v3651 = vsel %vm376, %v3648, %v3650
        %v3652 = vrot.slane %v3600, 1
        %v3653 = vrot.slane %v3601, 1
        %v3654 = vsel %vm376, %v3652, %v3653
        %v3655 = vrot.slane %v3602, 1
        %v3656 = vsel %vm376, %v3653, %v3655
        %v3657 = vrot.slane %v3603, 1
        %v3658 = vrot.slane %v3604, 1
        %v3659 = vsel %vm376, %v3657, %v3658
        %v3660 = vrot.slane %v3605, 1
        %v3661 = vsel %vm376, %v3658, %v3660
        %v3662 = vrot.slane %v3606, 1
        %v3663 = vrot.slane %v3607, 1
        %v3664 = vsel %vm376, %v3662, %v3663
        %v3665 = vrot.slane %v3608, 1
        %v3666 = vsel %vm376, %v3663, %v3665
        %v3667 = vrot.slane %v3609, 1
        %v3668 = vrot.slane %v3610, 1
        %v3669 = vsel %vm376, %v3667, %v3668
        %v3670 = vrot.slane %v3611, 1
        %v3671 = vsel %vm376, %v3668, %v3670
        %v3672 = vrot.slane %v3612, 1
        %v3673 = vrot.slane %v3613, 1
        %v3674 = vsel %vm376, %v3672, %v3673
        %v3675 = vrot.slane %v3614, 1
        %v3676 = vsel %vm376, %v3673, %v3675
        %v3677 = vrot.slane %v3615, 1
        %v3678 = vrot.slane %v3616, 1
        %v3679 = vsel %vm376, %v3677, %v3678
        %v3680 = vrot.slane %v3617, 1
        %v3681 = vsel %vm376, %v3678, %v3680
        %v3698 = vadd.f32 %v3573, %v3644
        %v3699 = vadd.f32 %v3574, %v3646
        %v3700 = vadd.f32 %v3575, %v3649
        %v3701 = vadd.f32 %v3576, %v3651
        %v3702 = vadd.f32 %v3577, %v3654
        %v3703 = vadd.f32 %v3578, %v3656
        %v3704 = vadd.f32 %v3579, %v3659
        %v3705 = vadd.f32 %v3580, %v3661
        %v3706 = vadd.f32 %v3581, %v3664
        %v3707 = vadd.f32 %v3582, %v3666
        %v3708 = vadd.f32 %v3583, %v3669
        %v3709 = vadd.f32 %v3584, %v3671
        %v3710 = vadd.f32 %v3585, %v3674
        %v3711 = vadd.f32 %v3586, %v3676
        %v3712 = vadd.f32 %v3587, %v3679
        %v3713 = vadd.f32 %v3588, %v3681
        %v3714 = vld [vmem:[%s3551 + $0x2] sm:$0x1]
        %v3715 = vlaneseq
        %v3716 = vshrl.u32 %v3715, 7
        %v3717 = vsub.s32 0, %v3716
        %v3718 = vrot.slane %v3714, %v3717
        %v3719 = vmul.f32 %v3527, %v3718
        %v3720 = vmul.f32 %v3528, %v3718
        %v3721 = vmul.f32 %v3529, %v3718
        %v3722 = vmul.f32 %v3530, %v3718
        %v3723 = vmul.f32 %v3531, %v3718
        %v3724 = vmul.f32 %v3532, %v3718
        %v3725 = vmul.f32 %v3533, %v3718
        %v3726 = vmul.f32 %v3534, %v3718
        %v3727 = vmul.f32 %v3535, %v3718
        %v3728 = vmul.f32 %v3536, %v3718
        %v3729 = vmul.f32 %v3537, %v3718
        %v3730 = vmul.f32 %v3538, %v3718
        %v3731 = vmul.f32 %v3539, %v3718
        %v3732 = vmul.f32 %v3540, %v3718
        %v3733 = vmul.f32 %v3541, %v3718
        %v3734 = vmul.f32 %v3542, %v3718
        %v3735 = vmul.f32 %v3543, %v3718
        %v3736 = vmul.f32 %v3544, %v3718
        %v3737 = vmul.f32 %v3545, %v3718
        %v3738 = vmul.f32 %v3546, %v3718
        %v3739 = vmul.f32 %v3547, %v3718
        %v3740 = vmul.f32 %v3548, %v3718
        %v3741 = vmul.f32 %v3549, %v3718
        %v3742 = vmul.f32 %v3550, %v3718
        %v3767 = vrot.slane %v3719, 2
        %v3768 = vrot.slane %v3720, 2
        %v3769 = vsel %vm502, %v3767, %v3768
        %v3770 = vrot.slane %v3721, 2
        %v3771 = vsel %vm502, %v3768, %v3770
        %v3772 = vrot.slane %v3722, 2
        %v3773 = vrot.slane %v3723, 2
        %v3774 = vsel %vm502, %v3772, %v3773
        %v3775 = vrot.slane %v3724, 2
        %v3776 = vsel %vm502, %v3773, %v3775
        %v3777 = vrot.slane %v3725, 2
        %v3778 = vrot.slane %v3726, 2
        %v3779 = vsel %vm502, %v3777, %v3778
        %v3780 = vrot.slane %v3727, 2
        %v3781 = vsel %vm502, %v3778, %v3780
        %v3782 = vrot.slane %v3728, 2
        %v3783 = vrot.slane %v3729, 2
        %v3784 = vsel %vm502, %v3782, %v3783
        %v3785 = vrot.slane %v3730, 2
        %v3786 = vsel %vm502, %v3783, %v3785
        %v3787 = vrot.slane %v3731, 2
        %v3788 = vrot.slane %v3732, 2
        %v3789 = vsel %vm502, %v3787, %v3788
        %v3790 = vrot.slane %v3733, 2
        %v3791 = vsel %vm502, %v3788, %v3790
        %v3792 = vrot.slane %v3734, 2
        %v3793 = vrot.slane %v3735, 2
        %v3794 = vsel %vm502, %v3792, %v3793
        %v3795 = vrot.slane %v3736, 2
        %v3796 = vsel %vm502, %v3793, %v3795
        %v3797 = vrot.slane %v3737, 2
        %v3798 = vrot.slane %v3738, 2
        %v3799 = vsel %vm502, %v3797, %v3798
        %v3800 = vrot.slane %v3739, 2
        %v3801 = vsel %vm502, %v3798, %v3800
        %v3802 = vrot.slane %v3740, 2
        %v3803 = vrot.slane %v3741, 2
        %v3804 = vsel %vm502, %v3802, %v3803
        %v3805 = vrot.slane %v3742, 2
        %v3806 = vsel %vm502, %v3803, %v3805
        %v3823 = vadd.f32 %v3698, %v3769
        %v3824 = vadd.f32 %v3699, %v3771
        %v3825 = vadd.f32 %v3700, %v3774
        %v3826 = vadd.f32 %v3701, %v3776
        %v3827 = vadd.f32 %v3702, %v3779
        %v3828 = vadd.f32 %v3703, %v3781
        %v3829 = vadd.f32 %v3704, %v3784
        %v3830 = vadd.f32 %v3705, %v3786
        %v3831 = vadd.f32 %v3706, %v3789
        %v3832 = vadd.f32 %v3707, %v3791
        %v3833 = vadd.f32 %v3708, %v3794
        %v3834 = vadd.f32 %v3709, %v3796
        %v3835 = vadd.f32 %v3710, %v3799
        %v3836 = vadd.f32 %v3711, %v3801
        %v3837 = vadd.f32 %v3712, %v3804
        %v3838 = vadd.f32 %v3713, %v3806
        %v3839 = vld [vmem:[%s3551 + $0x3] sm:$0x1]
        %v3840 = vlaneseq
        %v3841 = vshrl.u32 %v3840, 7
        %v3842 = vsub.s32 0, %v3841
        %v3843 = vrot.slane %v3839, %v3842
        %v3844 = vmul.f32 %v3527, %v3843
        %v3845 = vmul.f32 %v3528, %v3843
        %v3846 = vmul.f32 %v3529, %v3843
        %v3847 = vmul.f32 %v3530, %v3843
        %v3848 = vmul.f32 %v3531, %v3843
        %v3849 = vmul.f32 %v3532, %v3843
        %v3850 = vmul.f32 %v3533, %v3843
        %v3851 = vmul.f32 %v3534, %v3843
        %v3852 = vmul.f32 %v3535, %v3843
        %v3853 = vmul.f32 %v3536, %v3843
        %v3854 = vmul.f32 %v3537, %v3843
        %v3855 = vmul.f32 %v3538, %v3843
        %v3856 = vmul.f32 %v3539, %v3843
        %v3857 = vmul.f32 %v3540, %v3843
        %v3858 = vmul.f32 %v3541, %v3843
        %v3859 = vmul.f32 %v3542, %v3843
        %v3860 = vmul.f32 %v3543, %v3843
        %v3861 = vmul.f32 %v3544, %v3843
        %v3862 = vmul.f32 %v3545, %v3843
        %v3863 = vmul.f32 %v3546, %v3843
        %v3864 = vmul.f32 %v3547, %v3843
        %v3865 = vmul.f32 %v3548, %v3843
        %v3866 = vmul.f32 %v3549, %v3843
        %v3867 = vmul.f32 %v3550, %v3843
        %v3892 = vrot.slane %v3844, 3
        %v3893 = vrot.slane %v3845, 3
        %v3894 = vsel %vm628, %v3892, %v3893
        %v3895 = vrot.slane %v3846, 3
        %v3896 = vsel %vm628, %v3893, %v3895
        %v3897 = vrot.slane %v3847, 3
        %v3898 = vrot.slane %v3848, 3
        %v3899 = vsel %vm628, %v3897, %v3898
        %v3900 = vrot.slane %v3849, 3
        %v3901 = vsel %vm628, %v3898, %v3900
        %v3902 = vrot.slane %v3850, 3
        %v3903 = vrot.slane %v3851, 3
        %v3904 = vsel %vm628, %v3902, %v3903
        %v3905 = vrot.slane %v3852, 3
        %v3906 = vsel %vm628, %v3903, %v3905
        %v3907 = vrot.slane %v3853, 3
        %v3908 = vrot.slane %v3854, 3
        %v3909 = vsel %vm628, %v3907, %v3908
        %v3910 = vrot.slane %v3855, 3
        %v3911 = vsel %vm628, %v3908, %v3910
        %v3912 = vrot.slane %v3856, 3
        %v3913 = vrot.slane %v3857, 3
        %v3914 = vsel %vm628, %v3912, %v3913
        %v3915 = vrot.slane %v3858, 3
        %v3916 = vsel %vm628, %v3913, %v3915
        %v3917 = vrot.slane %v3859, 3
        %v3918 = vrot.slane %v3860, 3
        %v3919 = vsel %vm628, %v3917, %v3918
        %v3920 = vrot.slane %v3861, 3
        %v3921 = vsel %vm628, %v3918, %v3920
        %v3922 = vrot.slane %v3862, 3
        %v3923 = vrot.slane %v3863, 3
        %v3924 = vsel %vm628, %v3922, %v3923
        %v3925 = vrot.slane %v3864, 3
        %v3926 = vsel %vm628, %v3923, %v3925
        %v3927 = vrot.slane %v3865, 3
        %v3928 = vrot.slane %v3866, 3
        %v3929 = vsel %vm628, %v3927, %v3928
        %v3930 = vrot.slane %v3867, 3
        %v3931 = vsel %vm628, %v3928, %v3930
        %v3948 = vadd.f32 %v3823, %v3894
        %v3949 = vadd.f32 %v3824, %v3896
        %v3950 = vadd.f32 %v3825, %v3899
        %v3951 = vadd.f32 %v3826, %v3901
        %v3952 = vadd.f32 %v3827, %v3904
        %v3953 = vadd.f32 %v3828, %v3906
        %v3954 = vadd.f32 %v3829, %v3909
        %v3955 = vadd.f32 %v3830, %v3911
        %v3956 = vadd.f32 %v3831, %v3914
        %v3957 = vadd.f32 %v3832, %v3916
        %v3958 = vadd.f32 %v3833, %v3919
        %v3959 = vadd.f32 %v3834, %v3921
        %v3960 = vadd.f32 %v3835, %v3924
        %v3961 = vadd.f32 %v3836, %v3926
        %v3962 = vadd.f32 %v3837, %v3929
        %v3963 = vadd.f32 %v3838, %v3931
        %v3964 = vld [vmem:[%s3551 + $0x4] sm:$0x1]
        %v3965 = vlaneseq
        %v3966 = vshrl.u32 %v3965, 7
        %v3967 = vsub.s32 0, %v3966
        %v3968 = vrot.slane %v3964, %v3967
        %v3969 = vmul.f32 %v3527, %v3968
        %v3970 = vmul.f32 %v3528, %v3968
        %v3971 = vmul.f32 %v3529, %v3968
        %v3972 = vmul.f32 %v3530, %v3968
        %v3973 = vmul.f32 %v3531, %v3968
        %v3974 = vmul.f32 %v3532, %v3968
        %v3975 = vmul.f32 %v3533, %v3968
        %v3976 = vmul.f32 %v3534, %v3968
        %v3977 = vmul.f32 %v3535, %v3968
        %v3978 = vmul.f32 %v3536, %v3968
        %v3979 = vmul.f32 %v3537, %v3968
        %v3980 = vmul.f32 %v3538, %v3968
        %v3981 = vmul.f32 %v3539, %v3968
        %v3982 = vmul.f32 %v3540, %v3968
        %v3983 = vmul.f32 %v3541, %v3968
        %v3984 = vmul.f32 %v3542, %v3968
        %v3985 = vmul.f32 %v3543, %v3968
        %v3986 = vmul.f32 %v3544, %v3968
        %v3987 = vmul.f32 %v3545, %v3968
        %v3988 = vmul.f32 %v3546, %v3968
        %v3989 = vmul.f32 %v3547, %v3968
        %v3990 = vmul.f32 %v3548, %v3968
        %v3991 = vmul.f32 %v3549, %v3968
        %v3992 = vmul.f32 %v3550, %v3968
        %v4017 = vrot.slane %v3969, 4
        %v4018 = vrot.slane %v3970, 4
        %v4019 = vsel %vm754, %v4017, %v4018
        %v4020 = vrot.slane %v3971, 4
        %v4021 = vsel %vm754, %v4018, %v4020
        %v4022 = vrot.slane %v3972, 4
        %v4023 = vrot.slane %v3973, 4
        %v4024 = vsel %vm754, %v4022, %v4023
        %v4025 = vrot.slane %v3974, 4
        %v4026 = vsel %vm754, %v4023, %v4025
        %v4027 = vrot.slane %v3975, 4
        %v4028 = vrot.slane %v3976, 4
        %v4029 = vsel %vm754, %v4027, %v4028
        %v4030 = vrot.slane %v3977, 4
        %v4031 = vsel %vm754, %v4028, %v4030
        %v4032 = vrot.slane %v3978, 4
        %v4033 = vrot.slane %v3979, 4
        %v4034 = vsel %vm754, %v4032, %v4033
        %v4035 = vrot.slane %v3980, 4
        %v4036 = vsel %vm754, %v4033, %v4035
        %v4037 = vrot.slane %v3981, 4
        %v4038 = vrot.slane %v3982, 4
        %v4039 = vsel %vm754, %v4037, %v4038
        %v4040 = vrot.slane %v3983, 4
        %v4041 = vsel %vm754, %v4038, %v4040
        %v4042 = vrot.slane %v3984, 4
        %v4043 = vrot.slane %v3985, 4
        %v4044 = vsel %vm754, %v4042, %v4043
        %v4045 = vrot.slane %v3986, 4
        %v4046 = vsel %vm754, %v4043, %v4045
        %v4047 = vrot.slane %v3987, 4
        %v4048 = vrot.slane %v3988, 4
        %v4049 = vsel %vm754, %v4047, %v4048
        %v4050 = vrot.slane %v3989, 4
        %v4051 = vsel %vm754, %v4048, %v4050
        %v4052 = vrot.slane %v3990, 4
        %v4053 = vrot.slane %v3991, 4
        %v4054 = vsel %vm754, %v4052, %v4053
        %v4055 = vrot.slane %v3992, 4
        %v4056 = vsel %vm754, %v4053, %v4055
        %v4073 = vadd.f32 %v3948, %v4019
        %v4074 = vadd.f32 %v3949, %v4021
        %v4075 = vadd.f32 %v3950, %v4024
        %v4076 = vadd.f32 %v3951, %v4026
        %v4077 = vadd.f32 %v3952, %v4029
        %v4078 = vadd.f32 %v3953, %v4031
        %v4079 = vadd.f32 %v3954, %v4034
        %v4080 = vadd.f32 %v3955, %v4036
        %v4081 = vadd.f32 %v3956, %v4039
        %v4082 = vadd.f32 %v3957, %v4041
        %v4083 = vadd.f32 %v3958, %v4044
        %v4084 = vadd.f32 %v3959, %v4046
        %v4085 = vadd.f32 %v3960, %v4049
        %v4086 = vadd.f32 %v3961, %v4051
        %v4087 = vadd.f32 %v3962, %v4054
        %v4088 = vadd.f32 %v3963, %v4056
        %v4089 = vld [vmem:[%s3551 + $0x5] sm:$0x1]
        %v4090 = vlaneseq
        %v4091 = vshrl.u32 %v4090, 7
        %v4092 = vsub.s32 0, %v4091
        %v4093 = vrot.slane %v4089, %v4092
        %v4094 = vmul.f32 %v3527, %v4093
        %v4095 = vmul.f32 %v3528, %v4093
        %v4096 = vmul.f32 %v3529, %v4093
        %v4097 = vmul.f32 %v3530, %v4093
        %v4098 = vmul.f32 %v3531, %v4093
        %v4099 = vmul.f32 %v3532, %v4093
        %v4100 = vmul.f32 %v3533, %v4093
        %v4101 = vmul.f32 %v3534, %v4093
        %v4102 = vmul.f32 %v3535, %v4093
        %v4103 = vmul.f32 %v3536, %v4093
        %v4104 = vmul.f32 %v3537, %v4093
        %v4105 = vmul.f32 %v3538, %v4093
        %v4106 = vmul.f32 %v3539, %v4093
        %v4107 = vmul.f32 %v3540, %v4093
        %v4108 = vmul.f32 %v3541, %v4093
        %v4109 = vmul.f32 %v3542, %v4093
        %v4110 = vmul.f32 %v3543, %v4093
        %v4111 = vmul.f32 %v3544, %v4093
        %v4112 = vmul.f32 %v3545, %v4093
        %v4113 = vmul.f32 %v3546, %v4093
        %v4114 = vmul.f32 %v3547, %v4093
        %v4115 = vmul.f32 %v3548, %v4093
        %v4116 = vmul.f32 %v3549, %v4093
        %v4117 = vmul.f32 %v3550, %v4093
        %v4142 = vrot.slane %v4094, 5
        %v4143 = vrot.slane %v4095, 5
        %v4144 = vsel %vm880, %v4142, %v4143
        %v4145 = vrot.slane %v4096, 5
        %v4146 = vsel %vm880, %v4143, %v4145
        %v4147 = vrot.slane %v4097, 5
        %v4148 = vrot.slane %v4098, 5
        %v4149 = vsel %vm880, %v4147, %v4148
        %v4150 = vrot.slane %v4099, 5
        %v4151 = vsel %vm880, %v4148, %v4150
        %v4152 = vrot.slane %v4100, 5
        %v4153 = vrot.slane %v4101, 5
        %v4154 = vsel %vm880, %v4152, %v4153
        %v4155 = vrot.slane %v4102, 5
        %v4156 = vsel %vm880, %v4153, %v4155
        %v4157 = vrot.slane %v4103, 5
        %v4158 = vrot.slane %v4104, 5
        %v4159 = vsel %vm880, %v4157, %v4158
        %v4160 = vrot.slane %v4105, 5
        %v4161 = vsel %vm880, %v4158, %v4160
        %v4162 = vrot.slane %v4106, 5
        %v4163 = vrot.slane %v4107, 5
        %v4164 = vsel %vm880, %v4162, %v4163
        %v4165 = vrot.slane %v4108, 5
        %v4166 = vsel %vm880, %v4163, %v4165
        %v4167 = vrot.slane %v4109, 5
        %v4168 = vrot.slane %v4110, 5
        %v4169 = vsel %vm880, %v4167, %v4168
        %v4170 = vrot.slane %v4111, 5
        %v4171 = vsel %vm880, %v4168, %v4170
        %v4172 = vrot.slane %v4112, 5
        %v4173 = vrot.slane %v4113, 5
        %v4174 = vsel %vm880, %v4172, %v4173
        %v4175 = vrot.slane %v4114, 5
        %v4176 = vsel %vm880, %v4173, %v4175
        %v4177 = vrot.slane %v4115, 5
        %v4178 = vrot.slane %v4116, 5
        %v4179 = vsel %vm880, %v4177, %v4178
        %v4180 = vrot.slane %v4117, 5
        %v4181 = vsel %vm880, %v4178, %v4180
        %v4198 = vadd.f32 %v4073, %v4144
        %v4199 = vadd.f32 %v4074, %v4146
        %v4200 = vadd.f32 %v4075, %v4149
        %v4201 = vadd.f32 %v4076, %v4151
        %v4202 = vadd.f32 %v4077, %v4154
        %v4203 = vadd.f32 %v4078, %v4156
        %v4204 = vadd.f32 %v4079, %v4159
        %v4205 = vadd.f32 %v4080, %v4161
        %v4206 = vadd.f32 %v4081, %v4164
        %v4207 = vadd.f32 %v4082, %v4166
        %v4208 = vadd.f32 %v4083, %v4169
        %v4209 = vadd.f32 %v4084, %v4171
        %v4210 = vadd.f32 %v4085, %v4174
        %v4211 = vadd.f32 %v4086, %v4176
        %v4212 = vadd.f32 %v4087, %v4179
        %v4213 = vadd.f32 %v4088, %v4181
        %v4214 = vld [vmem:[%s3551 + $0x6] sm:$0x1]
        %v4215 = vlaneseq
        %v4216 = vshrl.u32 %v4215, 7
        %v4217 = vsub.s32 0, %v4216
        %v4218 = vrot.slane %v4214, %v4217
        %v4219 = vmul.f32 %v3527, %v4218
        %v4220 = vmul.f32 %v3528, %v4218
        %v4221 = vmul.f32 %v3529, %v4218
        %v4222 = vmul.f32 %v3530, %v4218
        %v4223 = vmul.f32 %v3531, %v4218
        %v4224 = vmul.f32 %v3532, %v4218
        %v4225 = vmul.f32 %v3533, %v4218
        %v4226 = vmul.f32 %v3534, %v4218
        %v4227 = vmul.f32 %v3535, %v4218
        %v4228 = vmul.f32 %v3536, %v4218
        %v4229 = vmul.f32 %v3537, %v4218
        %v4230 = vmul.f32 %v3538, %v4218
        %v4231 = vmul.f32 %v3539, %v4218
        %v4232 = vmul.f32 %v3540, %v4218
        %v4233 = vmul.f32 %v3541, %v4218
        %v4234 = vmul.f32 %v3542, %v4218
        %v4235 = vmul.f32 %v3543, %v4218
        %v4236 = vmul.f32 %v3544, %v4218
        %v4237 = vmul.f32 %v3545, %v4218
        %v4238 = vmul.f32 %v3546, %v4218
        %v4239 = vmul.f32 %v3547, %v4218
        %v4240 = vmul.f32 %v3548, %v4218
        %v4241 = vmul.f32 %v3549, %v4218
        %v4242 = vmul.f32 %v3550, %v4218
        %v4267 = vrot.slane %v4219, 6
        %v4268 = vrot.slane %v4220, 6
        %v4269 = vsel %vm1006, %v4267, %v4268
        %v4270 = vrot.slane %v4221, 6
        %v4271 = vsel %vm1006, %v4268, %v4270
        %v4272 = vrot.slane %v4222, 6
        %v4273 = vrot.slane %v4223, 6
        %v4274 = vsel %vm1006, %v4272, %v4273
        %v4275 = vrot.slane %v4224, 6
        %v4276 = vsel %vm1006, %v4273, %v4275
        %v4277 = vrot.slane %v4225, 6
        %v4278 = vrot.slane %v4226, 6
        %v4279 = vsel %vm1006, %v4277, %v4278
        %v4280 = vrot.slane %v4227, 6
        %v4281 = vsel %vm1006, %v4278, %v4280
        %v4282 = vrot.slane %v4228, 6
        %v4283 = vrot.slane %v4229, 6
        %v4284 = vsel %vm1006, %v4282, %v4283
        %v4285 = vrot.slane %v4230, 6
        %v4286 = vsel %vm1006, %v4283, %v4285
        %v4287 = vrot.slane %v4231, 6
        %v4288 = vrot.slane %v4232, 6
        %v4289 = vsel %vm1006, %v4287, %v4288
        %v4290 = vrot.slane %v4233, 6
        %v4291 = vsel %vm1006, %v4288, %v4290
        %v4292 = vrot.slane %v4234, 6
        %v4293 = vrot.slane %v4235, 6
        %v4294 = vsel %vm1006, %v4292, %v4293
        %v4295 = vrot.slane %v4236, 6
        %v4296 = vsel %vm1006, %v4293, %v4295
        %v4297 = vrot.slane %v4237, 6
        %v4298 = vrot.slane %v4238, 6
        %v4299 = vsel %vm1006, %v4297, %v4298
        %v4300 = vrot.slane %v4239, 6
        %v4301 = vsel %vm1006, %v4298, %v4300
        %v4302 = vrot.slane %v4240, 6
        %v4303 = vrot.slane %v4241, 6
        %v4304 = vsel %vm1006, %v4302, %v4303
        %v4305 = vrot.slane %v4242, 6
        %v4306 = vsel %vm1006, %v4303, %v4305
        %v4323 = vadd.f32 %v4198, %v4269
        %v4324 = vadd.f32 %v4199, %v4271
        %v4325 = vadd.f32 %v4200, %v4274
        %v4326 = vadd.f32 %v4201, %v4276
        %v4327 = vadd.f32 %v4202, %v4279
        %v4328 = vadd.f32 %v4203, %v4281
        %v4329 = vadd.f32 %v4204, %v4284
        %v4330 = vadd.f32 %v4205, %v4286
        %v4331 = vadd.f32 %v4206, %v4289
        %v4332 = vadd.f32 %v4207, %v4291
        %v4333 = vadd.f32 %v4208, %v4294
        %v4334 = vadd.f32 %v4209, %v4296
        %v4335 = vadd.f32 %v4210, %v4299
        %v4336 = vadd.f32 %v4211, %v4301
        %v4337 = vadd.f32 %v4212, %v4304
        %v4338 = vadd.f32 %v4213, %v4306
        %s4339 = sadd.s32 %s252, 5
        %s4340 = smul.u32 %s4339, 24
        %s4341 = scalar_lea.vmem %s218, %s4340 [#allocation2]
        %v4342 = vld [vmem:[%s4341] sm:$0xff]
        %v4343 = vld [vmem:[%s4341 + $0x8] sm:$0xff]
        %v4344 = vld [vmem:[%s4341 + $0x10] sm:$0xff]
        %v4345 = vld [vmem:[%s4341 + $0x18] sm:$0xff]
        %v4346 = vld [vmem:[%s4341 + $0x20] sm:$0xff]
        %v4347 = vld [vmem:[%s4341 + $0x28] sm:$0xff]
        %v4348 = vld [vmem:[%s4341 + $0x30] sm:$0xff]
        %v4349 = vld [vmem:[%s4341 + $0x38] sm:$0xff]
        %v4350 = vld [vmem:[%s4341 + $0x40] sm:$0xff]
        %v4351 = vld [vmem:[%s4341 + $0x48] sm:$0xff]
        %v4352 = vld [vmem:[%s4341 + $0x50] sm:$0xff]
        %v4353 = vld [vmem:[%s4341 + $0x58] sm:$0xff]
        %v4354 = vld [vmem:[%s4341 + $0x60] sm:$0xff]
        %v4355 = vld [vmem:[%s4341 + $0x68] sm:$0xff]
        %v4356 = vld [vmem:[%s4341 + $0x70] sm:$0xff]
        %v4357 = vld [vmem:[%s4341 + $0x78] sm:$0xff]
        %v4358 = vld [vmem:[%s4341 + $0x80] sm:$0xff]
        %v4359 = vld [vmem:[%s4341 + $0x88] sm:$0xff]
        %v4360 = vld [vmem:[%s4341 + $0x90] sm:$0xff]
        %v4361 = vld [vmem:[%s4341 + $0x98] sm:$0xff]
        %v4362 = vld [vmem:[%s4341 + $0xa0] sm:$0xff]
        %v4363 = vld [vmem:[%s4341 + $0xa8] sm:$0xff]
        %v4364 = vld [vmem:[%s4341 + $0xb0] sm:$0xff]
        %v4365 = vld [vmem:[%s4341 + $0xb8] sm:$0xff]
        %s4366 = scalar_lea.vmem [#allocation5], 40
        %v4367 = vld [vmem:[%s4366] sm:$0x1]
        %v4368 = vlaneseq
        %v4369 = vshrl.u32 %v4368, 7
        %v4370 = vsub.s32 0, %v4369
        %v4371 = vrot.slane %v4367, %v4370
        %v4372 = vmul.f32 %v4342, %v4371
        %v4373 = vmul.f32 %v4343, %v4371
        %v4374 = vmul.f32 %v4345, %v4371
        %v4375 = vmul.f32 %v4346, %v4371
        %v4376 = vmul.f32 %v4348, %v4371
        %v4377 = vmul.f32 %v4349, %v4371
        %v4378 = vmul.f32 %v4351, %v4371
        %v4379 = vmul.f32 %v4352, %v4371
        %v4380 = vmul.f32 %v4354, %v4371
        %v4381 = vmul.f32 %v4355, %v4371
        %v4382 = vmul.f32 %v4357, %v4371
        %v4383 = vmul.f32 %v4358, %v4371
        %v4384 = vmul.f32 %v4360, %v4371
        %v4385 = vmul.f32 %v4361, %v4371
        %v4386 = vmul.f32 %v4363, %v4371
        %v4387 = vmul.f32 %v4364, %v4371
        %v4388 = vadd.f32 %v4323, %v4372
        %v4389 = vadd.f32 %v4324, %v4373
        %v4390 = vadd.f32 %v4325, %v4374
        %v4391 = vadd.f32 %v4326, %v4375
        %v4392 = vadd.f32 %v4327, %v4376
        %v4393 = vadd.f32 %v4328, %v4377
        %v4394 = vadd.f32 %v4329, %v4378
        %v4395 = vadd.f32 %v4330, %v4379
        %v4396 = vadd.f32 %v4331, %v4380
        %v4397 = vadd.f32 %v4332, %v4381
        %v4398 = vadd.f32 %v4333, %v4382
        %v4399 = vadd.f32 %v4334, %v4383
        %v4400 = vadd.f32 %v4335, %v4384
        %v4401 = vadd.f32 %v4336, %v4385
        %v4402 = vadd.f32 %v4337, %v4386
        %v4403 = vadd.f32 %v4338, %v4387
        %v4404 = vld [vmem:[%s4366 + $0x1] sm:$0x1]
        %v4405 = vlaneseq
        %v4406 = vshrl.u32 %v4405, 7
        %v4407 = vsub.s32 0, %v4406
        %v4408 = vrot.slane %v4404, %v4407
        %v4409 = vmul.f32 %v4342, %v4408
        %v4410 = vmul.f32 %v4343, %v4408
        %v4411 = vmul.f32 %v4344, %v4408
        %v4412 = vmul.f32 %v4345, %v4408
        %v4413 = vmul.f32 %v4346, %v4408
        %v4414 = vmul.f32 %v4347, %v4408
        %v4415 = vmul.f32 %v4348, %v4408
        %v4416 = vmul.f32 %v4349, %v4408
        %v4417 = vmul.f32 %v4350, %v4408
        %v4418 = vmul.f32 %v4351, %v4408
        %v4419 = vmul.f32 %v4352, %v4408
        %v4420 = vmul.f32 %v4353, %v4408
        %v4421 = vmul.f32 %v4354, %v4408
        %v4422 = vmul.f32 %v4355, %v4408
        %v4423 = vmul.f32 %v4356, %v4408
        %v4424 = vmul.f32 %v4357, %v4408
        %v4425 = vmul.f32 %v4358, %v4408
        %v4426 = vmul.f32 %v4359, %v4408
        %v4427 = vmul.f32 %v4360, %v4408
        %v4428 = vmul.f32 %v4361, %v4408
        %v4429 = vmul.f32 %v4362, %v4408
        %v4430 = vmul.f32 %v4363, %v4408
        %v4431 = vmul.f32 %v4364, %v4408
        %v4432 = vmul.f32 %v4365, %v4408
        %v4457 = vrot.slane %v4409, 1
        %v4458 = vrot.slane %v4410, 1
        %v4459 = vsel %vm376, %v4457, %v4458
        %v4460 = vrot.slane %v4411, 1
        %v4461 = vsel %vm376, %v4458, %v4460
        %v4462 = vrot.slane %v4412, 1
        %v4463 = vrot.slane %v4413, 1
        %v4464 = vsel %vm376, %v4462, %v4463
        %v4465 = vrot.slane %v4414, 1
        %v4466 = vsel %vm376, %v4463, %v4465
        %v4467 = vrot.slane %v4415, 1
        %v4468 = vrot.slane %v4416, 1
        %v4469 = vsel %vm376, %v4467, %v4468
        %v4470 = vrot.slane %v4417, 1
        %v4471 = vsel %vm376, %v4468, %v4470
        %v4472 = vrot.slane %v4418, 1
        %v4473 = vrot.slane %v4419, 1
        %v4474 = vsel %vm376, %v4472, %v4473
        %v4475 = vrot.slane %v4420, 1
        %v4476 = vsel %vm376, %v4473, %v4475
        %v4477 = vrot.slane %v4421, 1
        %v4478 = vrot.slane %v4422, 1
        %v4479 = vsel %vm376, %v4477, %v4478
        %v4480 = vrot.slane %v4423, 1
        %v4481 = vsel %vm376, %v4478, %v4480
        %v4482 = vrot.slane %v4424, 1
        %v4483 = vrot.slane %v4425, 1
        %v4484 = vsel %vm376, %v4482, %v4483
        %v4485 = vrot.slane %v4426, 1
        %v4486 = vsel %vm376, %v4483, %v4485
        %v4487 = vrot.slane %v4427, 1
        %v4488 = vrot.slane %v4428, 1
        %v4489 = vsel %vm376, %v4487, %v4488
        %v4490 = vrot.slane %v4429, 1
        %v4491 = vsel %vm376, %v4488, %v4490
        %v4492 = vrot.slane %v4430, 1
        %v4493 = vrot.slane %v4431, 1
        %v4494 = vsel %vm376, %v4492, %v4493
        %v4495 = vrot.slane %v4432, 1
        %v4496 = vsel %vm376, %v4493, %v4495
        %v4513 = vadd.f32 %v4388, %v4459
        %v4514 = vadd.f32 %v4389, %v4461
        %v4515 = vadd.f32 %v4390, %v4464
        %v4516 = vadd.f32 %v4391, %v4466
        %v4517 = vadd.f32 %v4392, %v4469
        %v4518 = vadd.f32 %v4393, %v4471
        %v4519 = vadd.f32 %v4394, %v4474
        %v4520 = vadd.f32 %v4395, %v4476
        %v4521 = vadd.f32 %v4396, %v4479
        %v4522 = vadd.f32 %v4397, %v4481
        %v4523 = vadd.f32 %v4398, %v4484
        %v4524 = vadd.f32 %v4399, %v4486
        %v4525 = vadd.f32 %v4400, %v4489
        %v4526 = vadd.f32 %v4401, %v4491
        %v4527 = vadd.f32 %v4402, %v4494
        %v4528 = vadd.f32 %v4403, %v4496
        %v4529 = vld [vmem:[%s4366 + $0x2] sm:$0x1]
        %v4530 = vlaneseq
        %v4531 = vshrl.u32 %v4530, 7
        %v4532 = vsub.s32 0, %v4531
        %v4533 = vrot.slane %v4529, %v4532
        %v4534 = vmul.f32 %v4342, %v4533
        %v4535 = vmul.f32 %v4343, %v4533
        %v4536 = vmul.f32 %v4344, %v4533
        %v4537 = vmul.f32 %v4345, %v4533
        %v4538 = vmul.f32 %v4346, %v4533
        %v4539 = vmul.f32 %v4347, %v4533
        %v4540 = vmul.f32 %v4348, %v4533
        %v4541 = vmul.f32 %v4349, %v4533
        %v4542 = vmul.f32 %v4350, %v4533
        %v4543 = vmul.f32 %v4351, %v4533
        %v4544 = vmul.f32 %v4352, %v4533
        %v4545 = vmul.f32 %v4353, %v4533
        %v4546 = vmul.f32 %v4354, %v4533
        %v4547 = vmul.f32 %v4355, %v4533
        %v4548 = vmul.f32 %v4356, %v4533
        %v4549 = vmul.f32 %v4357, %v4533
        %v4550 = vmul.f32 %v4358, %v4533
        %v4551 = vmul.f32 %v4359, %v4533
        %v4552 = vmul.f32 %v4360, %v4533
        %v4553 = vmul.f32 %v4361, %v4533
        %v4554 = vmul.f32 %v4362, %v4533
        %v4555 = vmul.f32 %v4363, %v4533
        %v4556 = vmul.f32 %v4364, %v4533
        %v4557 = vmul.f32 %v4365, %v4533
        %v4582 = vrot.slane %v4534, 2
        %v4583 = vrot.slane %v4535, 2
        %v4584 = vsel %vm502, %v4582, %v4583
        %v4585 = vrot.slane %v4536, 2
        %v4586 = vsel %vm502, %v4583, %v4585
        %v4587 = vrot.slane %v4537, 2
        %v4588 = vrot.slane %v4538, 2
        %v4589 = vsel %vm502, %v4587, %v4588
        %v4590 = vrot.slane %v4539, 2
        %v4591 = vsel %vm502, %v4588, %v4590
        %v4592 = vrot.slane %v4540, 2
        %v4593 = vrot.slane %v4541, 2
        %v4594 = vsel %vm502, %v4592, %v4593
        %v4595 = vrot.slane %v4542, 2
        %v4596 = vsel %vm502, %v4593, %v4595
        %v4597 = vrot.slane %v4543, 2
        %v4598 = vrot.slane %v4544, 2
        %v4599 = vsel %vm502, %v4597, %v4598
        %v4600 = vrot.slane %v4545, 2
        %v4601 = vsel %vm502, %v4598, %v4600
        %v4602 = vrot.slane %v4546, 2
        %v4603 = vrot.slane %v4547, 2
        %v4604 = vsel %vm502, %v4602, %v4603
        %v4605 = vrot.slane %v4548, 2
        %v4606 = vsel %vm502, %v4603, %v4605
        %v4607 = vrot.slane %v4549, 2
        %v4608 = vrot.slane %v4550, 2
        %v4609 = vsel %vm502, %v4607, %v4608
        %v4610 = vrot.slane %v4551, 2
        %v4611 = vsel %vm502, %v4608, %v4610
        %v4612 = vrot.slane %v4552, 2
        %v4613 = vrot.slane %v4553, 2
        %v4614 = vsel %vm502, %v4612, %v4613
        %v4615 = vrot.slane %v4554, 2
        %v4616 = vsel %vm502, %v4613, %v4615
        %v4617 = vrot.slane %v4555, 2
        %v4618 = vrot.slane %v4556, 2
        %v4619 = vsel %vm502, %v4617, %v4618
        %v4620 = vrot.slane %v4557, 2
        %v4621 = vsel %vm502, %v4618, %v4620
        %v4638 = vadd.f32 %v4513, %v4584
        %v4639 = vadd.f32 %v4514, %v4586
        %v4640 = vadd.f32 %v4515, %v4589
        %v4641 = vadd.f32 %v4516, %v4591
        %v4642 = vadd.f32 %v4517, %v4594
        %v4643 = vadd.f32 %v4518, %v4596
        %v4644 = vadd.f32 %v4519, %v4599
        %v4645 = vadd.f32 %v4520, %v4601
        %v4646 = vadd.f32 %v4521, %v4604
        %v4647 = vadd.f32 %v4522, %v4606
        %v4648 = vadd.f32 %v4523, %v4609
        %v4649 = vadd.f32 %v4524, %v4611
        %v4650 = vadd.f32 %v4525, %v4614
        %v4651 = vadd.f32 %v4526, %v4616
        %v4652 = vadd.f32 %v4527, %v4619
        %v4653 = vadd.f32 %v4528, %v4621
        %v4654 = vld [vmem:[%s4366 + $0x3] sm:$0x1]
        %v4655 = vlaneseq
        %v4656 = vshrl.u32 %v4655, 7
        %v4657 = vsub.s32 0, %v4656
        %v4658 = vrot.slane %v4654, %v4657
        %v4659 = vmul.f32 %v4342, %v4658
        %v4660 = vmul.f32 %v4343, %v4658
        %v4661 = vmul.f32 %v4344, %v4658
        %v4662 = vmul.f32 %v4345, %v4658
        %v4663 = vmul.f32 %v4346, %v4658
        %v4664 = vmul.f32 %v4347, %v4658
        %v4665 = vmul.f32 %v4348, %v4658
        %v4666 = vmul.f32 %v4349, %v4658
        %v4667 = vmul.f32 %v4350, %v4658
        %v4668 = vmul.f32 %v4351, %v4658
        %v4669 = vmul.f32 %v4352, %v4658
        %v4670 = vmul.f32 %v4353, %v4658
        %v4671 = vmul.f32 %v4354, %v4658
        %v4672 = vmul.f32 %v4355, %v4658
        %v4673 = vmul.f32 %v4356, %v4658
        %v4674 = vmul.f32 %v4357, %v4658
        %v4675 = vmul.f32 %v4358, %v4658
        %v4676 = vmul.f32 %v4359, %v4658
        %v4677 = vmul.f32 %v4360, %v4658
        %v4678 = vmul.f32 %v4361, %v4658
        %v4679 = vmul.f32 %v4362, %v4658
        %v4680 = vmul.f32 %v4363, %v4658
        %v4681 = vmul.f32 %v4364, %v4658
        %v4682 = vmul.f32 %v4365, %v4658
        %v4707 = vrot.slane %v4659, 3
        %v4708 = vrot.slane %v4660, 3
        %v4709 = vsel %vm628, %v4707, %v4708
        %v4710 = vrot.slane %v4661, 3
        %v4711 = vsel %vm628, %v4708, %v4710
        %v4712 = vrot.slane %v4662, 3
        %v4713 = vrot.slane %v4663, 3
        %v4714 = vsel %vm628, %v4712, %v4713
        %v4715 = vrot.slane %v4664, 3
        %v4716 = vsel %vm628, %v4713, %v4715
        %v4717 = vrot.slane %v4665, 3
        %v4718 = vrot.slane %v4666, 3
        %v4719 = vsel %vm628, %v4717, %v4718
        %v4720 = vrot.slane %v4667, 3
        %v4721 = vsel %vm628, %v4718, %v4720
        %v4722 = vrot.slane %v4668, 3
        %v4723 = vrot.slane %v4669, 3
        %v4724 = vsel %vm628, %v4722, %v4723
        %v4725 = vrot.slane %v4670, 3
        %v4726 = vsel %vm628, %v4723, %v4725
        %v4727 = vrot.slane %v4671, 3
        %v4728 = vrot.slane %v4672, 3
        %v4729 = vsel %vm628, %v4727, %v4728
        %v4730 = vrot.slane %v4673, 3
        %v4731 = vsel %vm628, %v4728, %v4730
        %v4732 = vrot.slane %v4674, 3
        %v4733 = vrot.slane %v4675, 3
        %v4734 = vsel %vm628, %v4732, %v4733
        %v4735 = vrot.slane %v4676, 3
        %v4736 = vsel %vm628, %v4733, %v4735
        %v4737 = vrot.slane %v4677, 3
        %v4738 = vrot.slane %v4678, 3
        %v4739 = vsel %vm628, %v4737, %v4738
        %v4740 = vrot.slane %v4679, 3
        %v4741 = vsel %vm628, %v4738, %v4740
        %v4742 = vrot.slane %v4680, 3
        %v4743 = vrot.slane %v4681, 3
        %v4744 = vsel %vm628, %v4742, %v4743
        %v4745 = vrot.slane %v4682, 3
        %v4746 = vsel %vm628, %v4743, %v4745
        %v4763 = vadd.f32 %v4638, %v4709
        %v4764 = vadd.f32 %v4639, %v4711
        %v4765 = vadd.f32 %v4640, %v4714
        %v4766 = vadd.f32 %v4641, %v4716
        %v4767 = vadd.f32 %v4642, %v4719
        %v4768 = vadd.f32 %v4643, %v4721
        %v4769 = vadd.f32 %v4644, %v4724
        %v4770 = vadd.f32 %v4645, %v4726
        %v4771 = vadd.f32 %v4646, %v4729
        %v4772 = vadd.f32 %v4647, %v4731
        %v4773 = vadd.f32 %v4648, %v4734
        %v4774 = vadd.f32 %v4649, %v4736
        %v4775 = vadd.f32 %v4650, %v4739
        %v4776 = vadd.f32 %v4651, %v4741
        %v4777 = vadd.f32 %v4652, %v4744
        %v4778 = vadd.f32 %v4653, %v4746
        %v4779 = vld [vmem:[%s4366 + $0x4] sm:$0x1]
        %v4780 = vlaneseq
        %v4781 = vshrl.u32 %v4780, 7
        %v4782 = vsub.s32 0, %v4781
        %v4783 = vrot.slane %v4779, %v4782
        %v4784 = vmul.f32 %v4342, %v4783
        %v4785 = vmul.f32 %v4343, %v4783
        %v4786 = vmul.f32 %v4344, %v4783
        %v4787 = vmul.f32 %v4345, %v4783
        %v4788 = vmul.f32 %v4346, %v4783
        %v4789 = vmul.f32 %v4347, %v4783
        %v4790 = vmul.f32 %v4348, %v4783
        %v4791 = vmul.f32 %v4349, %v4783
        %v4792 = vmul.f32 %v4350, %v4783
        %v4793 = vmul.f32 %v4351, %v4783
        %v4794 = vmul.f32 %v4352, %v4783
        %v4795 = vmul.f32 %v4353, %v4783
        %v4796 = vmul.f32 %v4354, %v4783
        %v4797 = vmul.f32 %v4355, %v4783
        %v4798 = vmul.f32 %v4356, %v4783
        %v4799 = vmul.f32 %v4357, %v4783
        %v4800 = vmul.f32 %v4358, %v4783
        %v4801 = vmul.f32 %v4359, %v4783
        %v4802 = vmul.f32 %v4360, %v4783
        %v4803 = vmul.f32 %v4361, %v4783
        %v4804 = vmul.f32 %v4362, %v4783
        %v4805 = vmul.f32 %v4363, %v4783
        %v4806 = vmul.f32 %v4364, %v4783
        %v4807 = vmul.f32 %v4365, %v4783
        %v4832 = vrot.slane %v4784, 4
        %v4833 = vrot.slane %v4785, 4
        %v4834 = vsel %vm754, %v4832, %v4833
        %v4835 = vrot.slane %v4786, 4
        %v4836 = vsel %vm754, %v4833, %v4835
        %v4837 = vrot.slane %v4787, 4
        %v4838 = vrot.slane %v4788, 4
        %v4839 = vsel %vm754, %v4837, %v4838
        %v4840 = vrot.slane %v4789, 4
        %v4841 = vsel %vm754, %v4838, %v4840
        %v4842 = vrot.slane %v4790, 4
        %v4843 = vrot.slane %v4791, 4
        %v4844 = vsel %vm754, %v4842, %v4843
        %v4845 = vrot.slane %v4792, 4
        %v4846 = vsel %vm754, %v4843, %v4845
        %v4847 = vrot.slane %v4793, 4
        %v4848 = vrot.slane %v4794, 4
        %v4849 = vsel %vm754, %v4847, %v4848
        %v4850 = vrot.slane %v4795, 4
        %v4851 = vsel %vm754, %v4848, %v4850
        %v4852 = vrot.slane %v4796, 4
        %v4853 = vrot.slane %v4797, 4
        %v4854 = vsel %vm754, %v4852, %v4853
        %v4855 = vrot.slane %v4798, 4
        %v4856 = vsel %vm754, %v4853, %v4855
        %v4857 = vrot.slane %v4799, 4
        %v4858 = vrot.slane %v4800, 4
        %v4859 = vsel %vm754, %v4857, %v4858
        %v4860 = vrot.slane %v4801, 4
        %v4861 = vsel %vm754, %v4858, %v4860
        %v4862 = vrot.slane %v4802, 4
        %v4863 = vrot.slane %v4803, 4
        %v4864 = vsel %vm754, %v4862, %v4863
        %v4865 = vrot.slane %v4804, 4
        %v4866 = vsel %vm754, %v4863, %v4865
        %v4867 = vrot.slane %v4805, 4
        %v4868 = vrot.slane %v4806, 4
        %v4869 = vsel %vm754, %v4867, %v4868
        %v4870 = vrot.slane %v4807, 4
        %v4871 = vsel %vm754, %v4868, %v4870
        %v4888 = vadd.f32 %v4763, %v4834
        %v4889 = vadd.f32 %v4764, %v4836
        %v4890 = vadd.f32 %v4765, %v4839
        %v4891 = vadd.f32 %v4766, %v4841
        %v4892 = vadd.f32 %v4767, %v4844
        %v4893 = vadd.f32 %v4768, %v4846
        %v4894 = vadd.f32 %v4769, %v4849
        %v4895 = vadd.f32 %v4770, %v4851
        %v4896 = vadd.f32 %v4771, %v4854
        %v4897 = vadd.f32 %v4772, %v4856
        %v4898 = vadd.f32 %v4773, %v4859
        %v4899 = vadd.f32 %v4774, %v4861
        %v4900 = vadd.f32 %v4775, %v4864
        %v4901 = vadd.f32 %v4776, %v4866
        %v4902 = vadd.f32 %v4777, %v4869
        %v4903 = vadd.f32 %v4778, %v4871
        %v4904 = vld [vmem:[%s4366 + $0x5] sm:$0x1]
        %v4905 = vlaneseq
        %v4906 = vshrl.u32 %v4905, 7
        %v4907 = vsub.s32 0, %v4906
        %v4908 = vrot.slane %v4904, %v4907
        %v4909 = vmul.f32 %v4342, %v4908
        %v4910 = vmul.f32 %v4343, %v4908
        %v4911 = vmul.f32 %v4344, %v4908
        %v4912 = vmul.f32 %v4345, %v4908
        %v4913 = vmul.f32 %v4346, %v4908
        %v4914 = vmul.f32 %v4347, %v4908
        %v4915 = vmul.f32 %v4348, %v4908
        %v4916 = vmul.f32 %v4349, %v4908
        %v4917 = vmul.f32 %v4350, %v4908
        %v4918 = vmul.f32 %v4351, %v4908
        %v4919 = vmul.f32 %v4352, %v4908
        %v4920 = vmul.f32 %v4353, %v4908
        %v4921 = vmul.f32 %v4354, %v4908
        %v4922 = vmul.f32 %v4355, %v4908
        %v4923 = vmul.f32 %v4356, %v4908
        %v4924 = vmul.f32 %v4357, %v4908
        %v4925 = vmul.f32 %v4358, %v4908
        %v4926 = vmul.f32 %v4359, %v4908
        %v4927 = vmul.f32 %v4360, %v4908
        %v4928 = vmul.f32 %v4361, %v4908
        %v4929 = vmul.f32 %v4362, %v4908
        %v4930 = vmul.f32 %v4363, %v4908
        %v4931 = vmul.f32 %v4364, %v4908
        %v4932 = vmul.f32 %v4365, %v4908
        %v4957 = vrot.slane %v4909, 5
        %v4958 = vrot.slane %v4910, 5
        %v4959 = vsel %vm880, %v4957, %v4958
        %v4960 = vrot.slane %v4911, 5
        %v4961 = vsel %vm880, %v4958, %v4960
        %v4962 = vrot.slane %v4912, 5
        %v4963 = vrot.slane %v4913, 5
        %v4964 = vsel %vm880, %v4962, %v4963
        %v4965 = vrot.slane %v4914, 5
        %v4966 = vsel %vm880, %v4963, %v4965
        %v4967 = vrot.slane %v4915, 5
        %v4968 = vrot.slane %v4916, 5
        %v4969 = vsel %vm880, %v4967, %v4968
        %v4970 = vrot.slane %v4917, 5
        %v4971 = vsel %vm880, %v4968, %v4970
        %v4972 = vrot.slane %v4918, 5
        %v4973 = vrot.slane %v4919, 5
        %v4974 = vsel %vm880, %v4972, %v4973
        %v4975 = vrot.slane %v4920, 5
        %v4976 = vsel %vm880, %v4973, %v4975
        %v4977 = vrot.slane %v4921, 5
        %v4978 = vrot.slane %v4922, 5
        %v4979 = vsel %vm880, %v4977, %v4978
        %v4980 = vrot.slane %v4923, 5
        %v4981 = vsel %vm880, %v4978, %v4980
        %v4982 = vrot.slane %v4924, 5
        %v4983 = vrot.slane %v4925, 5
        %v4984 = vsel %vm880, %v4982, %v4983
        %v4985 = vrot.slane %v4926, 5
        %v4986 = vsel %vm880, %v4983, %v4985
        %v4987 = vrot.slane %v4927, 5
        %v4988 = vrot.slane %v4928, 5
        %v4989 = vsel %vm880, %v4987, %v4988
        %v4990 = vrot.slane %v4929, 5
        %v4991 = vsel %vm880, %v4988, %v4990
        %v4992 = vrot.slane %v4930, 5
        %v4993 = vrot.slane %v4931, 5
        %v4994 = vsel %vm880, %v4992, %v4993
        %v4995 = vrot.slane %v4932, 5
        %v4996 = vsel %vm880, %v4993, %v4995
        %v5013 = vadd.f32 %v4888, %v4959
        %v5014 = vadd.f32 %v4889, %v4961
        %v5015 = vadd.f32 %v4890, %v4964
        %v5016 = vadd.f32 %v4891, %v4966
        %v5017 = vadd.f32 %v4892, %v4969
        %v5018 = vadd.f32 %v4893, %v4971
        %v5019 = vadd.f32 %v4894, %v4974
        %v5020 = vadd.f32 %v4895, %v4976
        %v5021 = vadd.f32 %v4896, %v4979
        %v5022 = vadd.f32 %v4897, %v4981
        %v5023 = vadd.f32 %v4898, %v4984
        %v5024 = vadd.f32 %v4899, %v4986
        %v5025 = vadd.f32 %v4900, %v4989
        %v5026 = vadd.f32 %v4901, %v4991
        %v5027 = vadd.f32 %v4902, %v4994
        %v5028 = vadd.f32 %v4903, %v4996
        %v5029 = vld [vmem:[%s4366 + $0x6] sm:$0x1]
        %v5030 = vlaneseq
        %v5031 = vshrl.u32 %v5030, 7
        %v5032 = vsub.s32 0, %v5031
        %v5033 = vrot.slane %v5029, %v5032
        %v5034 = vmul.f32 %v4342, %v5033
        %v5035 = vmul.f32 %v4343, %v5033
        %v5036 = vmul.f32 %v4344, %v5033
        %v5037 = vmul.f32 %v4345, %v5033
        %v5038 = vmul.f32 %v4346, %v5033
        %v5039 = vmul.f32 %v4347, %v5033
        %v5040 = vmul.f32 %v4348, %v5033
        %v5041 = vmul.f32 %v4349, %v5033
        %v5042 = vmul.f32 %v4350, %v5033
        %v5043 = vmul.f32 %v4351, %v5033
        %v5044 = vmul.f32 %v4352, %v5033
        %v5045 = vmul.f32 %v4353, %v5033
        %v5046 = vmul.f32 %v4354, %v5033
        %v5047 = vmul.f32 %v4355, %v5033
        %v5048 = vmul.f32 %v4356, %v5033
        %v5049 = vmul.f32 %v4357, %v5033
        %v5050 = vmul.f32 %v4358, %v5033
        %v5051 = vmul.f32 %v4359, %v5033
        %v5052 = vmul.f32 %v4360, %v5033
        %v5053 = vmul.f32 %v4361, %v5033
        %v5054 = vmul.f32 %v4362, %v5033
        %v5055 = vmul.f32 %v4363, %v5033
        %v5056 = vmul.f32 %v4364, %v5033
        %v5057 = vmul.f32 %v4365, %v5033
        %v5082 = vrot.slane %v5034, 6
        %v5083 = vrot.slane %v5035, 6
        %v5084 = vsel %vm1006, %v5082, %v5083
        %v5085 = vrot.slane %v5036, 6
        %v5086 = vsel %vm1006, %v5083, %v5085
        %v5087 = vrot.slane %v5037, 6
        %v5088 = vrot.slane %v5038, 6
        %v5089 = vsel %vm1006, %v5087, %v5088
        %v5090 = vrot.slane %v5039, 6
        %v5091 = vsel %vm1006, %v5088, %v5090
        %v5092 = vrot.slane %v5040, 6
        %v5093 = vrot.slane %v5041, 6
        %v5094 = vsel %vm1006, %v5092, %v5093
        %v5095 = vrot.slane %v5042, 6
        %v5096 = vsel %vm1006, %v5093, %v5095
        %v5097 = vrot.slane %v5043, 6
        %v5098 = vrot.slane %v5044, 6
        %v5099 = vsel %vm1006, %v5097, %v5098
        %v5100 = vrot.slane %v5045, 6
        %v5101 = vsel %vm1006, %v5098, %v5100
        %v5102 = vrot.slane %v5046, 6
        %v5103 = vrot.slane %v5047, 6
        %v5104 = vsel %vm1006, %v5102, %v5103
        %v5105 = vrot.slane %v5048, 6
        %v5106 = vsel %vm1006, %v5103, %v5105
        %v5107 = vrot.slane %v5049, 6
        %v5108 = vrot.slane %v5050, 6
        %v5109 = vsel %vm1006, %v5107, %v5108
        %v5110 = vrot.slane %v5051, 6
        %v5111 = vsel %vm1006, %v5108, %v5110
        %v5112 = vrot.slane %v5052, 6
        %v5113 = vrot.slane %v5053, 6
        %v5114 = vsel %vm1006, %v5112, %v5113
        %v5115 = vrot.slane %v5054, 6
        %v5116 = vsel %vm1006, %v5113, %v5115
        %v5117 = vrot.slane %v5055, 6
        %v5118 = vrot.slane %v5056, 6
        %v5119 = vsel %vm1006, %v5117, %v5118
        %v5120 = vrot.slane %v5057, 6
        %v5121 = vsel %vm1006, %v5118, %v5120
        %v5138 = vadd.f32 %v5013, %v5084
        %v5139 = vadd.f32 %v5014, %v5086
        %v5140 = vadd.f32 %v5015, %v5089
        %v5141 = vadd.f32 %v5016, %v5091
        %v5142 = vadd.f32 %v5017, %v5094
        %v5143 = vadd.f32 %v5018, %v5096
        %v5144 = vadd.f32 %v5019, %v5099
        %v5145 = vadd.f32 %v5020, %v5101
        %v5146 = vadd.f32 %v5021, %v5104
        %v5147 = vadd.f32 %v5022, %v5106
        %v5148 = vadd.f32 %v5023, %v5109
        %v5149 = vadd.f32 %v5024, %v5111
        %v5150 = vadd.f32 %v5025, %v5114
        %v5151 = vadd.f32 %v5026, %v5116
        %v5152 = vadd.f32 %v5027, %v5119
        %v5153 = vadd.f32 %v5028, %v5121
        %s5154 = sadd.s32 %s252, 6
        %s5155 = smul.u32 %s5154, 24
        %s5156 = scalar_lea.vmem %s218, %s5155 [#allocation2]
        %v5157 = vld [vmem:[%s5156] sm:$0xff]
        %v5158 = vld [vmem:[%s5156 + $0x8] sm:$0xff]
        %v5159 = vld [vmem:[%s5156 + $0x10] sm:$0xff]
        %v5160 = vld [vmem:[%s5156 + $0x18] sm:$0xff]
        %v5161 = vld [vmem:[%s5156 + $0x20] sm:$0xff]
        %v5162 = vld [vmem:[%s5156 + $0x28] sm:$0xff]
        %v5163 = vld [vmem:[%s5156 + $0x30] sm:$0xff]
        %v5164 = vld [vmem:[%s5156 + $0x38] sm:$0xff]
        %v5165 = vld [vmem:[%s5156 + $0x40] sm:$0xff]
        %v5166 = vld [vmem:[%s5156 + $0x48] sm:$0xff]
        %v5167 = vld [vmem:[%s5156 + $0x50] sm:$0xff]
        %v5168 = vld [vmem:[%s5156 + $0x58] sm:$0xff]
        %v5169 = vld [vmem:[%s5156 + $0x60] sm:$0xff]
        %v5170 = vld [vmem:[%s5156 + $0x68] sm:$0xff]
        %v5171 = vld [vmem:[%s5156 + $0x70] sm:$0xff]
        %v5172 = vld [vmem:[%s5156 + $0x78] sm:$0xff]
        %v5173 = vld [vmem:[%s5156 + $0x80] sm:$0xff]
        %v5174 = vld [vmem:[%s5156 + $0x88] sm:$0xff]
        %v5175 = vld [vmem:[%s5156 + $0x90] sm:$0xff]
        %v5176 = vld [vmem:[%s5156 + $0x98] sm:$0xff]
        %v5177 = vld [vmem:[%s5156 + $0xa0] sm:$0xff]
        %v5178 = vld [vmem:[%s5156 + $0xa8] sm:$0xff]
        %v5179 = vld [vmem:[%s5156 + $0xb0] sm:$0xff]
        %v5180 = vld [vmem:[%s5156 + $0xb8] sm:$0xff]
        %s5181 = scalar_lea.vmem [#allocation5], 48
        %v5182 = vld [vmem:[%s5181] sm:$0x1]
        %v5183 = vlaneseq
        %v5184 = vshrl.u32 %v5183, 7
        %v5185 = vsub.s32 0, %v5184
        %v5186 = vrot.slane %v5182, %v5185
        %v5187 = vmul.f32 %v5157, %v5186
        %v5188 = vmul.f32 %v5158, %v5186
        %v5189 = vmul.f32 %v5160, %v5186
        %v5190 = vmul.f32 %v5161, %v5186
        %v5191 = vmul.f32 %v5163, %v5186
        %v5192 = vmul.f32 %v5164, %v5186
        %v5193 = vmul.f32 %v5166, %v5186
        %v5194 = vmul.f32 %v5167, %v5186
        %v5195 = vmul.f32 %v5169, %v5186
        %v5196 = vmul.f32 %v5170, %v5186
        %v5197 = vmul.f32 %v5172, %v5186
        %v5198 = vmul.f32 %v5173, %v5186
        %v5199 = vmul.f32 %v5175, %v5186
        %v5200 = vmul.f32 %v5176, %v5186
        %v5201 = vmul.f32 %v5178, %v5186
        %v5202 = vmul.f32 %v5179, %v5186
        %v5203 = vadd.f32 %v5138, %v5187
        %v5204 = vadd.f32 %v5139, %v5188
        %v5205 = vadd.f32 %v5140, %v5189
        %v5206 = vadd.f32 %v5141, %v5190
        %v5207 = vadd.f32 %v5142, %v5191
        %v5208 = vadd.f32 %v5143, %v5192
        %v5209 = vadd.f32 %v5144, %v5193
        %v5210 = vadd.f32 %v5145, %v5194
        %v5211 = vadd.f32 %v5146, %v5195
        %v5212 = vadd.f32 %v5147, %v5196
        %v5213 = vadd.f32 %v5148, %v5197
        %v5214 = vadd.f32 %v5149, %v5198
        %v5215 = vadd.f32 %v5150, %v5199
        %v5216 = vadd.f32 %v5151, %v5200
        %v5217 = vadd.f32 %v5152, %v5201
        %v5218 = vadd.f32 %v5153, %v5202
        %v5219 = vld [vmem:[%s5181 + $0x1] sm:$0x1]
        %v5220 = vlaneseq
        %v5221 = vshrl.u32 %v5220, 7
        %v5222 = vsub.s32 0, %v5221
        %v5223 = vrot.slane %v5219, %v5222
        %v5224 = vmul.f32 %v5157, %v5223
        %v5225 = vmul.f32 %v5158, %v5223
        %v5226 = vmul.f32 %v5159, %v5223
        %v5227 = vmul.f32 %v5160, %v5223
        %v5228 = vmul.f32 %v5161, %v5223
        %v5229 = vmul.f32 %v5162, %v5223
        %v5230 = vmul.f32 %v5163, %v5223
        %v5231 = vmul.f32 %v5164, %v5223
        %v5232 = vmul.f32 %v5165, %v5223
        %v5233 = vmul.f32 %v5166, %v5223
        %v5234 = vmul.f32 %v5167, %v5223
        %v5235 = vmul.f32 %v5168, %v5223
        %v5236 = vmul.f32 %v5169, %v5223
        %v5237 = vmul.f32 %v5170, %v5223
        %v5238 = vmul.f32 %v5171, %v5223
        %v5239 = vmul.f32 %v5172, %v5223
        %v5240 = vmul.f32 %v5173, %v5223
        %v5241 = vmul.f32 %v5174, %v5223
        %v5242 = vmul.f32 %v5175, %v5223
        %v5243 = vmul.f32 %v5176, %v5223
        %v5244 = vmul.f32 %v5177, %v5223
        %v5245 = vmul.f32 %v5178, %v5223
        %v5246 = vmul.f32 %v5179, %v5223
        %v5247 = vmul.f32 %v5180, %v5223
        %v5272 = vrot.slane %v5224, 1
        %v5273 = vrot.slane %v5225, 1
        %v5274 = vsel %vm376, %v5272, %v5273
        %v5275 = vrot.slane %v5226, 1
        %v5276 = vsel %vm376, %v5273, %v5275
        %v5277 = vrot.slane %v5227, 1
        %v5278 = vrot.slane %v5228, 1
        %v5279 = vsel %vm376, %v5277, %v5278
        %v5280 = vrot.slane %v5229, 1
        %v5281 = vsel %vm376, %v5278, %v5280
        %v5282 = vrot.slane %v5230, 1
        %v5283 = vrot.slane %v5231, 1
        %v5284 = vsel %vm376, %v5282, %v5283
        %v5285 = vrot.slane %v5232, 1
        %v5286 = vsel %vm376, %v5283, %v5285
        %v5287 = vrot.slane %v5233, 1
        %v5288 = vrot.slane %v5234, 1
        %v5289 = vsel %vm376, %v5287, %v5288
        %v5290 = vrot.slane %v5235, 1
        %v5291 = vsel %vm376, %v5288, %v5290
        %v5292 = vrot.slane %v5236, 1
        %v5293 = vrot.slane %v5237, 1
        %v5294 = vsel %vm376, %v5292, %v5293
        %v5295 = vrot.slane %v5238, 1
        %v5296 = vsel %vm376, %v5293, %v5295
        %v5297 = vrot.slane %v5239, 1
        %v5298 = vrot.slane %v5240, 1
        %v5299 = vsel %vm376, %v5297, %v5298
        %v5300 = vrot.slane %v5241, 1
        %v5301 = vsel %vm376, %v5298, %v5300
        %v5302 = vrot.slane %v5242, 1
        %v5303 = vrot.slane %v5243, 1
        %v5304 = vsel %vm376, %v5302, %v5303
        %v5305 = vrot.slane %v5244, 1
        %v5306 = vsel %vm376, %v5303, %v5305
        %v5307 = vrot.slane %v5245, 1
        %v5308 = vrot.slane %v5246, 1
        %v5309 = vsel %vm376, %v5307, %v5308
        %v5310 = vrot.slane %v5247, 1
        %v5311 = vsel %vm376, %v5308, %v5310
        %v5328 = vadd.f32 %v5203, %v5274
        %v5329 = vadd.f32 %v5204, %v5276
        %v5330 = vadd.f32 %v5205, %v5279
        %v5331 = vadd.f32 %v5206, %v5281
        %v5332 = vadd.f32 %v5207, %v5284
        %v5333 = vadd.f32 %v5208, %v5286
        %v5334 = vadd.f32 %v5209, %v5289
        %v5335 = vadd.f32 %v5210, %v5291
        %v5336 = vadd.f32 %v5211, %v5294
        %v5337 = vadd.f32 %v5212, %v5296
        %v5338 = vadd.f32 %v5213, %v5299
        %v5339 = vadd.f32 %v5214, %v5301
        %v5340 = vadd.f32 %v5215, %v5304
        %v5341 = vadd.f32 %v5216, %v5306
        %v5342 = vadd.f32 %v5217, %v5309
        %v5343 = vadd.f32 %v5218, %v5311
        %v5344 = vld [vmem:[%s5181 + $0x2] sm:$0x1]
        %v5345 = vlaneseq
        %v5346 = vshrl.u32 %v5345, 7
        %v5347 = vsub.s32 0, %v5346
        %v5348 = vrot.slane %v5344, %v5347
        %v5349 = vmul.f32 %v5157, %v5348
        %v5350 = vmul.f32 %v5158, %v5348
        %v5351 = vmul.f32 %v5159, %v5348
        %v5352 = vmul.f32 %v5160, %v5348
        %v5353 = vmul.f32 %v5161, %v5348
        %v5354 = vmul.f32 %v5162, %v5348
        %v5355 = vmul.f32 %v5163, %v5348
        %v5356 = vmul.f32 %v5164, %v5348
        %v5357 = vmul.f32 %v5165, %v5348
        %v5358 = vmul.f32 %v5166, %v5348
        %v5359 = vmul.f32 %v5167, %v5348
        %v5360 = vmul.f32 %v5168, %v5348
        %v5361 = vmul.f32 %v5169, %v5348
        %v5362 = vmul.f32 %v5170, %v5348
        %v5363 = vmul.f32 %v5171, %v5348
        %v5364 = vmul.f32 %v5172, %v5348
        %v5365 = vmul.f32 %v5173, %v5348
        %v5366 = vmul.f32 %v5174, %v5348
        %v5367 = vmul.f32 %v5175, %v5348
        %v5368 = vmul.f32 %v5176, %v5348
        %v5369 = vmul.f32 %v5177, %v5348
        %v5370 = vmul.f32 %v5178, %v5348
        %v5371 = vmul.f32 %v5179, %v5348
        %v5372 = vmul.f32 %v5180, %v5348
        %v5397 = vrot.slane %v5349, 2
        %v5398 = vrot.slane %v5350, 2
        %v5399 = vsel %vm502, %v5397, %v5398
        %v5400 = vrot.slane %v5351, 2
        %v5401 = vsel %vm502, %v5398, %v5400
        %v5402 = vrot.slane %v5352, 2
        %v5403 = vrot.slane %v5353, 2
        %v5404 = vsel %vm502, %v5402, %v5403
        %v5405 = vrot.slane %v5354, 2
        %v5406 = vsel %vm502, %v5403, %v5405
        %v5407 = vrot.slane %v5355, 2
        %v5408 = vrot.slane %v5356, 2
        %v5409 = vsel %vm502, %v5407, %v5408
        %v5410 = vrot.slane %v5357, 2
        %v5411 = vsel %vm502, %v5408, %v5410
        %v5412 = vrot.slane %v5358, 2
        %v5413 = vrot.slane %v5359, 2
        %v5414 = vsel %vm502, %v5412, %v5413
        %v5415 = vrot.slane %v5360, 2
        %v5416 = vsel %vm502, %v5413, %v5415
        %v5417 = vrot.slane %v5361, 2
        %v5418 = vrot.slane %v5362, 2
        %v5419 = vsel %vm502, %v5417, %v5418
        %v5420 = vrot.slane %v5363, 2
        %v5421 = vsel %vm502, %v5418, %v5420
        %v5422 = vrot.slane %v5364, 2
        %v5423 = vrot.slane %v5365, 2
        %v5424 = vsel %vm502, %v5422, %v5423
        %v5425 = vrot.slane %v5366, 2
        %v5426 = vsel %vm502, %v5423, %v5425
        %v5427 = vrot.slane %v5367, 2
        %v5428 = vrot.slane %v5368, 2
        %v5429 = vsel %vm502, %v5427, %v5428
        %v5430 = vrot.slane %v5369, 2
        %v5431 = vsel %vm502, %v5428, %v5430
        %v5432 = vrot.slane %v5370, 2
        %v5433 = vrot.slane %v5371, 2
        %v5434 = vsel %vm502, %v5432, %v5433
        %v5435 = vrot.slane %v5372, 2
        %v5436 = vsel %vm502, %v5433, %v5435
        %v5453 = vadd.f32 %v5328, %v5399
        %v5454 = vadd.f32 %v5329, %v5401
        %v5455 = vadd.f32 %v5330, %v5404
        %v5456 = vadd.f32 %v5331, %v5406
        %v5457 = vadd.f32 %v5332, %v5409
        %v5458 = vadd.f32 %v5333, %v5411
        %v5459 = vadd.f32 %v5334, %v5414
        %v5460 = vadd.f32 %v5335, %v5416
        %v5461 = vadd.f32 %v5336, %v5419
        %v5462 = vadd.f32 %v5337, %v5421
        %v5463 = vadd.f32 %v5338, %v5424
        %v5464 = vadd.f32 %v5339, %v5426
        %v5465 = vadd.f32 %v5340, %v5429
        %v5466 = vadd.f32 %v5341, %v5431
        %v5467 = vadd.f32 %v5342, %v5434
        %v5468 = vadd.f32 %v5343, %v5436
        %v5469 = vld [vmem:[%s5181 + $0x3] sm:$0x1]
        %v5470 = vlaneseq
        %v5471 = vshrl.u32 %v5470, 7
        %v5472 = vsub.s32 0, %v5471
        %v5473 = vrot.slane %v5469, %v5472
        %v5474 = vmul.f32 %v5157, %v5473
        %v5475 = vmul.f32 %v5158, %v5473
        %v5476 = vmul.f32 %v5159, %v5473
        %v5477 = vmul.f32 %v5160, %v5473
        %v5478 = vmul.f32 %v5161, %v5473
        %v5479 = vmul.f32 %v5162, %v5473
        %v5480 = vmul.f32 %v5163, %v5473
        %v5481 = vmul.f32 %v5164, %v5473
        %v5482 = vmul.f32 %v5165, %v5473
        %v5483 = vmul.f32 %v5166, %v5473
        %v5484 = vmul.f32 %v5167, %v5473
        %v5485 = vmul.f32 %v5168, %v5473
        %v5486 = vmul.f32 %v5169, %v5473
        %v5487 = vmul.f32 %v5170, %v5473
        %v5488 = vmul.f32 %v5171, %v5473
        %v5489 = vmul.f32 %v5172, %v5473
        %v5490 = vmul.f32 %v5173, %v5473
        %v5491 = vmul.f32 %v5174, %v5473
        %v5492 = vmul.f32 %v5175, %v5473
        %v5493 = vmul.f32 %v5176, %v5473
        %v5494 = vmul.f32 %v5177, %v5473
        %v5495 = vmul.f32 %v5178, %v5473
        %v5496 = vmul.f32 %v5179, %v5473
        %v5497 = vmul.f32 %v5180, %v5473
        %v5522 = vrot.slane %v5474, 3
        %v5523 = vrot.slane %v5475, 3
        %v5524 = vsel %vm628, %v5522, %v5523
        %v5525 = vrot.slane %v5476, 3
        %v5526 = vsel %vm628, %v5523, %v5525
        %v5527 = vrot.slane %v5477, 3
        %v5528 = vrot.slane %v5478, 3
        %v5529 = vsel %vm628, %v5527, %v5528
        %v5530 = vrot.slane %v5479, 3
        %v5531 = vsel %vm628, %v5528, %v5530
        %v5532 = vrot.slane %v5480, 3
        %v5533 = vrot.slane %v5481, 3
        %v5534 = vsel %vm628, %v5532, %v5533
        %v5535 = vrot.slane %v5482, 3
        %v5536 = vsel %vm628, %v5533, %v5535
        %v5537 = vrot.slane %v5483, 3
        %v5538 = vrot.slane %v5484, 3
        %v5539 = vsel %vm628, %v5537, %v5538
        %v5540 = vrot.slane %v5485, 3
        %v5541 = vsel %vm628, %v5538, %v5540
        %v5542 = vrot.slane %v5486, 3
        %v5543 = vrot.slane %v5487, 3
        %v5544 = vsel %vm628, %v5542, %v5543
        %v5545 = vrot.slane %v5488, 3
        %v5546 = vsel %vm628, %v5543, %v5545
        %v5547 = vrot.slane %v5489, 3
        %v5548 = vrot.slane %v5490, 3
        %v5549 = vsel %vm628, %v5547, %v5548
        %v5550 = vrot.slane %v5491, 3
        %v5551 = vsel %vm628, %v5548, %v5550
        %v5552 = vrot.slane %v5492, 3
        %v5553 = vrot.slane %v5493, 3
        %v5554 = vsel %vm628, %v5552, %v5553
        %v5555 = vrot.slane %v5494, 3
        %v5556 = vsel %vm628, %v5553, %v5555
        %v5557 = vrot.slane %v5495, 3
        %v5558 = vrot.slane %v5496, 3
        %v5559 = vsel %vm628, %v5557, %v5558
        %v5560 = vrot.slane %v5497, 3
        %v5561 = vsel %vm628, %v5558, %v5560
        %v5578 = vadd.f32 %v5453, %v5524
        %v5579 = vadd.f32 %v5454, %v5526
        %v5580 = vadd.f32 %v5455, %v5529
        %v5581 = vadd.f32 %v5456, %v5531
        %v5582 = vadd.f32 %v5457, %v5534
        %v5583 = vadd.f32 %v5458, %v5536
        %v5584 = vadd.f32 %v5459, %v5539
        %v5585 = vadd.f32 %v5460, %v5541
        %v5586 = vadd.f32 %v5461, %v5544
        %v5587 = vadd.f32 %v5462, %v5546
        %v5588 = vadd.f32 %v5463, %v5549
        %v5589 = vadd.f32 %v5464, %v5551
        %v5590 = vadd.f32 %v5465, %v5554
        %v5591 = vadd.f32 %v5466, %v5556
        %v5592 = vadd.f32 %v5467, %v5559
        %v5593 = vadd.f32 %v5468, %v5561
        %v5594 = vld [vmem:[%s5181 + $0x4] sm:$0x1]
        %v5595 = vlaneseq
        %v5596 = vshrl.u32 %v5595, 7
        %v5597 = vsub.s32 0, %v5596
        %v5598 = vrot.slane %v5594, %v5597
        %v5599 = vmul.f32 %v5157, %v5598
        %v5600 = vmul.f32 %v5158, %v5598
        %v5601 = vmul.f32 %v5159, %v5598
        %v5602 = vmul.f32 %v5160, %v5598
        %v5603 = vmul.f32 %v5161, %v5598
        %v5604 = vmul.f32 %v5162, %v5598
        %v5605 = vmul.f32 %v5163, %v5598
        %v5606 = vmul.f32 %v5164, %v5598
        %v5607 = vmul.f32 %v5165, %v5598
        %v5608 = vmul.f32 %v5166, %v5598
        %v5609 = vmul.f32 %v5167, %v5598
        %v5610 = vmul.f32 %v5168, %v5598
        %v5611 = vmul.f32 %v5169, %v5598
        %v5612 = vmul.f32 %v5170, %v5598
        %v5613 = vmul.f32 %v5171, %v5598
        %v5614 = vmul.f32 %v5172, %v5598
        %v5615 = vmul.f32 %v5173, %v5598
        %v5616 = vmul.f32 %v5174, %v5598
        %v5617 = vmul.f32 %v5175, %v5598
        %v5618 = vmul.f32 %v5176, %v5598
        %v5619 = vmul.f32 %v5177, %v5598
        %v5620 = vmul.f32 %v5178, %v5598
        %v5621 = vmul.f32 %v5179, %v5598
        %v5622 = vmul.f32 %v5180, %v5598
        %v5647 = vrot.slane %v5599, 4
        %v5648 = vrot.slane %v5600, 4
        %v5649 = vsel %vm754, %v5647, %v5648
        %v5650 = vrot.slane %v5601, 4
        %v5651 = vsel %vm754, %v5648, %v5650
        %v5652 = vrot.slane %v5602, 4
        %v5653 = vrot.slane %v5603, 4
        %v5654 = vsel %vm754, %v5652, %v5653
        %v5655 = vrot.slane %v5604, 4
        %v5656 = vsel %vm754, %v5653, %v5655
        %v5657 = vrot.slane %v5605, 4
        %v5658 = vrot.slane %v5606, 4
        %v5659 = vsel %vm754, %v5657, %v5658
        %v5660 = vrot.slane %v5607, 4
        %v5661 = vsel %vm754, %v5658, %v5660
        %v5662 = vrot.slane %v5608, 4
        %v5663 = vrot.slane %v5609, 4
        %v5664 = vsel %vm754, %v5662, %v5663
        %v5665 = vrot.slane %v5610, 4
        %v5666 = vsel %vm754, %v5663, %v5665
        %v5667 = vrot.slane %v5611, 4
        %v5668 = vrot.slane %v5612, 4
        %v5669 = vsel %vm754, %v5667, %v5668
        %v5670 = vrot.slane %v5613, 4
        %v5671 = vsel %vm754, %v5668, %v5670
        %v5672 = vrot.slane %v5614, 4
        %v5673 = vrot.slane %v5615, 4
        %v5674 = vsel %vm754, %v5672, %v5673
        %v5675 = vrot.slane %v5616, 4
        %v5676 = vsel %vm754, %v5673, %v5675
        %v5677 = vrot.slane %v5617, 4
        %v5678 = vrot.slane %v5618, 4
        %v5679 = vsel %vm754, %v5677, %v5678
        %v5680 = vrot.slane %v5619, 4
        %v5681 = vsel %vm754, %v5678, %v5680
        %v5682 = vrot.slane %v5620, 4
        %v5683 = vrot.slane %v5621, 4
        %v5684 = vsel %vm754, %v5682, %v5683
        %v5685 = vrot.slane %v5622, 4
        %v5686 = vsel %vm754, %v5683, %v5685
        %v5703 = vadd.f32 %v5578, %v5649
        %v5704 = vadd.f32 %v5579, %v5651
        %v5705 = vadd.f32 %v5580, %v5654
        %v5706 = vadd.f32 %v5581, %v5656
        %v5707 = vadd.f32 %v5582, %v5659
        %v5708 = vadd.f32 %v5583, %v5661
        %v5709 = vadd.f32 %v5584, %v5664
        %v5710 = vadd.f32 %v5585, %v5666
        %v5711 = vadd.f32 %v5586, %v5669
        %v5712 = vadd.f32 %v5587, %v5671
        %v5713 = vadd.f32 %v5588, %v5674
        %v5714 = vadd.f32 %v5589, %v5676
        %v5715 = vadd.f32 %v5590, %v5679
        %v5716 = vadd.f32 %v5591, %v5681
        %v5717 = vadd.f32 %v5592, %v5684
        %v5718 = vadd.f32 %v5593, %v5686
        %v5719 = vld [vmem:[%s5181 + $0x5] sm:$0x1]
        %v5720 = vlaneseq
        %v5721 = vshrl.u32 %v5720, 7
        %v5722 = vsub.s32 0, %v5721
        %v5723 = vrot.slane %v5719, %v5722
        %v5724 = vmul.f32 %v5157, %v5723
        %v5725 = vmul.f32 %v5158, %v5723
        %v5726 = vmul.f32 %v5159, %v5723
        %v5727 = vmul.f32 %v5160, %v5723
        %v5728 = vmul.f32 %v5161, %v5723
        %v5729 = vmul.f32 %v5162, %v5723
        %v5730 = vmul.f32 %v5163, %v5723
        %v5731 = vmul.f32 %v5164, %v5723
        %v5732 = vmul.f32 %v5165, %v5723
        %v5733 = vmul.f32 %v5166, %v5723
        %v5734 = vmul.f32 %v5167, %v5723
        %v5735 = vmul.f32 %v5168, %v5723
        %v5736 = vmul.f32 %v5169, %v5723
        %v5737 = vmul.f32 %v5170, %v5723
        %v5738 = vmul.f32 %v5171, %v5723
        %v5739 = vmul.f32 %v5172, %v5723
        %v5740 = vmul.f32 %v5173, %v5723
        %v5741 = vmul.f32 %v5174, %v5723
        %v5742 = vmul.f32 %v5175, %v5723
        %v5743 = vmul.f32 %v5176, %v5723
        %v5744 = vmul.f32 %v5177, %v5723
        %v5745 = vmul.f32 %v5178, %v5723
        %v5746 = vmul.f32 %v5179, %v5723
        %v5747 = vmul.f32 %v5180, %v5723
        %v5772 = vrot.slane %v5724, 5
        %v5773 = vrot.slane %v5725, 5
        %v5774 = vsel %vm880, %v5772, %v5773
        %v5775 = vrot.slane %v5726, 5
        %v5776 = vsel %vm880, %v5773, %v5775
        %v5777 = vrot.slane %v5727, 5
        %v5778 = vrot.slane %v5728, 5
        %v5779 = vsel %vm880, %v5777, %v5778
        %v5780 = vrot.slane %v5729, 5
        %v5781 = vsel %vm880, %v5778, %v5780
        %v5782 = vrot.slane %v5730, 5
        %v5783 = vrot.slane %v5731, 5
        %v5784 = vsel %vm880, %v5782, %v5783
        %v5785 = vrot.slane %v5732, 5
        %v5786 = vsel %vm880, %v5783, %v5785
        %v5787 = vrot.slane %v5733, 5
        %v5788 = vrot.slane %v5734, 5
        %v5789 = vsel %vm880, %v5787, %v5788
        %v5790 = vrot.slane %v5735, 5
        %v5791 = vsel %vm880, %v5788, %v5790
        %v5792 = vrot.slane %v5736, 5
        %v5793 = vrot.slane %v5737, 5
        %v5794 = vsel %vm880, %v5792, %v5793
        %v5795 = vrot.slane %v5738, 5
        %v5796 = vsel %vm880, %v5793, %v5795
        %v5797 = vrot.slane %v5739, 5
        %v5798 = vrot.slane %v5740, 5
        %v5799 = vsel %vm880, %v5797, %v5798
        %v5800 = vrot.slane %v5741, 5
        %v5801 = vsel %vm880, %v5798, %v5800
        %v5802 = vrot.slane %v5742, 5
        %v5803 = vrot.slane %v5743, 5
        %v5804 = vsel %vm880, %v5802, %v5803
        %v5805 = vrot.slane %v5744, 5
        %v5806 = vsel %vm880, %v5803, %v5805
        %v5807 = vrot.slane %v5745, 5
        %v5808 = vrot.slane %v5746, 5
        %v5809 = vsel %vm880, %v5807, %v5808
        %v5810 = vrot.slane %v5747, 5
        %v5811 = vsel %vm880, %v5808, %v5810
        %v5828 = vadd.f32 %v5703, %v5774
        %v5829 = vadd.f32 %v5704, %v5776
        %v5830 = vadd.f32 %v5705, %v5779
        %v5831 = vadd.f32 %v5706, %v5781
        %v5832 = vadd.f32 %v5707, %v5784
        %v5833 = vadd.f32 %v5708, %v5786
        %v5834 = vadd.f32 %v5709, %v5789
        %v5835 = vadd.f32 %v5710, %v5791
        %v5836 = vadd.f32 %v5711, %v5794
        %v5837 = vadd.f32 %v5712, %v5796
        %v5838 = vadd.f32 %v5713, %v5799
        %v5839 = vadd.f32 %v5714, %v5801
        %v5840 = vadd.f32 %v5715, %v5804
        %v5841 = vadd.f32 %v5716, %v5806
        %v5842 = vadd.f32 %v5717, %v5809
        %v5843 = vadd.f32 %v5718, %v5811
        %v5844 = vld [vmem:[%s5181 + $0x6] sm:$0x1]
        %v5845 = vlaneseq
        %v5846 = vshrl.u32 %v5845, 7
        %v5847 = vsub.s32 0, %v5846
        %v5848 = vrot.slane %v5844, %v5847
        %v5849 = vmul.f32 %v5157, %v5848
        %v5850 = vmul.f32 %v5158, %v5848
        %v5851 = vmul.f32 %v5159, %v5848
        %v5852 = vmul.f32 %v5160, %v5848
        %v5853 = vmul.f32 %v5161, %v5848
        %v5854 = vmul.f32 %v5162, %v5848
        %v5855 = vmul.f32 %v5163, %v5848
        %v5856 = vmul.f32 %v5164, %v5848
        %v5857 = vmul.f32 %v5165, %v5848
        %v5858 = vmul.f32 %v5166, %v5848
        %v5859 = vmul.f32 %v5167, %v5848
        %v5860 = vmul.f32 %v5168, %v5848
        %v5861 = vmul.f32 %v5169, %v5848
        %v5862 = vmul.f32 %v5170, %v5848
        %v5863 = vmul.f32 %v5171, %v5848
        %v5864 = vmul.f32 %v5172, %v5848
        %v5865 = vmul.f32 %v5173, %v5848
        %v5866 = vmul.f32 %v5174, %v5848
        %v5867 = vmul.f32 %v5175, %v5848
        %v5868 = vmul.f32 %v5176, %v5848
        %v5869 = vmul.f32 %v5177, %v5848
        %v5870 = vmul.f32 %v5178, %v5848
        %v5871 = vmul.f32 %v5179, %v5848
        %v5872 = vmul.f32 %v5180, %v5848
        %v5897 = vrot.slane %v5849, 6
        %v5898 = vrot.slane %v5850, 6
        %v5899 = vsel %vm1006, %v5897, %v5898
        %v5900 = vrot.slane %v5851, 6
        %v5901 = vsel %vm1006, %v5898, %v5900
        %v5902 = vrot.slane %v5852, 6
        %v5903 = vrot.slane %v5853, 6
        %v5904 = vsel %vm1006, %v5902, %v5903
        %v5905 = vrot.slane %v5854, 6
        %v5906 = vsel %vm1006, %v5903, %v5905
        %v5907 = vrot.slane %v5855, 6
        %v5908 = vrot.slane %v5856, 6
        %v5909 = vsel %vm1006, %v5907, %v5908
        %v5910 = vrot.slane %v5857, 6
        %v5911 = vsel %vm1006, %v5908, %v5910
        %v5912 = vrot.slane %v5858, 6
        %v5913 = vrot.slane %v5859, 6
        %v5914 = vsel %vm1006, %v5912, %v5913
        %v5915 = vrot.slane %v5860, 6
        %v5916 = vsel %vm1006, %v5913, %v5915
        %v5917 = vrot.slane %v5861, 6
        %v5918 = vrot.slane %v5862, 6
        %v5919 = vsel %vm1006, %v5917, %v5918
        %v5920 = vrot.slane %v5863, 6
        %v5921 = vsel %vm1006, %v5918, %v5920
        %v5922 = vrot.slane %v5864, 6
        %v5923 = vrot.slane %v5865, 6
        %v5924 = vsel %vm1006, %v5922, %v5923
        %v5925 = vrot.slane %v5866, 6
        %v5926 = vsel %vm1006, %v5923, %v5925
        %v5927 = vrot.slane %v5867, 6
        %v5928 = vrot.slane %v5868, 6
        %v5929 = vsel %vm1006, %v5927, %v5928
        %v5930 = vrot.slane %v5869, 6
        %v5931 = vsel %vm1006, %v5928, %v5930
        %v5932 = vrot.slane %v5870, 6
        %v5933 = vrot.slane %v5871, 6
        %v5934 = vsel %vm1006, %v5932, %v5933
        %v5935 = vrot.slane %v5872, 6
        %v5936 = vsel %vm1006, %v5933, %v5935
        %v5953 = vadd.f32 %v5828, %v5899
        %v5954 = vadd.f32 %v5829, %v5901
        %v5955 = vadd.f32 %v5830, %v5904
        %v5956 = vadd.f32 %v5831, %v5906
        %v5957 = vadd.f32 %v5832, %v5909
        %v5958 = vadd.f32 %v5833, %v5911
        %v5959 = vadd.f32 %v5834, %v5914
        %v5960 = vadd.f32 %v5835, %v5916
        %v5961 = vadd.f32 %v5836, %v5919
        %v5962 = vadd.f32 %v5837, %v5921
        %v5963 = vadd.f32 %v5838, %v5924
        %v5964 = vadd.f32 %v5839, %v5926
        %v5965 = vadd.f32 %v5840, %v5929
        %v5966 = vadd.f32 %v5841, %v5931
        %v5967 = vadd.f32 %v5842, %v5934
        %v5968 = vadd.f32 %v5843, %v5936
        %5969 = vst [vmem:[%s247] sm:$0xff] %v5953
        %5970 = vst [vmem:[%s247 + $0x8] sm:$0xff] %v5954
        %5971 = vst [vmem:[%s247 + $0x10] sm:$0xff] %v5955
        %5972 = vst [vmem:[%s247 + $0x18] sm:$0xff] %v5956
        %5973 = vst [vmem:[%s247 + $0x20] sm:$0xff] %v5957
        %5974 = vst [vmem:[%s247 + $0x28] sm:$0xff] %v5958
        %5975 = vst [vmem:[%s247 + $0x30] sm:$0xff] %v5959
        %5976 = vst [vmem:[%s247 + $0x38] sm:$0xff] %v5960
        %5977 = vst [vmem:[%s247 + $0x40] sm:$0xff] %v5961
        %5978 = vst [vmem:[%s247 + $0x48] sm:$0xff] %v5962
        %5979 = vst [vmem:[%s247 + $0x50] sm:$0xff] %v5963
        %5980 = vst [vmem:[%s247 + $0x58] sm:$0xff] %v5964
        %5981 = vst [vmem:[%s247 + $0x60] sm:$0xff] %v5965
        %5982 = vst [vmem:[%s247 + $0x68] sm:$0xff] %v5966
        %5983 = vst [vmem:[%s247 + $0x70] sm:$0xff] %v5967
        %5984 = vst [vmem:[%s247 + $0x78] sm:$0xff] %v5968
        %s5985 = sand.u32 %s132, 1
        %s5986 = scalar_lea.sflag [#allocation4], %s5985
        %s5987 = sand.u32 %s132, 1
        %s5988 = smul.addr %s5987, 128
        %s5989 = scalar_lea.vmem [#allocation7], %s5988
        // Predicated region
        $region41: #{tpu_custom_call.1} parent=31 // pred_check
          %p5990 = pneg %p142
        $region42: #{tpu_custom_call.1} parent=31 // pred_check_branch
          %5992 = sbr.rel (%p5990) target = $region44
        $region43: #{tpu_custom_call.1} parent=31 // pred_region
          %s5993 = smul.u32 8, %s28
          %s5995 = ssub.s32 2048, 2048
          %5996 = vsyncadd %s5986, %s5995
          %s5997 = smul.addr %s5993, 2
          %s5998 = sadd.s32 %s27, %s5997
          %s5999 = smul.addr %s26, 32
          %s6000 = sadd.s32 %s5998, %s5999
          %s6001 = smul.addr %s6000, 128
          %s6002 = scalar_lea.hbm %s3, %s6001
          %s6003 = sshll.u32 %s5989, 4
          %s6004 = int_to_ptr.vmem [resolvable:$true] %s6003
          %6009 = dma.vmem_to_hbm [thread:$0]  %s6004, 2048, %s6002, %s5986, 128, 128, 8
        $region44: #{tpu_custom_call.1} parent=31 // pred_fallthru
          _
      $region32: #{tpu_custom_call.1} parent=5 // pred_fallthru
        _
      %p6010 = scmp.le.s32.totalorder 2, %s16
      // Predicated region
      $region45: #{tpu_custom_call.1} parent=5 // pred_check
        %p6011 = pneg %p6010
      $region46: #{tpu_custom_call.1} parent=5 // pred_check_branch
        %6013 = sbr.rel (%p6011) target = $region48
      $region47: #{tpu_custom_call.1} parent=5 // pred_region
        %s6014 = ssub.s32 %s16, 2
        // Predicated region
        $region49: #{tpu_custom_call.1} parent=47 // pred_check
          %p6015 = pneg %p148
        $region50: #{tpu_custom_call.1} parent=47 // pred_check_branch
          %6017 = sbr.rel (%p6015) target = $region52
        $region51: #{tpu_custom_call.1} parent=47 // pred_region
          %s6018 = sand.u32 %s133, 1
          %s6019 = scalar_lea.sflag [#allocation4], %s6018
          %s6020 = sand.u32 %s133, 1
          %s6021 = smul.addr %s6020, 128
          %s6022 = scalar_lea.vmem [#allocation7], %s6021
          %6023 = dma.done %s6019, 2048
        $region52: #{tpu_custom_call.1} parent=47 // pred_fallthru
          _
      $region48: #{tpu_custom_call.1} parent=5 // pred_fallthru
        _
    $region6: #{tpu_custom_call.1} parent=1 // loop_footer
      %s20 = sadd.s32 1, %s16
    $region7: #{tpu_custom_call.1} parent=1 // loop_footer_branch
      %15 = sbr.rel target = $region3
    $region8: #{tpu_custom_call.1} parent=1 // loop_exit
      _
    %6024 = vsyncpa [#allocation3], 1
    %s6025 = scalar_lea.sflag [#allocation3], 1
    %6026 = vsyncpa %s6025, 1
    %6027 = vsyncpa [#allocation6], 1
    %6028 = vsyncpa [#allocation4], 1
    %s6029 = scalar_lea.sflag [#allocation4], 1
    %6030 = vsyncpa %s6029, 1

</llo_original>
